<compile_context>
chip_gen: v7x
topology: tpu7x:2x2x1
jax: 0.10.0
libtpu: 0.0.40
codegen_flags: <defaults>
</compile_context>

<pallas_src>
import functools

import jax
import jax.numpy as jnp
from jax import lax
from jax.experimental import pallas as pl
from jax.experimental.pallas import tpu as pltpu


# ----------------------------------------------------------------------------
# small helpers
# ----------------------------------------------------------------------------
def _pad_last2(x, m_row, m_col):
    r = (-x.shape[-2]) % m_row
    c = (-x.shape[-1]) % m_col
    if r == 0 and c == 0:
        return x
    pads = [(0, 0)] * (x.ndim - 2) + [(0, r), (0, c)]
    return jnp.pad(x, pads)


def _celu(v):
    # CELU(alpha=1): x if x > 0 else exp(x) - 1  (overflow-safe via min)
    return jnp.where(v > 0, v, jnp.exp(jnp.minimum(v, 0.0)) - 1.0)


def _patches_nhwc(x_nhwc, k, stride, pad):
    """im2col via conv_general_dilated_patches. Feature order = (Cin, kh, kw)."""
    p = lax.conv_general_dilated_patches(
        x_nhwc,
        filter_shape=(k, k),
        window_strides=(stride, stride),
        padding=[(pad, pad), (pad, pad)],
        dimension_numbers=("NHWC", "HWIO", "NHWC"),
        precision=lax.Precision.HIGHEST,
    )
    return p, p.shape[1], p.shape[2]


# ----------------------------------------------------------------------------
# Pallas kernel 1: per-head  out = celu(x @ w + b)   (grid over the 2 heads)
# ----------------------------------------------------------------------------
def _headed_matmul_kernel(x_ref, w_ref, b_ref, o_ref, *, apply_celu, x_headed):
    x = x_ref[0] if x_headed else x_ref[...]
    acc = jnp.dot(x, w_ref[0], preferred_element_type=jnp.float32) + b_ref[0]
    if apply_celu:
        acc = _celu(acc)
    o_ref[0] = acc.astype(o_ref.dtype)


def headed_matmul_bias_celu(x, w, b, *, apply_celu=True):
    """One pallas_call for both Q-heads.

    x: (M, K) shared across heads, or (2, M, K) per-head.
    w: (2, Kp, Np) pre-padded.   b: (2, 1, Np) pre-padded.
    returns (2, Mp, Np) float32 (caller slices the real M / N region).
    """
    x_headed = x.ndim == 3
    Kp, Np = w.shape[1], w.shape[2]
    M, K = x.shape[-2], x.shape[-1]
    kpad = Kp - K
    mpad = (-M) % 8
    assert kpad >= 0
    xp = x.astype(jnp.float32)
    if kpad or mpad:
        pads = [(0, 0)] * (x.ndim - 2) + [(0, mpad), (0, kpad)]
        xp = jnp.pad(xp, pads)
    Mp = M + mpad

    if x_headed:
        x_spec = pl.BlockSpec((1, Mp, Kp), lambda h: (h, 0, 0))
    else:
        x_spec = pl.BlockSpec((Mp, Kp), lambda h: (0, 0))

    out = pl.pallas_call(
        functools.partial(_headed_matmul_kernel, apply_celu=apply_celu,
                          x_headed=x_headed),
        out_shape=jax.ShapeDtypeStruct((2, Mp, Np), jnp.float32),
        grid=(2,),
        in_specs=[
            x_spec,
            pl.BlockSpec((1, Kp, Np), lambda h: (h, 0, 0)),
            pl.BlockSpec((1, 1, Np), lambda h: (h, 0, 0)),
        ],
        out_specs=pl.BlockSpec((1, Mp, Np), lambda h: (h, 0, 0)),
        compiler_params=pltpu.CompilerParams(dimension_semantics=("parallel",)),
    )(xp, w, b)
    return out


# ----------------------------------------------------------------------------
# Pallas kernel 2: per-head fused matmul chain (conv4 + fc1 + fc2 + fc3)
# ----------------------------------------------------------------------------
def _headed_mlp_kernel(*refs, acts):
    x_ref = refs[0]
    o_ref = refs[-1]
    h = x_ref[0]
    for i, act in enumerate(acts):
        w_ref = refs[1 + 2 * i]
        b_ref = refs[2 + 2 * i]
        h = jnp.dot(h, w_ref[0], preferred_element_type=jnp.float32) + b_ref[0]
        if act:
            h = _celu(h)
    o_ref[0] = h.astype(o_ref.dtype)


def headed_mlp(x, layers):
    """Fused matmul+bias(+CELU) chain for both heads in one pallas_call.

    x: (2, M, K0) per-head input.
    layers: list of (w (2, Ki, Ni) padded, b (2, 1, Ni) padded, apply_celu).
    All weights resident in VMEM; intermediates never leave the kernel.
    """
    M, K0 = x.shape[-2], x.shape[-1]
    K0p = layers[0][0].shape[1]
    kpad = K0p - K0
    mpad = (-M) % 8
    assert kpad >= 0
    xp = x.astype(jnp.float32)
    if kpad or mpad:
        xp = jnp.pad(xp, ((0, 0), (0, mpad), (0, kpad)))
    Mp = M + mpad

    prev_n = K0p
    in_specs = [pl.BlockSpec((1, Mp, K0p), lambda h: (h, 0, 0))]
    operands = [xp]
    for w, b, _ in layers:
        Ki, Ni = w.shape[1], w.shape[2]
        assert Ki == prev_n, (Ki, prev_n)
        prev_n = Ni
        in_specs.append(pl.BlockSpec((1, Ki, Ni), lambda h: (h, 0, 0)))
        in_specs.append(pl.BlockSpec((1, 1, Ni), lambda h: (h, 0, 0)))
        operands += [w, b]
    Np = prev_n
    acts = tuple(a for _, _, a in layers)

    out = pl.pallas_call(
        functools.partial(_headed_mlp_kernel, acts=acts),
        out_shape=jax.ShapeDtypeStruct((2, Mp, Np), jnp.float32),
        grid=(2,),
        in_specs=in_specs,
        out_specs=pl.BlockSpec((1, Mp, Np), lambda h: (h, 0, 0)),
        compiler_params=pltpu.CompilerParams(dimension_semantics=("parallel",)),
    )(*operands)
    return out[:, :M, :]


# ----------------------------------------------------------------------------
# Triple_DQN parameters
# ----------------------------------------------------------------------------
_CONV_CFG = [(5, 2, 2), (5, 2, 2), (3, 2, 1), (3, 2, 1)]  # (kernel, stride, pad)
_CONV_COUT = [16, 32, 64, 128]


def init_q_head_params(key, in_ch, fc_in, action_dim):
    """torch-layout params: conv weights OIHW, Linear weights (out, in)."""
    conv_shapes = [(16, in_ch, 5, 5), (32, 16, 5, 5), (64, 32, 3, 3), (128, 64, 3, 3)]
    fc_shapes = [(256, fc_in), (256, 256), (action_dim, 256)]
    params = {}
    keys = jax.random.split(key, 2 * (len(conv_shapes) + len(fc_shapes)))
    for i, shp in enumerate(conv_shapes):
        params[f"c{i+1}w"] = 0.05 * jax.random.normal(keys[2 * i], shp, jnp.float32)
        params[f"c{i+1}b"] = 0.01 * jax.random.normal(keys[2 * i + 1], (shp[0],), jnp.float32)
    off = 2 * len(conv_shapes)
    for i, shp in enumerate(fc_shapes):
        params[f"f{i+1}w"] = 0.05 * jax.random.normal(keys[off + 2 * i], shp, jnp.float32)
        params[f"f{i+1}b"] = 0.01 * jax.random.normal(keys[off + 2 * i + 1], (shp[0],), jnp.float32)
    return params


def prep_params(p1, p2):
    """One-time weight re-layout: stack the two heads, reshape conv weights to
    (Cin*kh*kw, Cout) (matches patches feature order), transpose fc weights to
    (K, N), zero-pad K/N to multiples of 128."""
    out = {}
    for i in range(4):
        ws, bs = [], []
        for p in (p1, p2):
            w = p[f"c{i+1}w"]                      # (Cout, Cin, kh, kw)
            ws.append(w.reshape(w.shape[0], -1).T)  # (Cin*kh*kw, Cout)
            bs.append(p[f"c{i+1}b"].reshape(1, -1))
        out[f"c{i+1}w"] = _pad_last2(jnp.stack(ws).astype(jnp.float32), 128, 128)
        out[f"c{i+1}b"] = _pad_last2(jnp.stack(bs).astype(jnp.float32), 1, 128)
    for i in range(3):
        ws = [p[f"f{i+1}w"].T for p in (p1, p2)]    # (in, out)
        bs = [p[f"f{i+1}b"].reshape(1, -1) for p in (p1, p2)]
        out[f"f{i+1}w"] = _pad_last2(jnp.stack(ws).astype(jnp.float32), 128, 128)
        out[f"f{i+1}b"] = _pad_last2(jnp.stack(bs).astype(jnp.float32), 1, 128)
    return out


# ----------------------------------------------------------------------------
# forward
# ----------------------------------------------------------------------------
def triple_dqn_forward(x_nchw, prepped, *, fc_in, action_dim):
    assert x_nchw.ndim == 4
    B = x_nchw.shape[0]
    x = jnp.transpose(x_nchw, (0, 2, 3, 1)).astype(jnp.float32)  # NHWC

    # conv1: shared input -> im2col once, one pallas_call for both heads.
    p, ho, wo = _patches_nhwc(x, *_CONV_CFG[0])
    cols = p.reshape(B * ho * wo, p.shape[-1])
    out = headed_matmul_bias_celu(cols, prepped["c1w"], prepped["c1b"])
    h = out[:, : B * ho * wo, : _CONV_COUT[0]].reshape(2 * B, ho, wo, _CONV_COUT[0])

    # conv2, conv3: head folded into the batch for im2col, one pallas_call each.
    for li in (1, 2):
        p, ho, wo = _patches_nhwc(h, *_CONV_CFG[li])
        cols = p.reshape(2, B * ho * wo, p.shape[-1])
        out = headed_matmul_bias_celu(cols, prepped[f"c{li+1}w"], prepped[f"c{li+1}b"])
        h = out[:, : B * ho * wo, : _CONV_COUT[li]].reshape(2 * B, ho, wo, _CONV_COUT[li])

    # conv4 (+ FC stack)
    p, ho, wo = _patches_nhwc(h, *_CONV_CFG[3])
    cols = p.reshape(2, B * ho * wo, p.shape[-1])
    fc_layers = [
        (prepped["f1w"], prepped["f1b"], True),
        (prepped["f2w"], prepped["f2b"], True),
        (prepped["f3w"], prepped["f3b"], False),
    ]
    if ho * wo == 1:
        # conv4 output is 1x1 spatial -> its matmul rows ARE the fc input rows;
        # fuse conv4 + fc1 + fc2 + fc3 into a single pallas_call.
        layers = [(prepped["c4w"], prepped["c4b"], True)] + fc_layers
        q = headed_mlp(cols, layers)
    else:
        # TODO(synk): general spatial case keeps conv4 separate + NCHW flatten glue.
        out = headed_matmul_bias_celu(cols, prepped["c4w"], prepped["c4b"])
        h4 = out[:, : B * ho * wo, : _CONV_COUT[3]].reshape(2, B, ho, wo, _CONV_COUT[3])
        flat = jnp.transpose(h4, (0, 1, 4, 2, 3)).reshape(2, B, fc_in)
        q = headed_mlp(flat, fc_layers)

    q = q[:, :, :action_dim]
    return q[0], q[1]


# ----------------------------------------------------------------------------
# pure-XLA reference (for numerical validation of the Pallas path)
# ----------------------------------------------------------------------------
def _ref_q_head(x_nchw, p):
    hi = lax.Precision.HIGHEST

    def conv(x, w, b, s, pad):
        y = lax.conv_general_dilated(
            x, w, (s, s), [(pad, pad), (pad, pad)],
            dimension_numbers=("NCHW", "OIHW", "NCHW"), precision=hi)
        return y + b[None, :, None, None]

    h = _celu(conv(x_nchw, p["c1w"], p["c1b"], 2, 2))
    h = _celu(conv(h, p["c2w"], p["c2b"], 2, 2))
    h = _celu(conv(h, p["c3w"], p["c3b"], 2, 1))
    h = _celu(conv(h, p["c4w"], p["c4b"], 2, 1))
    h = h.reshape(h.shape[0], -1)
    h = _celu(jnp.dot(h, p["f1w"].T, precision=hi) + p["f1b"])
    h = _celu(jnp.dot(h, p["f2w"].T, precision=hi) + p["f2b"])
    return jnp.dot(h, p["f3w"].T, precision=hi) + p["f3b"]


# ----------------------------------------------------------------------------
if __name__ == "__main__":
    # Module config (small): step_size=2, channel_size=2 -> input channels = 4
    step_size, channel_size = 2, 2
    height = width = 16
    action_dim = 4
    batch = 2

    in_ch = step_size * channel_size
    fc_in = int(128 * (height / 16) * (width / 16))  # = 128

    key = jax.random.PRNGKey(0)
    kx, k1, k2 = jax.random.split(key, 3)
    x = jax.random.normal(kx, (batch, in_ch, height, width), jnp.float32)

    raw_q1 = init_q_head_params(k1, in_ch, fc_in, action_dim)
    raw_q2 = init_q_head_params(k2, in_ch, fc_in, action_dim)

    # One-time weight layout / padding (outside the jitted forward).
    prepped = prep_params(raw_q1, raw_q2)

    fwd = jax.jit(functools.partial(triple_dqn_forward, fc_in=fc_in,
                                    action_dim=action_dim))
    q1, q2 = fwd(x, prepped)
    jax.block_until_ready((q1, q2))
    assert q1.shape == (batch, action_dim) and q2.shape == (batch, action_dim)

    # numerical check against a pure-XLA reference of the same forward
    r1 = _ref_q_head(x, raw_q1)
    r2 = _ref_q_head(x, raw_q2)
    assert jnp.allclose(q1, r1, atol=5e-3, rtol=5e-3), (q1, r1)
    assert jnp.allclose(q2, r2, atol=5e-3, rtol=5e-3), (q2, r2)

    print("KERNEL_OK")
</pallas_src>

<mosaic_0001>
module attributes {stable_mosaic.version = 11 : i64} {
  func.func @_headed_matmul_kernel(%arg0: i32, %arg1: memref<128x128xf32, #tpu.memory_space<vmem>>, %arg2: memref<1x128x128xf32, #tpu.memory_space<vmem>>, %arg3: memref<1x1x128xf32, #tpu.memory_space<vmem>>, %arg4: memref<1x128x128xf32, #tpu.memory_space<vmem>>) attributes {dimension_semantics = [#tpu.dimension_semantics<parallel>], iteration_bounds = array<i64: 2>, scalar_prefetch = 0 : i64, scratch_operands = 0 : i64, tpu.core_type = #tpu.core_type<tc>, window_params = [{pipeline_mode = #tpu.pipeline_mode<synchronous>, transform_indices = @transform_0, window_bounds = array<i64: 128, 128>}, {transform_indices = @transform_1, window_bounds = array<i64: 1, 128, 128>}, {transform_indices = @transform_2, window_bounds = array<i64: 1, 1, 128>}, {transform_indices = @transform_3, window_bounds = array<i64: 1, 128, 128>}]} {
    %c0 = arith.constant 0 : index
    %c0_0 = arith.constant 0 : index
    %0 = vector.load %arg1[%c0, %c0_0] : memref<128x128xf32, #tpu.memory_space<vmem>>, vector<128x128xf32>
    %c0_1 = arith.constant 0 : index
    %c0_2 = arith.constant 0 : index
    %c0_3 = arith.constant 0 : index
    %1 = vector.load %arg2[%c0_1, %c0_2, %c0_3] : memref<1x128x128xf32, #tpu.memory_space<vmem>>, vector<1x128x128xf32>
    %2 = vector.shape_cast %1 : vector<1x128x128xf32> to vector<128x128xf32>
    %cst = arith.constant dense<0.000000e+00> : vector<128x128xf32>
    %3 = tpu.matmul %0, %2, %cst {dimension_numbers = #tpu.dot_dimension_numbers<[1], [0], [0], [1], [0, 0, 1, 1], [], []>} : vector<128x128xf32>, vector<128x128xf32>, vector<128x128xf32> -> vector<128x128xf32>
    %c0_4 = arith.constant 0 : index
    %c0_5 = arith.constant 0 : index
    %c0_6 = arith.constant 0 : index
    %4 = vector.load %arg3[%c0_4, %c0_5, %c0_6] : memref<1x1x128xf32, #tpu.memory_space<vmem>>, vector<1x1x128xf32>
    %5 = vector.shape_cast %4 : vector<1x1x128xf32> to vector<1x128xf32>
    %6 = vector.broadcast %5 : vector<1x128xf32> to vector<128x128xf32>
    %7 = arith.addf %3, %6 : vector<128x128xf32>
    %cst_7 = arith.constant 0.000000e+00 : f32
    %8 = vector.broadcast %cst_7 : f32 to vector<128x128xf32>
    %9 = arith.cmpf ogt, %7, %8 : vector<128x128xf32>
    %cst_8 = arith.constant 0.000000e+00 : f32
    %10 = vector.broadcast %cst_8 : f32 to vector<128x128xf32>
    %11 = arith.minimumf %7, %10 : vector<128x128xf32>
    %12 = math.exp %11 : vector<128x128xf32>
    %cst_9 = arith.constant 1.000000e+00 : f32
    %13 = vector.broadcast %cst_9 : f32 to vector<128x128xf32>
    %14 = arith.subf %12, %13 : vector<128x128xf32>
    %15 = arith.select %9, %7, %14 : vector<128x128xi1>, vector<128x128xf32>
    %c0_10 = arith.constant 0 : index
    %c0_11 = arith.constant 0 : index
    %c0_12 = arith.constant 0 : index
    %16 = vector.load %arg4[%c0_10, %c0_11, %c0_12] : memref<1x128x128xf32, #tpu.memory_space<vmem>>, vector<1x128x128xf32>
    %17 = vector.shape_cast %16 : vector<1x128x128xf32> to vector<128x128xf32>
    %18 = vector.shape_cast %15 : vector<128x128xf32> to vector<1x128x128xf32>
    tpu.vector_store %arg4[%c0_10, %c0_11, %c0_12], %18 {strides = array<i32>} : memref<1x128x128xf32, #tpu.memory_space<vmem>>, vector<1x128x128xf32>,
    return
  }
  func.func @transform_0(%arg0: i32) -> (i32, i32) {
    %c0_i32 = arith.constant 0 : i32
    %c0_i32_0 = arith.constant 0 : i32
    %c0_i32_1 = arith.constant 0 : i32
    return %c0_i32, %c0_i32_0 : i32, i32
  }
  func.func @transform_1(%arg0: i32) -> (i32, i32, i32) {
    %c0_i32 = arith.constant 0 : i32
    %c0_i32_0 = arith.constant 0 : i32
    %c0_i32_1 = arith.constant 0 : i32
    return %arg0, %c0_i32, %c0_i32_0 : i32, i32, i32
  }
  func.func @transform_2(%arg0: i32) -> (i32, i32, i32) {
    %c0_i32 = arith.constant 0 : i32
    %c0_i32_0 = arith.constant 0 : i32
    %c0_i32_1 = arith.constant 0 : i32
    return %arg0, %c0_i32, %c0_i32_0 : i32, i32, i32
  }
  func.func @transform_3(%arg0: i32) -> (i32, i32, i32) {
    %c0_i32 = arith.constant 0 : i32
    %c0_i32_0 = arith.constant 0 : i32
    %c0_i32_1 = arith.constant 0 : i32
    return %arg0, %c0_i32, %c0_i32_0 : i32, i32, i32
  }
}

module attributes {stable_mosaic.version = 11 : i64} {
  func.func @_headed_matmul_kernel(%arg0: i32, %arg1: memref<1x32x512xf32, #tpu.memory_space<vmem>>, %arg2: memref<1x512x128xf32, #tpu.memory_space<vmem>>, %arg3: memref<1x1x128xf32, #tpu.memory_space<vmem>>, %arg4: memref<1x32x128xf32, #tpu.memory_space<vmem>>) attributes {dimension_semantics = [#tpu.dimension_semantics<parallel>], iteration_bounds = array<i64: 2>, scalar_prefetch = 0 : i64, scratch_operands = 0 : i64, tpu.core_type = #tpu.core_type<tc>, window_params = [{transform_indices = @transform_0, window_bounds = array<i64: 1, 32, 512>}, {transform_indices = @transform_1, window_bounds = array<i64: 1, 512, 128>}, {transform_indices = @transform_2, window_bounds = array<i64: 1, 1, 128>}, {transform_indices = @transform_3, window_bounds = array<i64: 1, 32, 128>}]} {
    %c0 = arith.constant 0 : index
    %c0_0 = arith.constant 0 : index
    %c0_1 = arith.constant 0 : index
    %0 = vector.load %arg1[%c0, %c0_0, %c0_1] : memref<1x32x512xf32, #tpu.memory_space<vmem>>, vector<1x32x512xf32>
    %1 = vector.shape_cast %0 : vector<1x32x512xf32> to vector<32x512xf32>
    %c0_2 = arith.constant 0 : index
    %c0_3 = arith.constant 0 : index
    %c0_4 = arith.constant 0 : index
    %2 = vector.load %arg2[%c0_2, %c0_3, %c0_4] : memref<1x512x128xf32, #tpu.memory_space<vmem>>, vector<1x512x128xf32>
    %3 = vector.shape_cast %2 : vector<1x512x128xf32> to vector<512x128xf32>
    %cst = arith.constant dense<0.000000e+00> : vector<32x128xf32>
    %4 = tpu.matmul %1, %3, %cst {dimension_numbers = #tpu.dot_dimension_numbers<[1], [0], [0], [1], [0, 0, 1, 1], [], []>} : vector<32x512xf32>, vector<512x128xf32>, vector<32x128xf32> -> vector<32x128xf32>
    %c0_5 = arith.constant 0 : index
    %c0_6 = arith.constant 0 : index
    %c0_7 = arith.constant 0 : index
    %5 = vector.load %arg3[%c0_5, %c0_6, %c0_7] : memref<1x1x128xf32, #tpu.memory_space<vmem>>, vector<1x1x128xf32>
    %6 = vector.shape_cast %5 : vector<1x1x128xf32> to vector<1x128xf32>
    %7 = vector.broadcast %6 : vector<1x128xf32> to vector<32x128xf32>
    %8 = arith.addf %4, %7 : vector<32x128xf32>
    %cst_8 = arith.constant 0.000000e+00 : f32
    %9 = vector.broadcast %cst_8 : f32 to vector<32x128xf32>
    %10 = arith.cmpf ogt, %8, %9 : vector<32x128xf32>
    %cst_9 = arith.constant 0.000000e+00 : f32
    %11 = vector.broadcast %cst_9 : f32 to vector<32x128xf32>
    %12 = arith.minimumf %8, %11 : vector<32x128xf32>
    %13 = math.exp %12 : vector<32x128xf32>
    %cst_10 = arith.constant 1.000000e+00 : f32
    %14 = vector.broadcast %cst_10 : f32 to vector<32x128xf32>
    %15 = arith.subf %13, %14 : vector<32x128xf32>
    %16 = arith.select %10, %8, %15 : vector<32x128xi1>, vector<32x128xf32>
    %c0_11 = arith.constant 0 : index
    %c0_12 = arith.constant 0 : index
    %c0_13 = arith.constant 0 : index
    %17 = vector.load %arg4[%c0_11, %c0_12, %c0_13] : memref<1x32x128xf32, #tpu.memory_space<vmem>>, vector<1x32x128xf32>
    %18 = vector.shape_cast %17 : vector<1x32x128xf32> to vector<32x128xf32>
    %19 = vector.shape_cast %16 : vector<32x128xf32> to vector<1x32x128xf32>
    tpu.vector_store %arg4[%c0_11, %c0_12, %c0_13], %19 {strides = array<i32>} : memref<1x32x128xf32, #tpu.memory_space<vmem>>, vector<1x32x128xf32>,
    return
  }
  func.func @transform_0(%arg0: i32) -> (i32, i32, i32) {
    %c0_i32 = arith.constant 0 : i32
    %c0_i32_0 = arith.constant 0 : i32
    %c0_i32_1 = arith.constant 0 : i32
    return %arg0, %c0_i32, %c0_i32_0 : i32, i32, i32
  }
  func.func @transform_1(%arg0: i32) -> (i32, i32, i32) {
    %c0_i32 = arith.constant 0 : i32
    %c0_i32_0 = arith.constant 0 : i32
    %c0_i32_1 = arith.constant 0 : i32
    return %arg0, %c0_i32, %c0_i32_0 : i32, i32, i32
  }
  func.func @transform_2(%arg0: i32) -> (i32, i32, i32) {
    %c0_i32 = arith.constant 0 : i32
    %c0_i32_0 = arith.constant 0 : i32
    %c0_i32_1 = arith.constant 0 : i32
    return %arg0, %c0_i32, %c0_i32_0 : i32, i32, i32
  }
  func.func @transform_3(%arg0: i32) -> (i32, i32, i32) {
    %c0_i32 = arith.constant 0 : i32
    %c0_i32_0 = arith.constant 0 : i32
    %c0_i32_1 = arith.constant 0 : i32
    return %arg0, %c0_i32, %c0_i32_0 : i32, i32, i32
  }
}

module attributes {stable_mosaic.version = 11 : i64} {
  func.func @_headed_matmul_kernel(%arg0: i32, %arg1: memref<1x8x384xf32, #tpu.memory_space<vmem>>, %arg2: memref<1x384x128xf32, #tpu.memory_space<vmem>>, %arg3: memref<1x1x128xf32, #tpu.memory_space<vmem>>, %arg4: memref<1x8x128xf32, #tpu.memory_space<vmem>>) attributes {dimension_semantics = [#tpu.dimension_semantics<parallel>], iteration_bounds = array<i64: 2>, scalar_prefetch = 0 : i64, scratch_operands = 0 : i64, tpu.core_type = #tpu.core_type<tc>, window_params = [{transform_indices = @transform_0, window_bounds = array<i64: 1, 8, 384>}, {transform_indices = @transform_1, window_bounds = array<i64: 1, 384, 128>}, {transform_indices = @transform_2, window_bounds = array<i64: 1, 1, 128>}, {transform_indices = @transform_3, window_bounds = array<i64: 1, 8, 128>}]} {
    %c0 = arith.constant 0 : index
    %c0_0 = arith.constant 0 : index
    %c0_1 = arith.constant 0 : index
    %0 = vector.load %arg1[%c0, %c0_0, %c0_1] : memref<1x8x384xf32, #tpu.memory_space<vmem>>, vector<1x8x384xf32>
    %1 = vector.shape_cast %0 : vector<1x8x384xf32> to vector<8x384xf32>
    %c0_2 = arith.constant 0 : index
    %c0_3 = arith.constant 0 : index
    %c0_4 = arith.constant 0 : index
    %2 = vector.load %arg2[%c0_2, %c0_3, %c0_4] : memref<1x384x128xf32, #tpu.memory_space<vmem>>, vector<1x384x128xf32>
    %3 = vector.shape_cast %2 : vector<1x384x128xf32> to vector<384x128xf32>
    %cst = arith.constant dense<0.000000e+00> : vector<8x128xf32>
    %4 = tpu.matmul %1, %3, %cst {dimension_numbers = #tpu.dot_dimension_numbers<[1], [0], [0], [1], [0, 0, 1, 1], [], []>} : vector<8x384xf32>, vector<384x128xf32>, vector<8x128xf32> -> vector<8x128xf32>
    %c0_5 = arith.constant 0 : index
    %c0_6 = arith.constant 0 : index
    %c0_7 = arith.constant 0 : index
    %5 = vector.load %arg3[%c0_5, %c0_6, %c0_7] : memref<1x1x128xf32, #tpu.memory_space<vmem>>, vector<1x1x128xf32>
    %6 = vector.shape_cast %5 : vector<1x1x128xf32> to vector<1x128xf32>
    %7 = vector.broadcast %6 : vector<1x128xf32> to vector<8x128xf32>
    %8 = arith.addf %4, %7 : vector<8x128xf32>
    %cst_8 = arith.constant 0.000000e+00 : f32
    %9 = vector.broadcast %cst_8 : f32 to vector<8x128xf32>
    %10 = arith.cmpf ogt, %8, %9 : vector<8x128xf32>
    %cst_9 = arith.constant 0.000000e+00 : f32
    %11 = vector.broadcast %cst_9 : f32 to vector<8x128xf32>
    %12 = arith.minimumf %8, %11 : vector<8x128xf32>
    %13 = math.exp %12 : vector<8x128xf32>
    %cst_10 = arith.constant 1.000000e+00 : f32
    %14 = vector.broadcast %cst_10 : f32 to vector<8x128xf32>
    %15 = arith.subf %13, %14 : vector<8x128xf32>
    %16 = arith.select %10, %8, %15 : vector<8x128xi1>, vector<8x128xf32>
    %c0_11 = arith.constant 0 : index
    %c0_12 = arith.constant 0 : index
    %c0_13 = arith.constant 0 : index
    %17 = vector.load %arg4[%c0_11, %c0_12, %c0_13] : memref<1x8x128xf32, #tpu.memory_space<vmem>>, vector<1x8x128xf32>
    %18 = vector.shape_cast %17 : vector<1x8x128xf32> to vector<8x128xf32>
    %19 = vector.shape_cast %16 : vector<8x128xf32> to vector<1x8x128xf32>
    tpu.vector_store %arg4[%c0_11, %c0_12, %c0_13], %19 {strides = array<i32>} : memref<1x8x128xf32, #tpu.memory_space<vmem>>, vector<1x8x128xf32>,
    return
  }
  func.func @transform_0(%arg0: i32) -> (i32, i32, i32) {
    %c0_i32 = arith.constant 0 : i32
    %c0_i32_0 = arith.constant 0 : i32
    %c0_i32_1 = arith.constant 0 : i32
    return %arg0, %c0_i32, %c0_i32_0 : i32, i32, i32
  }
  func.func @transform_1(%arg0: i32) -> (i32, i32, i32) {
    %c0_i32 = arith.constant 0 : i32
    %c0_i32_0 = arith.constant 0 : i32
    %c0_i32_1 = arith.constant 0 : i32
    return %arg0, %c0_i32, %c0_i32_0 : i32, i32, i32
  }
  func.func @transform_2(%arg0: i32) -> (i32, i32, i32) {
    %c0_i32 = arith.constant 0 : i32
    %c0_i32_0 = arith.constant 0 : i32
    %c0_i32_1 = arith.constant 0 : i32
    return %arg0, %c0_i32, %c0_i32_0 : i32, i32, i32
  }
  func.func @transform_3(%arg0: i32) -> (i32, i32, i32) {
    %c0_i32 = arith.constant 0 : i32
    %c0_i32_0 = arith.constant 0 : i32
    %c0_i32_1 = arith.constant 0 : i32
    return %arg0, %c0_i32, %c0_i32_0 : i32, i32, i32
  }
}

module attributes {stable_mosaic.version = 11 : i64} {
  func.func @_headed_mlp_kernel(%arg0: i32, %arg1: memref<1x8x640xf32, #tpu.memory_space<vmem>>, %arg2: memref<1x640x128xf32, #tpu.memory_space<vmem>>, %arg3: memref<1x1x128xf32, #tpu.memory_space<vmem>>, %arg4: memref<1x128x256xf32, #tpu.memory_space<vmem>>, %arg5: memref<1x1x256xf32, #tpu.memory_space<vmem>>, %arg6: memref<1x256x256xf32, #tpu.memory_space<vmem>>, %arg7: memref<1x1x256xf32, #tpu.memory_space<vmem>>, %arg8: memref<1x256x128xf32, #tpu.memory_space<vmem>>, %arg9: memref<1x1x128xf32, #tpu.memory_space<vmem>>, %arg10: memref<1x8x128xf32, #tpu.memory_space<vmem>>) attributes {dimension_semantics = [#tpu.dimension_semantics<parallel>], iteration_bounds = array<i64: 2>, scalar_prefetch = 0 : i64, scratch_operands = 0 : i64, tpu.core_type = #tpu.core_type<tc>, window_params = [{transform_indices = @transform_0, window_bounds = array<i64: 1, 8, 640>}, {transform_indices = @transform_1, window_bounds = array<i64: 1, 640, 128>}, {transform_indices = @transform_2, window_bounds = array<i64: 1, 1, 128>}, {transform_indices = @transform_3, window_bounds = array<i64: 1, 128, 256>}, {transform_indices = @transform_4, window_bounds = array<i64: 1, 1, 256>}, {transform_indices = @transform_5, window_bounds = array<i64: 1, 256, 256>}, {transform_indices = @transform_6, window_bounds = array<i64: 1, 1, 256>}, {transform_indices = @transform_7, window_bounds = array<i64: 1, 256, 128>}, {transform_indices = @transform_8, window_bounds = array<i64: 1, 1, 128>}, {transform_indices = @transform_9, window_bounds = array<i64: 1, 8, 128>}]} {
    %c0 = arith.constant 0 : index
    %c0_0 = arith.constant 0 : index
    %c0_1 = arith.constant 0 : index
    %0 = vector.load %arg1[%c0, %c0_0, %c0_1] : memref<1x8x640xf32, #tpu.memory_space<vmem>>, vector<1x8x640xf32>
    %1 = vector.shape_cast %0 : vector<1x8x640xf32> to vector<8x640xf32>
    %c0_2 = arith.constant 0 : index
    %c0_3 = arith.constant 0 : index
    %c0_4 = arith.constant 0 : index
    %2 = vector.load %arg2[%c0_2, %c0_3, %c0_4] : memref<1x640x128xf32, #tpu.memory_space<vmem>>, vector<1x640x128xf32>
    %3 = vector.shape_cast %2 : vector<1x640x128xf32> to vector<640x128xf32>
    %cst = arith.constant dense<0.000000e+00> : vector<8x128xf32>
    %4 = tpu.matmul %1, %3, %cst {dimension_numbers = #tpu.dot_dimension_numbers<[1], [0], [0], [1], [0, 0, 1, 1], [], []>} : vector<8x640xf32>, vector<640x128xf32>, vector<8x128xf32> -> vector<8x128xf32>
    %c0_5 = arith.constant 0 : index
    %c0_6 = arith.constant 0 : index
    %c0_7 = arith.constant 0 : index
    %5 = vector.load %arg3[%c0_5, %c0_6, %c0_7] : memref<1x1x128xf32, #tpu.memory_space<vmem>>, vector<1x1x128xf32>
    %6 = vector.shape_cast %5 : vector<1x1x128xf32> to vector<1x128xf32>
    %7 = vector.broadcast %6 : vector<1x128xf32> to vector<8x128xf32>
    %8 = arith.addf %4, %7 : vector<8x128xf32>
    %cst_8 = arith.constant 0.000000e+00 : f32
    %9 = vector.broadcast %cst_8 : f32 to vector<8x128xf32>
    %10 = arith.cmpf ogt, %8, %9 : vector<8x128xf32>
    %cst_9 = arith.constant 0.000000e+00 : f32
    %11 = vector.broadcast %cst_9 : f32 to vector<8x128xf32>
    %12 = arith.minimumf %8, %11 : vector<8x128xf32>
    %13 = math.exp %12 : vector<8x128xf32>
    %cst_10 = arith.constant 1.000000e+00 : f32
    %14 = vector.broadcast %cst_10 : f32 to vector<8x128xf32>
    %15 = arith.subf %13, %14 : vector<8x128xf32>
    %16 = arith.select %10, %8, %15 : vector<8x128xi1>, vector<8x128xf32>
    %c0_11 = arith.constant 0 : index
    %c0_12 = arith.constant 0 : index
    %c0_13 = arith.constant 0 : index
    %17 = vector.load %arg4[%c0_11, %c0_12, %c0_13] : memref<1x128x256xf32, #tpu.memory_space<vmem>>, vector<1x128x256xf32>
    %18 = vector.shape_cast %17 : vector<1x128x256xf32> to vector<128x256xf32>
    %cst_14 = arith.constant dense<0.000000e+00> : vector<8x256xf32>
    %19 = tpu.matmul %16, %18, %cst_14 {dimension_numbers = #tpu.dot_dimension_numbers<[1], [0], [0], [1], [0, 0, 1, 1], [], []>} : vector<8x128xf32>, vector<128x256xf32>, vector<8x256xf32> -> vector<8x256xf32>
    %c0_15 = arith.constant 0 : index
    %c0_16 = arith.constant 0 : index
    %c0_17 = arith.constant 0 : index
    %20 = vector.load %arg5[%c0_15, %c0_16, %c0_17] : memref<1x1x256xf32, #tpu.memory_space<vmem>>, vector<1x1x256xf32>
    %21 = vector.shape_cast %20 : vector<1x1x256xf32> to vector<1x256xf32>
    %22 = vector.broadcast %21 : vector<1x256xf32> to vector<8x256xf32>
    %23 = arith.addf %19, %22 : vector<8x256xf32>
    %cst_18 = arith.constant 0.000000e+00 : f32
    %24 = vector.broadcast %cst_18 : f32 to vector<8x256xf32>
    %25 = arith.cmpf ogt, %23, %24 : vector<8x256xf32>
    %cst_19 = arith.constant 0.000000e+00 : f32
    %26 = vector.broadcast %cst_19 : f32 to vector<8x256xf32>
    %27 = arith.minimumf %23, %26 : vector<8x256xf32>
    %28 = math.exp %27 : vector<8x256xf32>
    %cst_20 = arith.constant 1.000000e+00 : f32
    %29 = vector.broadcast %cst_20 : f32 to vector<8x256xf32>
    %30 = arith.subf %28, %29 : vector<8x256xf32>
    %31 = arith.select %25, %23, %30 : vector<8x256xi1>, vector<8x256xf32>
    %c0_21 = arith.constant 0 : index
    %c0_22 = arith.constant 0 : index
    %c0_23 = arith.constant 0 : index
    %32 = vector.load %arg6[%c0_21, %c0_22, %c0_23] : memref<1x256x256xf32, #tpu.memory_space<vmem>>, vector<1x256x256xf32>
    %33 = vector.shape_cast %32 : vector<1x256x256xf32> to vector<256x256xf32>
    %cst_24 = arith.constant dense<0.000000e+00> : vector<8x256xf32>
    %34 = tpu.matmul %31, %33, %cst_24 {dimension_numbers = #tpu.dot_dimension_numbers<[1], [0], [0], [1], [0, 0, 1, 1], [], []>} : vector<8x256xf32>, vector<256x256xf32>, vector<8x256xf32> -> vector<8x256xf32>
    %c0_25 = arith.constant 0 : index
    %c0_26 = arith.constant 0 : index
    %c0_27 = arith.constant 0 : index
    %35 = vector.load %arg7[%c0_25, %c0_26, %c0_27] : memref<1x1x256xf32, #tpu.memory_space<vmem>>, vector<1x1x256xf32>
    %36 = vector.shape_cast %35 : vector<1x1x256xf32> to vector<1x256xf32>
    %37 = vector.broadcast %36 : vector<1x256xf32> to vector<8x256xf32>
    %38 = arith.addf %34, %37 : vector<8x256xf32>
    %cst_28 = arith.constant 0.000000e+00 : f32
    %39 = vector.broadcast %cst_28 : f32 to vector<8x256xf32>
    %40 = arith.cmpf ogt, %38, %39 : vector<8x256xf32>
    %cst_29 = arith.constant 0.000000e+00 : f32
    %41 = vector.broadcast %cst_29 : f32 to vector<8x256xf32>
    %42 = arith.minimumf %38, %41 : vector<8x256xf32>
    %43 = math.exp %42 : vector<8x256xf32>
    %cst_30 = arith.constant 1.000000e+00 : f32
    %44 = vector.broadcast %cst_30 : f32 to vector<8x256xf32>
    %45 = arith.subf %43, %44 : vector<8x256xf32>
    %46 = arith.select %40, %38, %45 : vector<8x256xi1>, vector<8x256xf32>
    %c0_31 = arith.constant 0 : index
    %c0_32 = arith.constant 0 : index
    %c0_33 = arith.constant 0 : index
    %47 = vector.load %arg8[%c0_31, %c0_32, %c0_33] : memref<1x256x128xf32, #tpu.memory_space<vmem>>, vector<1x256x128xf32>
    %48 = vector.shape_cast %47 : vector<1x256x128xf32> to vector<256x128xf32>
    %cst_34 = arith.constant dense<0.000000e+00> : vector<8x128xf32>
    %49 = tpu.matmul %46, %48, %cst_34 {dimension_numbers = #tpu.dot_dimension_numbers<[1], [0], [0], [1], [0, 0, 1, 1], [], []>} : vector<8x256xf32>, vector<256x128xf32>, vector<8x128xf32> -> vector<8x128xf32>
    %c0_35 = arith.constant 0 : index
    %c0_36 = arith.constant 0 : index
    %c0_37 = arith.constant 0 : index
    %50 = vector.load %arg9[%c0_35, %c0_36, %c0_37] : memref<1x1x128xf32, #tpu.memory_space<vmem>>, vector<1x1x128xf32>
    %51 = vector.shape_cast %50 : vector<1x1x128xf32> to vector<1x128xf32>
    %52 = vector.broadcast %51 : vector<1x128xf32> to vector<8x128xf32>
    %53 = arith.addf %49, %52 : vector<8x128xf32>
    %c0_38 = arith.constant 0 : index
    %c0_39 = arith.constant 0 : index
    %c0_40 = arith.constant 0 : index
    %54 = vector.load %arg10[%c0_38, %c0_39, %c0_40] : memref<1x8x128xf32, #tpu.memory_space<vmem>>, vector<1x8x128xf32>
    %55 = vector.shape_cast %54 : vector<1x8x128xf32> to vector<8x128xf32>
    %56 = vector.shape_cast %53 : vector<8x128xf32> to vector<1x8x128xf32>
    tpu.vector_store %arg10[%c0_38, %c0_39, %c0_40], %56 {strides = array<i32>} : memref<1x8x128xf32, #tpu.memory_space<vmem>>, vector<1x8x128xf32>,
    return
  }
  func.func @transform_0(%arg0: i32) -> (i32, i32, i32) {
    %c0_i32 = arith.constant 0 : i32
    %c0_i32_0 = arith.constant 0 : i32
    %c0_i32_1 = arith.constant 0 : i32
    return %arg0, %c0_i32, %c0_i32_0 : i32, i32, i32
  }
  func.func @transform_1(%arg0: i32) -> (i32, i32, i32) {
    %c0_i32 = arith.constant 0 : i32
    %c0_i32_0 = arith.constant 0 : i32
    %c0_i32_1 = arith.constant 0 : i32
    return %arg0, %c0_i32, %c0_i32_0 : i32, i32, i32
  }
  func.func @transform_2(%arg0: i32) -> (i32, i32, i32) {
    %c0_i32 = arith.constant 0 : i32
    %c0_i32_0 = arith.constant 0 : i32
    %c0_i32_1 = arith.constant 0 : i32
    return %arg0, %c0_i32, %c0_i32_0 : i32, i32, i32
  }
  func.func @transform_3(%arg0: i32) -> (i32, i32, i32) {
    %c0_i32 = arith.constant 0 : i32
    %c0_i32_0 = arith.constant 0 : i32
    %c0_i32_1 = arith.constant 0 : i32
    return %arg0, %c0_i32, %c0_i32_0 : i32, i32, i32
  }
  func.func @transform_4(%arg0: i32) -> (i32, i32, i32) {
    %c0_i32 = arith.constant 0 : i32
    %c0_i32_0 = arith.constant 0 : i32
    %c0_i32_1 = arith.constant 0 : i32
    return %arg0, %c0_i32, %c0_i32_0 : i32, i32, i32
  }
  func.func @transform_5(%arg0: i32) -> (i32, i32, i32) {
    %c0_i32 = arith.constant 0 : i32
    %c0_i32_0 = arith.constant 0 : i32
    %c0_i32_1 = arith.constant 0 : i32
    return %arg0, %c0_i32, %c0_i32_0 : i32, i32, i32
  }
  func.func @transform_6(%arg0: i32) -> (i32, i32, i32) {
    %c0_i32 = arith.constant 0 : i32
    %c0_i32_0 = arith.constant 0 : i32
    %c0_i32_1 = arith.constant 0 : i32
    return %arg0, %c0_i32, %c0_i32_0 : i32, i32, i32
  }
  func.func @transform_7(%arg0: i32) -> (i32, i32, i32) {
    %c0_i32 = arith.constant 0 : i32
    %c0_i32_0 = arith.constant 0 : i32
    %c0_i32_1 = arith.constant 0 : i32
    return %arg0, %c0_i32, %c0_i32_0 : i32, i32, i32
  }
  func.func @transform_8(%arg0: i32) -> (i32, i32, i32) {
    %c0_i32 = arith.constant 0 : i32
    %c0_i32_0 = arith.constant 0 : i32
    %c0_i32_1 = arith.constant 0 : i32
    return %arg0, %c0_i32, %c0_i32_0 : i32, i32, i32
  }
  func.func @transform_9(%arg0: i32) -> (i32, i32, i32) {
    %c0_i32 = arith.constant 0 : i32
    %c0_i32_0 = arith.constant 0 : i32
    %c0_i32_1 = arith.constant 0 : i32
    return %arg0, %c0_i32, %c0_i32_0 : i32, i32, i32
  }
}

</mosaic_0001>

<llo_original>
// kernel: reverse
$region0: #{reverse}
  #allocation0 [shape = 's32[1]{0}', space=sflag, size = 0x4, scoped, tag = 'scoped memory for reverse']
  %s0 = inlined_call_operand.vmem [shape: bf16[3,3,64,576], index: 0, kind: input, shape index: {}]
  %s1 = inlined_call_operand.vmem [shape: bf16[3,3,64,576], index: 1, kind: output, shape index: {}]
  %s2 = scalar_lea.vmem %s0, 1280
  %v3 = vld [vmem:[%s2] sm:$0xf]
  %v4 = vunpack.c.l.bf16 %v3
  %v5 = vunpack.c.h.bf16 %v3
  %s6 = scalar_lea.vmem %s0, 800
  %v7 = vld [vmem:[%s6] sm:$0xf]
  %v8 = vunpack.c.l.bf16 %v7
  %v9 = vunpack.c.h.bf16 %v7
  %s10 = scalar_lea.vmem %s1, 480
  %s11 = scalar_lea.vmem %s0, 320
  %v12 = vld [vmem:[%s11] sm:$0xf]
  %v13 = vunpack.c.l.bf16 %v12
  %v14 = vunpack.c.h.bf16 %v12
  %s15 = scalar_lea.vmem %s1, 960
  %s16 = scalar_lea.vmem %s0, 1120
  %v17 = vld [vmem:[%s16] sm:$0xf]
  %v18 = vunpack.c.l.bf16 %v17
  %v19 = vunpack.c.h.bf16 %v17
  %s20 = scalar_lea.vmem %s1, 160
  %s21 = scalar_lea.vmem %s0, 640
  %v22 = vld [vmem:[%s21] sm:$0xf]
  %v23 = vunpack.c.l.bf16 %v22
  %v24 = vunpack.c.h.bf16 %v22
  %s25 = scalar_lea.vmem %s1, 640
  %s26 = scalar_lea.vmem %s0, 160
  %v27 = vld [vmem:[%s26] sm:$0xf]
  %v28 = vunpack.c.l.bf16 %v27
  %v29 = vunpack.c.h.bf16 %v27
  %s30 = scalar_lea.vmem %s1, 1120
  %s31 = scalar_lea.vmem %s0, 960
  %v32 = vld [vmem:[%s31] sm:$0xf]
  %v33 = vunpack.c.l.bf16 %v32
  %v34 = vunpack.c.h.bf16 %v32
  %s35 = scalar_lea.vmem %s1, 320
  %s36 = scalar_lea.vmem %s0, 480
  %v37 = vld [vmem:[%s36] sm:$0xf]
  %v38 = vunpack.c.l.bf16 %v37
  %v39 = vunpack.c.h.bf16 %v37
  %s40 = scalar_lea.vmem %s1, 800
  %v41 = vld [vmem:[%s0] sm:$0xf]
  %v42 = vunpack.c.l.bf16 %v41
  %v43 = vunpack.c.h.bf16 %v41
  %s44 = scalar_lea.vmem %s1, 1280
  %s45 = scalar_lea.vmem %s0, 1300
  %v46 = vld [vmem:[%s45] sm:$0xf]
  %v47 = vunpack.c.l.bf16 %v46
  %v48 = vunpack.c.h.bf16 %v46
  %s49 = scalar_lea.vmem %s1, 20
  %s50 = scalar_lea.vmem %s0, 820
  %v51 = vld [vmem:[%s50] sm:$0xf]
  %v52 = vunpack.c.l.bf16 %v51
  %v53 = vunpack.c.h.bf16 %v51
  %s54 = scalar_lea.vmem %s1, 500
  %s55 = scalar_lea.vmem %s0, 340
  %v56 = vld [vmem:[%s55] sm:$0xf]
  %v57 = vunpack.c.l.bf16 %v56
  %v58 = vunpack.c.h.bf16 %v56
  %s59 = scalar_lea.vmem %s1, 980
  %s60 = scalar_lea.vmem %s0, 1140
  %v61 = vld [vmem:[%s60] sm:$0xf]
  %v62 = vunpack.c.l.bf16 %v61
  %v63 = vunpack.c.h.bf16 %v61
  %s64 = scalar_lea.vmem %s1, 180
  %s65 = scalar_lea.vmem %s0, 660
  %v66 = vld [vmem:[%s65] sm:$0xf]
  %v67 = vunpack.c.l.bf16 %v66
  %v68 = vunpack.c.h.bf16 %v66
  %s69 = scalar_lea.vmem %s1, 660
  %s70 = scalar_lea.vmem %s0, 180
  %v71 = vld [vmem:[%s70] sm:$0xf]
  %v72 = vunpack.c.l.bf16 %v71
  %v73 = vunpack.c.h.bf16 %v71
  %s74 = scalar_lea.vmem %s1, 1140
  %s75 = scalar_lea.vmem %s0, 980
  %v76 = vld [vmem:[%s75] sm:$0xf]
  %v77 = vunpack.c.l.bf16 %v76
  %v78 = vunpack.c.h.bf16 %v76
  %s79 = scalar_lea.vmem %s1, 340
  %s80 = scalar_lea.vmem %s0, 500
  %v81 = vld [vmem:[%s80] sm:$0xf]
  %v82 = vunpack.c.l.bf16 %v81
  %v83 = vunpack.c.h.bf16 %v81
  %s84 = scalar_lea.vmem %s1, 820
  %s85 = scalar_lea.vmem %s0, 20
  %v86 = vld [vmem:[%s85] sm:$0xf]
  %v87 = vunpack.c.l.bf16 %v86
  %v88 = vunpack.c.h.bf16 %v86
  %s89 = scalar_lea.vmem %s1, 1300
  %s90 = scalar_lea.vmem %s0, 1320
  %v91 = vld [vmem:[%s90] sm:$0xf]
  %v92 = vunpack.c.l.bf16 %v91
  %v93 = vunpack.c.h.bf16 %v91
  %s94 = scalar_lea.vmem %s1, 40
  %s95 = scalar_lea.vmem %s0, 840
  %v96 = vld [vmem:[%s95] sm:$0xf]
  %v97 = vunpack.c.l.bf16 %v96
  %v98 = vunpack.c.h.bf16 %v96
  %s99 = scalar_lea.vmem %s1, 520
  %s100 = scalar_lea.vmem %s0, 360
  %v101 = vld [vmem:[%s100] sm:$0xf]
  %v102 = vunpack.c.l.bf16 %v101
  %v103 = vunpack.c.h.bf16 %v101
  %s104 = scalar_lea.vmem %s1, 1000
  %s105 = scalar_lea.vmem %s0, 1160
  %v106 = vld [vmem:[%s105] sm:$0xf]
  %v107 = vunpack.c.l.bf16 %v106
  %v108 = vunpack.c.h.bf16 %v106
  %s109 = scalar_lea.vmem %s1, 200
  %s110 = scalar_lea.vmem %s0, 680
  %v111 = vld [vmem:[%s110] sm:$0xf]
  %v112 = vunpack.c.l.bf16 %v111
  %v113 = vunpack.c.h.bf16 %v111
  %s114 = scalar_lea.vmem %s1, 680
  %s115 = scalar_lea.vmem %s0, 200
  %v116 = vld [vmem:[%s115] sm:$0xf]
  %v117 = vunpack.c.l.bf16 %v116
  %v118 = vunpack.c.h.bf16 %v116
  %s119 = scalar_lea.vmem %s1, 1160
  %s120 = scalar_lea.vmem %s0, 1000
  %v121 = vld [vmem:[%s120] sm:$0xf]
  %v122 = vunpack.c.l.bf16 %v121
  %v123 = vunpack.c.h.bf16 %v121
  %s124 = scalar_lea.vmem %s1, 360
  %s125 = scalar_lea.vmem %s0, 520
  %v126 = vld [vmem:[%s125] sm:$0xf]
  %v127 = vunpack.c.l.bf16 %v126
  %v128 = vunpack.c.h.bf16 %v126
  %s129 = scalar_lea.vmem %s1, 840
  %s130 = scalar_lea.vmem %s0, 40
  %v131 = vld [vmem:[%s130] sm:$0xf]
  %v132 = vunpack.c.l.bf16 %v131
  %v133 = vunpack.c.h.bf16 %v131
  %s134 = scalar_lea.vmem %s1, 1320
  %s135 = scalar_lea.vmem %s0, 1340
  %v136 = vld [vmem:[%s135] sm:$0xf]
  %v137 = vunpack.c.l.bf16 %v136
  %v138 = vunpack.c.h.bf16 %v136
  %s139 = scalar_lea.vmem %s1, 60
  %s140 = scalar_lea.vmem %s0, 860
  %v141 = vld [vmem:[%s140] sm:$0xf]
  %v142 = vunpack.c.l.bf16 %v141
  %v143 = vunpack.c.h.bf16 %v141
  %s144 = scalar_lea.vmem %s1, 540
  %s145 = scalar_lea.vmem %s0, 380
  %v146 = vld [vmem:[%s145] sm:$0xf]
  %v147 = vunpack.c.l.bf16 %v146
  %v148 = vunpack.c.h.bf16 %v146
  %s149 = scalar_lea.vmem %s1, 1020
  %s150 = scalar_lea.vmem %s0, 1180
  %v151 = vld [vmem:[%s150] sm:$0xf]
  %v152 = vunpack.c.l.bf16 %v151
  %v153 = vunpack.c.h.bf16 %v151
  %s154 = scalar_lea.vmem %s1, 220
  %s155 = scalar_lea.vmem %s0, 700
  %v156 = vld [vmem:[%s155] sm:$0xf]
  %v157 = vunpack.c.l.bf16 %v156
  %v158 = vunpack.c.h.bf16 %v156
  %s159 = scalar_lea.vmem %s1, 700
  %s160 = scalar_lea.vmem %s0, 220
  %v161 = vld [vmem:[%s160] sm:$0xf]
  %v162 = vunpack.c.l.bf16 %v161
  %v163 = vunpack.c.h.bf16 %v161
  %s164 = scalar_lea.vmem %s1, 1180
  %s165 = scalar_lea.vmem %s0, 1020
  %v166 = vld [vmem:[%s165] sm:$0xf]
  %v167 = vunpack.c.l.bf16 %v166
  %v168 = vunpack.c.h.bf16 %v166
  %s169 = scalar_lea.vmem %s1, 380
  %s170 = scalar_lea.vmem %s0, 540
  %v171 = vld [vmem:[%s170] sm:$0xf]
  %v172 = vunpack.c.l.bf16 %v171
  %v173 = vunpack.c.h.bf16 %v171
  %s174 = scalar_lea.vmem %s1, 860
  %s175 = scalar_lea.vmem %s0, 60
  %v176 = vld [vmem:[%s175] sm:$0xf]
  %v177 = vunpack.c.l.bf16 %v176
  %v178 = vunpack.c.h.bf16 %v176
  %s179 = scalar_lea.vmem %s1, 1340
  %s180 = scalar_lea.vmem %s0, 1360
  %v181 = vld [vmem:[%s180] sm:$0xf]
  %v182 = vunpack.c.l.bf16 %v181
  %v183 = vunpack.c.h.bf16 %v181
  %s184 = scalar_lea.vmem %s1, 80
  %s185 = scalar_lea.vmem %s0, 880
  %v186 = vld [vmem:[%s185] sm:$0xf]
  %v187 = vunpack.c.l.bf16 %v186
  %v188 = vunpack.c.h.bf16 %v186
  %s189 = scalar_lea.vmem %s1, 560
  %s190 = scalar_lea.vmem %s0, 400
  %v191 = vld [vmem:[%s190] sm:$0xf]
  %v192 = vunpack.c.l.bf16 %v191
  %v193 = vunpack.c.h.bf16 %v191
  %s194 = scalar_lea.vmem %s1, 1040
  %s195 = scalar_lea.vmem %s0, 1200
  %v196 = vld [vmem:[%s195] sm:$0xf]
  %v197 = vunpack.c.l.bf16 %v196
  %v198 = vunpack.c.h.bf16 %v196
  %s199 = scalar_lea.vmem %s1, 240
  %s200 = scalar_lea.vmem %s0, 720
  %v201 = vld [vmem:[%s200] sm:$0xf]
  %v202 = vunpack.c.l.bf16 %v201
  %v203 = vunpack.c.h.bf16 %v201
  %s204 = scalar_lea.vmem %s1, 720
  %s205 = scalar_lea.vmem %s0, 240
  %v206 = vld [vmem:[%s205] sm:$0xf]
  %v207 = vunpack.c.l.bf16 %v206
  %v208 = vunpack.c.h.bf16 %v206
  %s209 = scalar_lea.vmem %s1, 1200
  %s210 = scalar_lea.vmem %s0, 1040
  %v211 = vld [vmem:[%s210] sm:$0xf]
  %v212 = vunpack.c.l.bf16 %v211
  %v213 = vunpack.c.h.bf16 %v211
  %s214 = scalar_lea.vmem %s1, 400
  %s215 = scalar_lea.vmem %s0, 560
  %v216 = vld [vmem:[%s215] sm:$0xf]
  %v217 = vunpack.c.l.bf16 %v216
  %v218 = vunpack.c.h.bf16 %v216
  %s219 = scalar_lea.vmem %s1, 880
  %s220 = scalar_lea.vmem %s0, 80
  %v221 = vld [vmem:[%s220] sm:$0xf]
  %v222 = vunpack.c.l.bf16 %v221
  %v223 = vunpack.c.h.bf16 %v221
  %s224 = scalar_lea.vmem %s1, 1360
  %s225 = scalar_lea.vmem %s0, 1380
  %v226 = vld [vmem:[%s225] sm:$0xf]
  %v227 = vunpack.c.l.bf16 %v226
  %v228 = vunpack.c.h.bf16 %v226
  %s229 = scalar_lea.vmem %s1, 100
  %s230 = scalar_lea.vmem %s0, 900
  %v231 = vld [vmem:[%s230] sm:$0xf]
  %v232 = vunpack.c.l.bf16 %v231
  %v233 = vunpack.c.h.bf16 %v231
  %s234 = scalar_lea.vmem %s1, 580
  %s235 = scalar_lea.vmem %s0, 420
  %v236 = vld [vmem:[%s235] sm:$0xf]
  %v237 = vunpack.c.l.bf16 %v236
  %v238 = vunpack.c.h.bf16 %v236
  %s239 = scalar_lea.vmem %s1, 1060
  %s240 = scalar_lea.vmem %s0, 1220
  %v241 = vld [vmem:[%s240] sm:$0xf]
  %v242 = vunpack.c.l.bf16 %v241
  %v243 = vunpack.c.h.bf16 %v241
  %s244 = scalar_lea.vmem %s1, 260
  %s245 = scalar_lea.vmem %s0, 740
  %v246 = vld [vmem:[%s245] sm:$0xf]
  %v247 = vunpack.c.l.bf16 %v246
  %v248 = vunpack.c.h.bf16 %v246
  %s249 = scalar_lea.vmem %s1, 740
  %s250 = scalar_lea.vmem %s0, 260
  %v251 = vld [vmem:[%s250] sm:$0xf]
  %v252 = vunpack.c.l.bf16 %v251
  %v253 = vunpack.c.h.bf16 %v251
  %s254 = scalar_lea.vmem %s1, 1220
  %s255 = scalar_lea.vmem %s0, 1060
  %v256 = vld [vmem:[%s255] sm:$0xf]
  %v257 = vunpack.c.l.bf16 %v256
  %v258 = vunpack.c.h.bf16 %v256
  %s259 = scalar_lea.vmem %s1, 420
  %s260 = scalar_lea.vmem %s0, 580
  %v261 = vld [vmem:[%s260] sm:$0xf]
  %v262 = vunpack.c.l.bf16 %v261
  %v263 = vunpack.c.h.bf16 %v261
  %s264 = scalar_lea.vmem %s1, 900
  %s265 = scalar_lea.vmem %s0, 100
  %v266 = vld [vmem:[%s265] sm:$0xf]
  %v267 = vunpack.c.l.bf16 %v266
  %v268 = vunpack.c.h.bf16 %v266
  %s269 = scalar_lea.vmem %s1, 1380
  %s270 = scalar_lea.vmem %s0, 1400
  %v271 = vld [vmem:[%s270] sm:$0xf]
  %v272 = vunpack.c.l.bf16 %v271
  %v273 = vunpack.c.h.bf16 %v271
  %s274 = scalar_lea.vmem %s1, 120
  %s275 = scalar_lea.vmem %s0, 920
  %v276 = vld [vmem:[%s275] sm:$0xf]
  %v277 = vunpack.c.l.bf16 %v276
  %v278 = vunpack.c.h.bf16 %v276
  %s279 = scalar_lea.vmem %s1, 600
  %s280 = scalar_lea.vmem %s0, 440
  %v281 = vld [vmem:[%s280] sm:$0xf]
  %v282 = vunpack.c.l.bf16 %v281
  %v283 = vunpack.c.h.bf16 %v281
  %s284 = scalar_lea.vmem %s1, 1080
  %s285 = scalar_lea.vmem %s0, 1240
  %v286 = vld [vmem:[%s285] sm:$0xf]
  %v287 = vunpack.c.l.bf16 %v286
  %v288 = vunpack.c.h.bf16 %v286
  %s289 = scalar_lea.vmem %s1, 280
  %s290 = scalar_lea.vmem %s0, 760
  %v291 = vld [vmem:[%s290] sm:$0xf]
  %v292 = vunpack.c.l.bf16 %v291
  %v293 = vunpack.c.h.bf16 %v291
  %s294 = scalar_lea.vmem %s1, 760
  %s295 = scalar_lea.vmem %s0, 280
  %v296 = vld [vmem:[%s295] sm:$0xf]
  %v297 = vunpack.c.l.bf16 %v296
  %v298 = vunpack.c.h.bf16 %v296
  %s299 = scalar_lea.vmem %s1, 1240
  %s300 = scalar_lea.vmem %s0, 1080
  %v301 = vld [vmem:[%s300] sm:$0xf]
  %v302 = vunpack.c.l.bf16 %v301
  %v303 = vunpack.c.h.bf16 %v301
  %s304 = scalar_lea.vmem %s1, 440
  %s305 = scalar_lea.vmem %s0, 600
  %v306 = vld [vmem:[%s305] sm:$0xf]
  %v307 = vunpack.c.l.bf16 %v306
  %v308 = vunpack.c.h.bf16 %v306
  %s309 = scalar_lea.vmem %s1, 920
  %s310 = scalar_lea.vmem %s0, 120
  %v311 = vld [vmem:[%s310] sm:$0xf]
  %v312 = vunpack.c.l.bf16 %v311
  %v313 = vunpack.c.h.bf16 %v311
  %s314 = scalar_lea.vmem %s1, 1400
  %s315 = scalar_lea.vmem %s0, 1420
  %v316 = vld [vmem:[%s315] sm:$0xf]
  %v317 = vunpack.c.l.bf16 %v316
  %v318 = vunpack.c.h.bf16 %v316
  %s319 = scalar_lea.vmem %s1, 140
  %s320 = scalar_lea.vmem %s0, 940
  %v321 = vld [vmem:[%s320] sm:$0xf]
  %v322 = vunpack.c.l.bf16 %v321
  %v323 = vunpack.c.h.bf16 %v321
  %s324 = scalar_lea.vmem %s1, 620
  %s325 = scalar_lea.vmem %s0, 460
  %v326 = vld [vmem:[%s325] sm:$0xf]
  %v327 = vunpack.c.l.bf16 %v326
  %v328 = vunpack.c.h.bf16 %v326
  %s329 = scalar_lea.vmem %s1, 1100
  %s330 = scalar_lea.vmem %s0, 1260
  %v331 = vld [vmem:[%s330] sm:$0xf]
  %v332 = vunpack.c.l.bf16 %v331
  %v333 = vunpack.c.h.bf16 %v331
  %s334 = scalar_lea.vmem %s1, 300
  %s335 = scalar_lea.vmem %s0, 780
  %v336 = vld [vmem:[%s335] sm:$0xf]
  %v337 = vunpack.c.l.bf16 %v336
  %v338 = vunpack.c.h.bf16 %v336
  %s339 = scalar_lea.vmem %s1, 780
  %s340 = scalar_lea.vmem %s0, 300
  %v341 = vld [vmem:[%s340] sm:$0xf]
  %v342 = vunpack.c.l.bf16 %v341
  %v343 = vunpack.c.h.bf16 %v341
  %s344 = scalar_lea.vmem %s1, 1260
  %s345 = scalar_lea.vmem %s0, 1100
  %v346 = vld [vmem:[%s345] sm:$0xf]
  %v347 = vunpack.c.l.bf16 %v346
  %v348 = vunpack.c.h.bf16 %v346
  %s349 = scalar_lea.vmem %s1, 460
  %s350 = scalar_lea.vmem %s0, 620
  %v351 = vld [vmem:[%s350] sm:$0xf]
  %v352 = vunpack.c.l.bf16 %v351
  %v353 = vunpack.c.h.bf16 %v351
  %s354 = scalar_lea.vmem %s1, 940
  %s355 = scalar_lea.vmem %s0, 140
  %v356 = vld [vmem:[%s355] sm:$0xf]
  %v357 = vunpack.c.l.bf16 %v356
  %v358 = vunpack.c.h.bf16 %v356
  %s359 = scalar_lea.vmem %s1, 1420
  %s360 = scalar_lea.vmem %s0, 1284
  %v361 = vld [vmem:[%s360] sm:$0xf]
  %v362 = vunpack.c.l.bf16 %v361
  %v363 = vunpack.c.h.bf16 %v361
  %s364 = scalar_lea.vmem %s1, 4
  %s366 = ssub.s32 0, 4
  %s367 = scalar_lea.vmem %s364, %s366
  %v368 = vpack.c.bf16 %v362, %v4
  %369 = vst [vmem:[%s367] sm:$0xff] %v368
  %s370 = scalar_lea.vmem %s0, 804
  %v371 = vld [vmem:[%s370] sm:$0xf]
  %v372 = vunpack.c.l.bf16 %v371
  %v373 = vunpack.c.h.bf16 %v371
  %s374 = scalar_lea.vmem %s1, 484
  %s376 = ssub.s32 0, 4
  %s377 = scalar_lea.vmem %s374, %s376
  %v378 = vpack.c.bf16 %v372, %v8
  %379 = vst [vmem:[%s377] sm:$0xff] %v378
  %s380 = scalar_lea.vmem %s0, 324
  %v381 = vld [vmem:[%s380] sm:$0xf]
  %v382 = vunpack.c.l.bf16 %v381
  %v383 = vunpack.c.h.bf16 %v381
  %s384 = scalar_lea.vmem %s1, 964
  %s386 = ssub.s32 0, 4
  %s387 = scalar_lea.vmem %s384, %s386
  %v388 = vpack.c.bf16 %v382, %v13
  %389 = vst [vmem:[%s387] sm:$0xff] %v388
  %s390 = scalar_lea.vmem %s0, 1124
  %v391 = vld [vmem:[%s390] sm:$0xf]
  %v392 = vunpack.c.l.bf16 %v391
  %v393 = vunpack.c.h.bf16 %v391
  %s394 = scalar_lea.vmem %s1, 164
  %s396 = ssub.s32 0, 4
  %s397 = scalar_lea.vmem %s394, %s396
  %v398 = vpack.c.bf16 %v392, %v18
  %399 = vst [vmem:[%s397] sm:$0xff] %v398
  %s400 = scalar_lea.vmem %s0, 644
  %v401 = vld [vmem:[%s400] sm:$0xf]
  %v402 = vunpack.c.l.bf16 %v401
  %v403 = vunpack.c.h.bf16 %v401
  %s404 = scalar_lea.vmem %s1, 644
  %s406 = ssub.s32 0, 4
  %s407 = scalar_lea.vmem %s404, %s406
  %v408 = vpack.c.bf16 %v402, %v23
  %409 = vst [vmem:[%s407] sm:$0xff] %v408
  %s410 = scalar_lea.vmem %s0, 164
  %v411 = vld [vmem:[%s410] sm:$0xf]
  %v412 = vunpack.c.l.bf16 %v411
  %v413 = vunpack.c.h.bf16 %v411
  %s414 = scalar_lea.vmem %s1, 1124
  %s416 = ssub.s32 0, 4
  %s417 = scalar_lea.vmem %s414, %s416
  %v418 = vpack.c.bf16 %v412, %v28
  %419 = vst [vmem:[%s417] sm:$0xff] %v418
  %s420 = scalar_lea.vmem %s0, 964
  %v421 = vld [vmem:[%s420] sm:$0xf]
  %v422 = vunpack.c.l.bf16 %v421
  %v423 = vunpack.c.h.bf16 %v421
  %s424 = scalar_lea.vmem %s1, 324
  %s426 = ssub.s32 0, 4
  %s427 = scalar_lea.vmem %s424, %s426
  %v428 = vpack.c.bf16 %v422, %v33
  %429 = vst [vmem:[%s427] sm:$0xff] %v428
  %s430 = scalar_lea.vmem %s0, 484
  %v431 = vld [vmem:[%s430] sm:$0xf]
  %v432 = vunpack.c.l.bf16 %v431
  %v433 = vunpack.c.h.bf16 %v431
  %s434 = scalar_lea.vmem %s1, 804
  %s436 = ssub.s32 0, 4
  %s437 = scalar_lea.vmem %s434, %s436
  %v438 = vpack.c.bf16 %v432, %v38
  %439 = vst [vmem:[%s437] sm:$0xff] %v438
  %s440 = scalar_lea.vmem %s0, 4
  %v441 = vld [vmem:[%s440] sm:$0xf]
  %v442 = vunpack.c.l.bf16 %v441
  %v443 = vunpack.c.h.bf16 %v441
  %s444 = scalar_lea.vmem %s1, 1284
  %s446 = ssub.s32 0, 4
  %s447 = scalar_lea.vmem %s444, %s446
  %v448 = vpack.c.bf16 %v442, %v42
  %449 = vst [vmem:[%s447] sm:$0xff] %v448
  %s450 = scalar_lea.vmem %s0, 1304
  %v451 = vld [vmem:[%s450] sm:$0xf]
  %v452 = vunpack.c.l.bf16 %v451
  %v453 = vunpack.c.h.bf16 %v451
  %s454 = scalar_lea.vmem %s1, 24
  %s456 = ssub.s32 0, 4
  %s457 = scalar_lea.vmem %s454, %s456
  %v458 = vpack.c.bf16 %v452, %v47
  %459 = vst [vmem:[%s457] sm:$0xff] %v458
  %s460 = scalar_lea.vmem %s0, 824
  %v461 = vld [vmem:[%s460] sm:$0xf]
  %v462 = vunpack.c.l.bf16 %v461
  %v463 = vunpack.c.h.bf16 %v461
  %s464 = scalar_lea.vmem %s1, 504
  %s466 = ssub.s32 0, 4
  %s467 = scalar_lea.vmem %s464, %s466
  %v468 = vpack.c.bf16 %v462, %v52
  %469 = vst [vmem:[%s467] sm:$0xff] %v468
  %s470 = scalar_lea.vmem %s0, 344
  %v471 = vld [vmem:[%s470] sm:$0xf]
  %v472 = vunpack.c.l.bf16 %v471
  %v473 = vunpack.c.h.bf16 %v471
  %s474 = scalar_lea.vmem %s1, 984
  %s476 = ssub.s32 0, 4
  %s477 = scalar_lea.vmem %s474, %s476
  %v478 = vpack.c.bf16 %v472, %v57
  %479 = vst [vmem:[%s477] sm:$0xff] %v478
  %s480 = scalar_lea.vmem %s0, 1144
  %v481 = vld [vmem:[%s480] sm:$0xf]
  %v482 = vunpack.c.l.bf16 %v481
  %v483 = vunpack.c.h.bf16 %v481
  %s484 = scalar_lea.vmem %s1, 184
  %s486 = ssub.s32 0, 4
  %s487 = scalar_lea.vmem %s484, %s486
  %v488 = vpack.c.bf16 %v482, %v62
  %489 = vst [vmem:[%s487] sm:$0xff] %v488
  %s490 = scalar_lea.vmem %s0, 664
  %v491 = vld [vmem:[%s490] sm:$0xf]
  %v492 = vunpack.c.l.bf16 %v491
  %v493 = vunpack.c.h.bf16 %v491
  %s494 = scalar_lea.vmem %s1, 664
  %s496 = ssub.s32 0, 4
  %s497 = scalar_lea.vmem %s494, %s496
  %v498 = vpack.c.bf16 %v492, %v67
  %499 = vst [vmem:[%s497] sm:$0xff] %v498
  %s500 = scalar_lea.vmem %s0, 184
  %v501 = vld [vmem:[%s500] sm:$0xf]
  %v502 = vunpack.c.l.bf16 %v501
  %v503 = vunpack.c.h.bf16 %v501
  %s504 = scalar_lea.vmem %s1, 1144
  %s506 = ssub.s32 0, 4
  %s507 = scalar_lea.vmem %s504, %s506
  %v508 = vpack.c.bf16 %v502, %v72
  %509 = vst [vmem:[%s507] sm:$0xff] %v508
  %s510 = scalar_lea.vmem %s0, 984
  %v511 = vld [vmem:[%s510] sm:$0xf]
  %v512 = vunpack.c.l.bf16 %v511
  %v513 = vunpack.c.h.bf16 %v511
  %s514 = scalar_lea.vmem %s1, 344
  %s516 = ssub.s32 0, 4
  %s517 = scalar_lea.vmem %s514, %s516
  %v518 = vpack.c.bf16 %v512, %v77
  %519 = vst [vmem:[%s517] sm:$0xff] %v518
  %s520 = scalar_lea.vmem %s0, 504
  %v521 = vld [vmem:[%s520] sm:$0xf]
  %v522 = vunpack.c.l.bf16 %v521
  %v523 = vunpack.c.h.bf16 %v521
  %s524 = scalar_lea.vmem %s1, 824
  %s526 = ssub.s32 0, 4
  %s527 = scalar_lea.vmem %s524, %s526
  %v528 = vpack.c.bf16 %v522, %v82
  %529 = vst [vmem:[%s527] sm:$0xff] %v528
  %s530 = scalar_lea.vmem %s0, 24
  %v531 = vld [vmem:[%s530] sm:$0xf]
  %v532 = vunpack.c.l.bf16 %v531
  %v533 = vunpack.c.h.bf16 %v531
  %s534 = scalar_lea.vmem %s1, 1304
  %s536 = ssub.s32 0, 4
  %s537 = scalar_lea.vmem %s534, %s536
  %v538 = vpack.c.bf16 %v532, %v87
  %539 = vst [vmem:[%s537] sm:$0xff] %v538
  %s540 = scalar_lea.vmem %s0, 1324
  %v541 = vld [vmem:[%s540] sm:$0xf]
  %v542 = vunpack.c.l.bf16 %v541
  %v543 = vunpack.c.h.bf16 %v541
  %s544 = scalar_lea.vmem %s1, 44
  %s546 = ssub.s32 0, 4
  %s547 = scalar_lea.vmem %s544, %s546
  %v548 = vpack.c.bf16 %v542, %v92
  %549 = vst [vmem:[%s547] sm:$0xff] %v548
  %s550 = scalar_lea.vmem %s0, 844
  %v551 = vld [vmem:[%s550] sm:$0xf]
  %v552 = vunpack.c.l.bf16 %v551
  %v553 = vunpack.c.h.bf16 %v551
  %s554 = scalar_lea.vmem %s1, 524
  %s556 = ssub.s32 0, 4
  %s557 = scalar_lea.vmem %s554, %s556
  %v558 = vpack.c.bf16 %v552, %v97
  %559 = vst [vmem:[%s557] sm:$0xff] %v558
  %s560 = scalar_lea.vmem %s0, 364
  %v561 = vld [vmem:[%s560] sm:$0xf]
  %v562 = vunpack.c.l.bf16 %v561
  %v563 = vunpack.c.h.bf16 %v561
  %s564 = scalar_lea.vmem %s1, 1004
  %s566 = ssub.s32 0, 4
  %s567 = scalar_lea.vmem %s564, %s566
  %v568 = vpack.c.bf16 %v562, %v102
  %569 = vst [vmem:[%s567] sm:$0xff] %v568
  %s570 = scalar_lea.vmem %s0, 1164
  %v571 = vld [vmem:[%s570] sm:$0xf]
  %v572 = vunpack.c.l.bf16 %v571
  %v573 = vunpack.c.h.bf16 %v571
  %s574 = scalar_lea.vmem %s1, 204
  %s576 = ssub.s32 0, 4
  %s577 = scalar_lea.vmem %s574, %s576
  %v578 = vpack.c.bf16 %v572, %v107
  %579 = vst [vmem:[%s577] sm:$0xff] %v578
  %s580 = scalar_lea.vmem %s0, 684
  %v581 = vld [vmem:[%s580] sm:$0xf]
  %v582 = vunpack.c.l.bf16 %v581
  %v583 = vunpack.c.h.bf16 %v581
  %s584 = scalar_lea.vmem %s1, 684
  %s586 = ssub.s32 0, 4
  %s587 = scalar_lea.vmem %s584, %s586
  %v588 = vpack.c.bf16 %v582, %v112
  %589 = vst [vmem:[%s587] sm:$0xff] %v588
  %s590 = scalar_lea.vmem %s0, 204
  %v591 = vld [vmem:[%s590] sm:$0xf]
  %v592 = vunpack.c.l.bf16 %v591
  %v593 = vunpack.c.h.bf16 %v591
  %s594 = scalar_lea.vmem %s1, 1164
  %s596 = ssub.s32 0, 4
  %s597 = scalar_lea.vmem %s594, %s596
  %v598 = vpack.c.bf16 %v592, %v117
  %599 = vst [vmem:[%s597] sm:$0xff] %v598
  %s600 = scalar_lea.vmem %s0, 1004
  %v601 = vld [vmem:[%s600] sm:$0xf]
  %v602 = vunpack.c.l.bf16 %v601
  %v603 = vunpack.c.h.bf16 %v601
  %s604 = scalar_lea.vmem %s1, 364
  %s606 = ssub.s32 0, 4
  %s607 = scalar_lea.vmem %s604, %s606
  %v608 = vpack.c.bf16 %v602, %v122
  %609 = vst [vmem:[%s607] sm:$0xff] %v608
  %s610 = scalar_lea.vmem %s0, 524
  %v611 = vld [vmem:[%s610] sm:$0xf]
  %v612 = vunpack.c.l.bf16 %v611
  %v613 = vunpack.c.h.bf16 %v611
  %s614 = scalar_lea.vmem %s1, 844
  %s616 = ssub.s32 0, 4
  %s617 = scalar_lea.vmem %s614, %s616
  %v618 = vpack.c.bf16 %v612, %v127
  %619 = vst [vmem:[%s617] sm:$0xff] %v618
  %s620 = scalar_lea.vmem %s0, 44
  %v621 = vld [vmem:[%s620] sm:$0xf]
  %v622 = vunpack.c.l.bf16 %v621
  %v623 = vunpack.c.h.bf16 %v621
  %s624 = scalar_lea.vmem %s1, 1324
  %s626 = ssub.s32 0, 4
  %s627 = scalar_lea.vmem %s624, %s626
  %v628 = vpack.c.bf16 %v622, %v132
  %629 = vst [vmem:[%s627] sm:$0xff] %v628
  %s630 = scalar_lea.vmem %s0, 1344
  %v631 = vld [vmem:[%s630] sm:$0xf]
  %v632 = vunpack.c.l.bf16 %v631
  %v633 = vunpack.c.h.bf16 %v631
  %s634 = scalar_lea.vmem %s1, 64
  %s636 = ssub.s32 0, 4
  %s637 = scalar_lea.vmem %s634, %s636
  %v638 = vpack.c.bf16 %v632, %v137
  %639 = vst [vmem:[%s637] sm:$0xff] %v638
  %s640 = scalar_lea.vmem %s0, 864
  %v641 = vld [vmem:[%s640] sm:$0xf]
  %v642 = vunpack.c.l.bf16 %v641
  %v643 = vunpack.c.h.bf16 %v641
  %s644 = scalar_lea.vmem %s1, 544
  %s646 = ssub.s32 0, 4
  %s647 = scalar_lea.vmem %s644, %s646
  %v648 = vpack.c.bf16 %v642, %v142
  %649 = vst [vmem:[%s647] sm:$0xff] %v648
  %s650 = scalar_lea.vmem %s0, 384
  %v651 = vld [vmem:[%s650] sm:$0xf]
  %v652 = vunpack.c.l.bf16 %v651
  %v653 = vunpack.c.h.bf16 %v651
  %s654 = scalar_lea.vmem %s1, 1024
  %s656 = ssub.s32 0, 4
  %s657 = scalar_lea.vmem %s654, %s656
  %v658 = vpack.c.bf16 %v652, %v147
  %659 = vst [vmem:[%s657] sm:$0xff] %v658
  %s660 = scalar_lea.vmem %s0, 1184
  %v661 = vld [vmem:[%s660] sm:$0xf]
  %v662 = vunpack.c.l.bf16 %v661
  %v663 = vunpack.c.h.bf16 %v661
  %s664 = scalar_lea.vmem %s1, 224
  %s666 = ssub.s32 0, 4
  %s667 = scalar_lea.vmem %s664, %s666
  %v668 = vpack.c.bf16 %v662, %v152
  %669 = vst [vmem:[%s667] sm:$0xff] %v668
  %s670 = scalar_lea.vmem %s0, 704
  %v671 = vld [vmem:[%s670] sm:$0xf]
  %v672 = vunpack.c.l.bf16 %v671
  %v673 = vunpack.c.h.bf16 %v671
  %s674 = scalar_lea.vmem %s1, 704
  %s676 = ssub.s32 0, 4
  %s677 = scalar_lea.vmem %s674, %s676
  %v678 = vpack.c.bf16 %v672, %v157
  %679 = vst [vmem:[%s677] sm:$0xff] %v678
  %s680 = scalar_lea.vmem %s0, 224
  %v681 = vld [vmem:[%s680] sm:$0xf]
  %v682 = vunpack.c.l.bf16 %v681
  %v683 = vunpack.c.h.bf16 %v681
  %s684 = scalar_lea.vmem %s1, 1184
  %s686 = ssub.s32 0, 4
  %s687 = scalar_lea.vmem %s684, %s686
  %v688 = vpack.c.bf16 %v682, %v162
  %689 = vst [vmem:[%s687] sm:$0xff] %v688
  %s690 = scalar_lea.vmem %s0, 1024
  %v691 = vld [vmem:[%s690] sm:$0xf]
  %v692 = vunpack.c.l.bf16 %v691
  %v693 = vunpack.c.h.bf16 %v691
  %s694 = scalar_lea.vmem %s1, 384
  %s696 = ssub.s32 0, 4
  %s697 = scalar_lea.vmem %s694, %s696
  %v698 = vpack.c.bf16 %v692, %v167
  %699 = vst [vmem:[%s697] sm:$0xff] %v698
  %s700 = scalar_lea.vmem %s0, 544
  %v701 = vld [vmem:[%s700] sm:$0xf]
  %v702 = vunpack.c.l.bf16 %v701
  %v703 = vunpack.c.h.bf16 %v701
  %s704 = scalar_lea.vmem %s1, 864
  %s706 = ssub.s32 0, 4
  %s707 = scalar_lea.vmem %s704, %s706
  %v708 = vpack.c.bf16 %v702, %v172
  %709 = vst [vmem:[%s707] sm:$0xff] %v708
  %s710 = scalar_lea.vmem %s0, 64
  %v711 = vld [vmem:[%s710] sm:$0xf]
  %v712 = vunpack.c.l.bf16 %v711
  %v713 = vunpack.c.h.bf16 %v711
  %s714 = scalar_lea.vmem %s1, 1344
  %s716 = ssub.s32 0, 4
  %s717 = scalar_lea.vmem %s714, %s716
  %v718 = vpack.c.bf16 %v712, %v177
  %719 = vst [vmem:[%s717] sm:$0xff] %v718
  %s720 = scalar_lea.vmem %s0, 1364
  %v721 = vld [vmem:[%s720] sm:$0xf]
  %v722 = vunpack.c.l.bf16 %v721
  %v723 = vunpack.c.h.bf16 %v721
  %s724 = scalar_lea.vmem %s1, 84
  %s726 = ssub.s32 0, 4
  %s727 = scalar_lea.vmem %s724, %s726
  %v728 = vpack.c.bf16 %v722, %v182
  %729 = vst [vmem:[%s727] sm:$0xff] %v728
  %s730 = scalar_lea.vmem %s0, 884
  %v731 = vld [vmem:[%s730] sm:$0xf]
  %v732 = vunpack.c.l.bf16 %v731
  %v733 = vunpack.c.h.bf16 %v731
  %s734 = scalar_lea.vmem %s1, 564
  %s736 = ssub.s32 0, 4
  %s737 = scalar_lea.vmem %s734, %s736
  %v738 = vpack.c.bf16 %v732, %v187
  %739 = vst [vmem:[%s737] sm:$0xff] %v738
  %s740 = scalar_lea.vmem %s0, 404
  %v741 = vld [vmem:[%s740] sm:$0xf]
  %v742 = vunpack.c.l.bf16 %v741
  %v743 = vunpack.c.h.bf16 %v741
  %s744 = scalar_lea.vmem %s1, 1044
  %s746 = ssub.s32 0, 4
  %s747 = scalar_lea.vmem %s744, %s746
  %v748 = vpack.c.bf16 %v742, %v192
  %749 = vst [vmem:[%s747] sm:$0xff] %v748
  %s750 = scalar_lea.vmem %s0, 1204
  %v751 = vld [vmem:[%s750] sm:$0xf]
  %v752 = vunpack.c.l.bf16 %v751
  %v753 = vunpack.c.h.bf16 %v751
  %s754 = scalar_lea.vmem %s1, 244
  %s756 = ssub.s32 0, 4
  %s757 = scalar_lea.vmem %s754, %s756
  %v758 = vpack.c.bf16 %v752, %v197
  %759 = vst [vmem:[%s757] sm:$0xff] %v758
  %s760 = scalar_lea.vmem %s0, 724
  %v761 = vld [vmem:[%s760] sm:$0xf]
  %v762 = vunpack.c.l.bf16 %v761
  %v763 = vunpack.c.h.bf16 %v761
  %s764 = scalar_lea.vmem %s1, 724
  %s766 = ssub.s32 0, 4
  %s767 = scalar_lea.vmem %s764, %s766
  %v768 = vpack.c.bf16 %v762, %v202
  %769 = vst [vmem:[%s767] sm:$0xff] %v768
  %s770 = scalar_lea.vmem %s0, 244
  %v771 = vld [vmem:[%s770] sm:$0xf]
  %v772 = vunpack.c.l.bf16 %v771
  %v773 = vunpack.c.h.bf16 %v771
  %s774 = scalar_lea.vmem %s1, 1204
  %s776 = ssub.s32 0, 4
  %s777 = scalar_lea.vmem %s774, %s776
  %v778 = vpack.c.bf16 %v772, %v207
  %779 = vst [vmem:[%s777] sm:$0xff] %v778
  %s780 = scalar_lea.vmem %s0, 1044
  %v781 = vld [vmem:[%s780] sm:$0xf]
  %v782 = vunpack.c.l.bf16 %v781
  %v783 = vunpack.c.h.bf16 %v781
  %s784 = scalar_lea.vmem %s1, 404
  %s786 = ssub.s32 0, 4
  %s787 = scalar_lea.vmem %s784, %s786
  %v788 = vpack.c.bf16 %v782, %v212
  %789 = vst [vmem:[%s787] sm:$0xff] %v788
  %s790 = scalar_lea.vmem %s0, 564
  %v791 = vld [vmem:[%s790] sm:$0xf]
  %v792 = vunpack.c.l.bf16 %v791
  %v793 = vunpack.c.h.bf16 %v791
  %s794 = scalar_lea.vmem %s1, 884
  %s796 = ssub.s32 0, 4
  %s797 = scalar_lea.vmem %s794, %s796
  %v798 = vpack.c.bf16 %v792, %v217
  %799 = vst [vmem:[%s797] sm:$0xff] %v798
  %s800 = scalar_lea.vmem %s0, 84
  %v801 = vld [vmem:[%s800] sm:$0xf]
  %v802 = vunpack.c.l.bf16 %v801
  %v803 = vunpack.c.h.bf16 %v801
  %s804 = scalar_lea.vmem %s1, 1364
  %s806 = ssub.s32 0, 4
  %s807 = scalar_lea.vmem %s804, %s806
  %v808 = vpack.c.bf16 %v802, %v222
  %809 = vst [vmem:[%s807] sm:$0xff] %v808
  %s810 = scalar_lea.vmem %s0, 1384
  %v811 = vld [vmem:[%s810] sm:$0xf]
  %v812 = vunpack.c.l.bf16 %v811
  %v813 = vunpack.c.h.bf16 %v811
  %s814 = scalar_lea.vmem %s1, 104
  %s816 = ssub.s32 0, 4
  %s817 = scalar_lea.vmem %s814, %s816
  %v818 = vpack.c.bf16 %v812, %v227
  %819 = vst [vmem:[%s817] sm:$0xff] %v818
  %s820 = scalar_lea.vmem %s0, 904
  %v821 = vld [vmem:[%s820] sm:$0xf]
  %v822 = vunpack.c.l.bf16 %v821
  %v823 = vunpack.c.h.bf16 %v821
  %s824 = scalar_lea.vmem %s1, 584
  %s826 = ssub.s32 0, 4
  %s827 = scalar_lea.vmem %s824, %s826
  %v828 = vpack.c.bf16 %v822, %v232
  %829 = vst [vmem:[%s827] sm:$0xff] %v828
  %s830 = scalar_lea.vmem %s0, 424
  %v831 = vld [vmem:[%s830] sm:$0xf]
  %v832 = vunpack.c.l.bf16 %v831
  %v833 = vunpack.c.h.bf16 %v831
  %s834 = scalar_lea.vmem %s1, 1064
  %s836 = ssub.s32 0, 4
  %s837 = scalar_lea.vmem %s834, %s836
  %v838 = vpack.c.bf16 %v832, %v237
  %839 = vst [vmem:[%s837] sm:$0xff] %v838
  %s840 = scalar_lea.vmem %s0, 1224
  %v841 = vld [vmem:[%s840] sm:$0xf]
  %v842 = vunpack.c.l.bf16 %v841
  %v843 = vunpack.c.h.bf16 %v841
  %s844 = scalar_lea.vmem %s1, 264
  %s846 = ssub.s32 0, 4
  %s847 = scalar_lea.vmem %s844, %s846
  %v848 = vpack.c.bf16 %v842, %v242
  %849 = vst [vmem:[%s847] sm:$0xff] %v848
  %s850 = scalar_lea.vmem %s0, 744
  %v851 = vld [vmem:[%s850] sm:$0xf]
  %v852 = vunpack.c.l.bf16 %v851
  %v853 = vunpack.c.h.bf16 %v851
  %s854 = scalar_lea.vmem %s1, 744
  %s856 = ssub.s32 0, 4
  %s857 = scalar_lea.vmem %s854, %s856
  %v858 = vpack.c.bf16 %v852, %v247
  %859 = vst [vmem:[%s857] sm:$0xff] %v858
  %s860 = scalar_lea.vmem %s0, 264
  %v861 = vld [vmem:[%s860] sm:$0xf]
  %v862 = vunpack.c.l.bf16 %v861
  %v863 = vunpack.c.h.bf16 %v861
  %s864 = scalar_lea.vmem %s1, 1224
  %s866 = ssub.s32 0, 4
  %s867 = scalar_lea.vmem %s864, %s866
  %v868 = vpack.c.bf16 %v862, %v252
  %869 = vst [vmem:[%s867] sm:$0xff] %v868
  %s870 = scalar_lea.vmem %s0, 1064
  %v871 = vld [vmem:[%s870] sm:$0xf]
  %v872 = vunpack.c.l.bf16 %v871
  %v873 = vunpack.c.h.bf16 %v871
  %s874 = scalar_lea.vmem %s1, 424
  %s876 = ssub.s32 0, 4
  %s877 = scalar_lea.vmem %s874, %s876
  %v878 = vpack.c.bf16 %v872, %v257
  %879 = vst [vmem:[%s877] sm:$0xff] %v878
  %s880 = scalar_lea.vmem %s0, 584
  %v881 = vld [vmem:[%s880] sm:$0xf]
  %v882 = vunpack.c.l.bf16 %v881
  %v883 = vunpack.c.h.bf16 %v881
  %s884 = scalar_lea.vmem %s1, 904
  %s886 = ssub.s32 0, 4
  %s887 = scalar_lea.vmem %s884, %s886
  %v888 = vpack.c.bf16 %v882, %v262
  %889 = vst [vmem:[%s887] sm:$0xff] %v888
  %s890 = scalar_lea.vmem %s0, 104
  %v891 = vld [vmem:[%s890] sm:$0xf]
  %v892 = vunpack.c.l.bf16 %v891
  %v893 = vunpack.c.h.bf16 %v891
  %s894 = scalar_lea.vmem %s1, 1384
  %s896 = ssub.s32 0, 4
  %s897 = scalar_lea.vmem %s894, %s896
  %v898 = vpack.c.bf16 %v892, %v267
  %899 = vst [vmem:[%s897] sm:$0xff] %v898
  %s900 = scalar_lea.vmem %s0, 1404
  %v901 = vld [vmem:[%s900] sm:$0xf]
  %v902 = vunpack.c.l.bf16 %v901
  %v903 = vunpack.c.h.bf16 %v901
  %s904 = scalar_lea.vmem %s1, 124
  %s906 = ssub.s32 0, 4
  %s907 = scalar_lea.vmem %s904, %s906
  %v908 = vpack.c.bf16 %v902, %v272
  %909 = vst [vmem:[%s907] sm:$0xff] %v908
  %s910 = scalar_lea.vmem %s0, 924
  %v911 = vld [vmem:[%s910] sm:$0xf]
  %v912 = vunpack.c.l.bf16 %v911
  %v913 = vunpack.c.h.bf16 %v911
  %s914 = scalar_lea.vmem %s1, 604
  %s916 = ssub.s32 0, 4
  %s917 = scalar_lea.vmem %s914, %s916
  %v918 = vpack.c.bf16 %v912, %v277
  %919 = vst [vmem:[%s917] sm:$0xff] %v918
  %s920 = scalar_lea.vmem %s0, 444
  %v921 = vld [vmem:[%s920] sm:$0xf]
  %v922 = vunpack.c.l.bf16 %v921
  %v923 = vunpack.c.h.bf16 %v921
  %s924 = scalar_lea.vmem %s1, 1084
  %s926 = ssub.s32 0, 4
  %s927 = scalar_lea.vmem %s924, %s926
  %v928 = vpack.c.bf16 %v922, %v282
  %929 = vst [vmem:[%s927] sm:$0xff] %v928
  %s930 = scalar_lea.vmem %s0, 1244
  %v931 = vld [vmem:[%s930] sm:$0xf]
  %v932 = vunpack.c.l.bf16 %v931
  %v933 = vunpack.c.h.bf16 %v931
  %s934 = scalar_lea.vmem %s1, 284
  %s936 = ssub.s32 0, 4
  %s937 = scalar_lea.vmem %s934, %s936
  %v938 = vpack.c.bf16 %v932, %v287
  %939 = vst [vmem:[%s937] sm:$0xff] %v938
  %s940 = scalar_lea.vmem %s0, 764
  %v941 = vld [vmem:[%s940] sm:$0xf]
  %v942 = vunpack.c.l.bf16 %v941
  %v943 = vunpack.c.h.bf16 %v941
  %s944 = scalar_lea.vmem %s1, 764
  %s946 = ssub.s32 0, 4
  %s947 = scalar_lea.vmem %s944, %s946
  %v948 = vpack.c.bf16 %v942, %v292
  %949 = vst [vmem:[%s947] sm:$0xff] %v948
  %s950 = scalar_lea.vmem %s0, 284
  %v951 = vld [vmem:[%s950] sm:$0xf]
  %v952 = vunpack.c.l.bf16 %v951
  %v953 = vunpack.c.h.bf16 %v951
  %s954 = scalar_lea.vmem %s1, 1244
  %s956 = ssub.s32 0, 4
  %s957 = scalar_lea.vmem %s954, %s956
  %v958 = vpack.c.bf16 %v952, %v297
  %959 = vst [vmem:[%s957] sm:$0xff] %v958
  %s960 = scalar_lea.vmem %s0, 1084
  %v961 = vld [vmem:[%s960] sm:$0xf]
  %v962 = vunpack.c.l.bf16 %v961
  %v963 = vunpack.c.h.bf16 %v961
  %s964 = scalar_lea.vmem %s1, 444
  %s966 = ssub.s32 0, 4
  %s967 = scalar_lea.vmem %s964, %s966
  %v968 = vpack.c.bf16 %v962, %v302
  %969 = vst [vmem:[%s967] sm:$0xff] %v968
  %s970 = scalar_lea.vmem %s0, 604
  %v971 = vld [vmem:[%s970] sm:$0xf]
  %v972 = vunpack.c.l.bf16 %v971
  %v973 = vunpack.c.h.bf16 %v971
  %s974 = scalar_lea.vmem %s1, 924
  %s976 = ssub.s32 0, 4
  %s977 = scalar_lea.vmem %s974, %s976
  %v978 = vpack.c.bf16 %v972, %v307
  %979 = vst [vmem:[%s977] sm:$0xff] %v978
  %s980 = scalar_lea.vmem %s0, 124
  %v981 = vld [vmem:[%s980] sm:$0xf]
  %v982 = vunpack.c.l.bf16 %v981
  %v983 = vunpack.c.h.bf16 %v981
  %s984 = scalar_lea.vmem %s1, 1404
  %s986 = ssub.s32 0, 4
  %s987 = scalar_lea.vmem %s984, %s986
  %v988 = vpack.c.bf16 %v982, %v312
  %989 = vst [vmem:[%s987] sm:$0xff] %v988
  %s990 = scalar_lea.vmem %s0, 1424
  %v991 = vld [vmem:[%s990] sm:$0xf]
  %v992 = vunpack.c.l.bf16 %v991
  %v993 = vunpack.c.h.bf16 %v991
  %s994 = scalar_lea.vmem %s1, 144
  %s996 = ssub.s32 0, 4
  %s997 = scalar_lea.vmem %s994, %s996
  %v998 = vpack.c.bf16 %v992, %v317
  %999 = vst [vmem:[%s997] sm:$0xff] %v998
  %s1000 = scalar_lea.vmem %s0, 944
  %v1001 = vld [vmem:[%s1000] sm:$0xf]
  %v1002 = vunpack.c.l.bf16 %v1001
  %v1003 = vunpack.c.h.bf16 %v1001
  %s1004 = scalar_lea.vmem %s1, 624
  %s1006 = ssub.s32 0, 4
  %s1007 = scalar_lea.vmem %s1004, %s1006
  %v1008 = vpack.c.bf16 %v1002, %v322
  %1009 = vst [vmem:[%s1007] sm:$0xff] %v1008
  %s1010 = scalar_lea.vmem %s0, 464
  %v1011 = vld [vmem:[%s1010] sm:$0xf]
  %v1012 = vunpack.c.l.bf16 %v1011
  %v1013 = vunpack.c.h.bf16 %v1011
  %s1014 = scalar_lea.vmem %s1, 1104
  %s1016 = ssub.s32 0, 4
  %s1017 = scalar_lea.vmem %s1014, %s1016
  %v1018 = vpack.c.bf16 %v1012, %v327
  %1019 = vst [vmem:[%s1017] sm:$0xff] %v1018
  %s1020 = scalar_lea.vmem %s0, 1264
  %v1021 = vld [vmem:[%s1020] sm:$0xf]
  %v1022 = vunpack.c.l.bf16 %v1021
  %v1023 = vunpack.c.h.bf16 %v1021
  %s1024 = scalar_lea.vmem %s1, 304
  %s1026 = ssub.s32 0, 4
  %s1027 = scalar_lea.vmem %s1024, %s1026
  %v1028 = vpack.c.bf16 %v1022, %v332
  %1029 = vst [vmem:[%s1027] sm:$0xff] %v1028
  %s1030 = scalar_lea.vmem %s0, 784
  %v1031 = vld [vmem:[%s1030] sm:$0xf]
  %v1032 = vunpack.c.l.bf16 %v1031
  %v1033 = vunpack.c.h.bf16 %v1031
  %s1034 = scalar_lea.vmem %s1, 784
  %s1036 = ssub.s32 0, 4
  %s1037 = scalar_lea.vmem %s1034, %s1036
  %v1038 = vpack.c.bf16 %v1032, %v337
  %1039 = vst [vmem:[%s1037] sm:$0xff] %v1038
  %s1040 = scalar_lea.vmem %s0, 304
  %v1041 = vld [vmem:[%s1040] sm:$0xf]
  %v1042 = vunpack.c.l.bf16 %v1041
  %v1043 = vunpack.c.h.bf16 %v1041
  %s1044 = scalar_lea.vmem %s1, 1264
  %s1046 = ssub.s32 0, 4
  %s1047 = scalar_lea.vmem %s1044, %s1046
  %v1048 = vpack.c.bf16 %v1042, %v342
  %1049 = vst [vmem:[%s1047] sm:$0xff] %v1048
  %s1050 = scalar_lea.vmem %s0, 1104
  %v1051 = vld [vmem:[%s1050] sm:$0xf]
  %v1052 = vunpack.c.l.bf16 %v1051
  %v1053 = vunpack.c.h.bf16 %v1051
  %s1054 = scalar_lea.vmem %s1, 464
  %s1056 = ssub.s32 0, 4
  %s1057 = scalar_lea.vmem %s1054, %s1056
  %v1058 = vpack.c.bf16 %v1052, %v347
  %1059 = vst [vmem:[%s1057] sm:$0xff] %v1058
  %s1060 = scalar_lea.vmem %s0, 624
  %v1061 = vld [vmem:[%s1060] sm:$0xf]
  %v1062 = vunpack.c.l.bf16 %v1061
  %v1063 = vunpack.c.h.bf16 %v1061
  %s1064 = scalar_lea.vmem %s1, 944
  %s1066 = ssub.s32 0, 4
  %s1067 = scalar_lea.vmem %s1064, %s1066
  %v1068 = vpack.c.bf16 %v1062, %v352
  %1069 = vst [vmem:[%s1067] sm:$0xff] %v1068
  %s1070 = scalar_lea.vmem %s0, 144
  %v1071 = vld [vmem:[%s1070] sm:$0xf]
  %v1072 = vunpack.c.l.bf16 %v1071
  %v1073 = vunpack.c.h.bf16 %v1071
  %s1074 = scalar_lea.vmem %s1, 1424
  %s1076 = ssub.s32 0, 4
  %s1077 = scalar_lea.vmem %s1074, %s1076
  %v1078 = vpack.c.bf16 %v1072, %v357
  %1079 = vst [vmem:[%s1077] sm:$0xff] %v1078
  %s1080 = scalar_lea.vmem %s0, 1288
  %v1081 = vld [vmem:[%s1080] sm:$0xf]
  %v1082 = vunpack.c.l.bf16 %v1081
  %v1083 = vunpack.c.h.bf16 %v1081
  %s1084 = scalar_lea.vmem %s1, 8
  %s1085 = scalar_lea.vmem %s0, 808
  %v1086 = vld [vmem:[%s1085] sm:$0xf]
  %v1087 = vunpack.c.l.bf16 %v1086
  %v1088 = vunpack.c.h.bf16 %v1086
  %s1089 = scalar_lea.vmem %s1, 488
  %s1090 = scalar_lea.vmem %s0, 328
  %v1091 = vld [vmem:[%s1090] sm:$0xf]
  %v1092 = vunpack.c.l.bf16 %v1091
  %v1093 = vunpack.c.h.bf16 %v1091
  %s1094 = scalar_lea.vmem %s1, 968
  %s1095 = scalar_lea.vmem %s0, 1128
  %v1096 = vld [vmem:[%s1095] sm:$0xf]
  %v1097 = vunpack.c.l.bf16 %v1096
  %v1098 = vunpack.c.h.bf16 %v1096
  %s1099 = scalar_lea.vmem %s1, 168
  %s1100 = scalar_lea.vmem %s0, 648
  %v1101 = vld [vmem:[%s1100] sm:$0xf]
  %v1102 = vunpack.c.l.bf16 %v1101
  %v1103 = vunpack.c.h.bf16 %v1101
  %s1104 = scalar_lea.vmem %s1, 648
  %s1105 = scalar_lea.vmem %s0, 168
  %v1106 = vld [vmem:[%s1105] sm:$0xf]
  %v1107 = vunpack.c.l.bf16 %v1106
  %v1108 = vunpack.c.h.bf16 %v1106
  %s1109 = scalar_lea.vmem %s1, 1128
  %s1110 = scalar_lea.vmem %s0, 968
  %v1111 = vld [vmem:[%s1110] sm:$0xf]
  %v1112 = vunpack.c.l.bf16 %v1111
  %v1113 = vunpack.c.h.bf16 %v1111
  %s1114 = scalar_lea.vmem %s1, 328
  %s1115 = scalar_lea.vmem %s0, 488
  %v1116 = vld [vmem:[%s1115] sm:$0xf]
  %v1117 = vunpack.c.l.bf16 %v1116
  %v1118 = vunpack.c.h.bf16 %v1116
  %s1119 = scalar_lea.vmem %s1, 808
  %s1120 = scalar_lea.vmem %s0, 8
  %v1121 = vld [vmem:[%s1120] sm:$0xf]
  %v1122 = vunpack.c.l.bf16 %v1121
  %v1123 = vunpack.c.h.bf16 %v1121
  %s1124 = scalar_lea.vmem %s1, 1288
  %s1125 = scalar_lea.vmem %s0, 1308
  %v1126 = vld [vmem:[%s1125] sm:$0xf]
  %v1127 = vunpack.c.l.bf16 %v1126
  %v1128 = vunpack.c.h.bf16 %v1126
  %s1129 = scalar_lea.vmem %s1, 28
  %s1130 = scalar_lea.vmem %s0, 828
  %v1131 = vld [vmem:[%s1130] sm:$0xf]
  %v1132 = vunpack.c.l.bf16 %v1131
  %v1133 = vunpack.c.h.bf16 %v1131
  %s1134 = scalar_lea.vmem %s1, 508
  %s1135 = scalar_lea.vmem %s0, 348
  %v1136 = vld [vmem:[%s1135] sm:$0xf]
  %v1137 = vunpack.c.l.bf16 %v1136
  %v1138 = vunpack.c.h.bf16 %v1136
  %s1139 = scalar_lea.vmem %s1, 988
  %s1140 = scalar_lea.vmem %s0, 1148
  %v1141 = vld [vmem:[%s1140] sm:$0xf]
  %v1142 = vunpack.c.l.bf16 %v1141
  %v1143 = vunpack.c.h.bf16 %v1141
  %s1144 = scalar_lea.vmem %s1, 188
  %s1145 = scalar_lea.vmem %s0, 668
  %v1146 = vld [vmem:[%s1145] sm:$0xf]
  %v1147 = vunpack.c.l.bf16 %v1146
  %v1148 = vunpack.c.h.bf16 %v1146
  %s1149 = scalar_lea.vmem %s1, 668
  %s1150 = scalar_lea.vmem %s0, 188
  %v1151 = vld [vmem:[%s1150] sm:$0xf]
  %v1152 = vunpack.c.l.bf16 %v1151
  %v1153 = vunpack.c.h.bf16 %v1151
  %s1154 = scalar_lea.vmem %s1, 1148
  %s1155 = scalar_lea.vmem %s0, 988
  %v1156 = vld [vmem:[%s1155] sm:$0xf]
  %v1157 = vunpack.c.l.bf16 %v1156
  %v1158 = vunpack.c.h.bf16 %v1156
  %s1159 = scalar_lea.vmem %s1, 348
  %s1160 = scalar_lea.vmem %s0, 508
  %v1161 = vld [vmem:[%s1160] sm:$0xf]
  %v1162 = vunpack.c.l.bf16 %v1161
  %v1163 = vunpack.c.h.bf16 %v1161
  %s1164 = scalar_lea.vmem %s1, 828
  %s1165 = scalar_lea.vmem %s0, 28
  %v1166 = vld [vmem:[%s1165] sm:$0xf]
  %v1167 = vunpack.c.l.bf16 %v1166
  %v1168 = vunpack.c.h.bf16 %v1166
  %s1169 = scalar_lea.vmem %s1, 1308
  %s1170 = scalar_lea.vmem %s0, 1328
  %v1171 = vld [vmem:[%s1170] sm:$0xf]
  %v1172 = vunpack.c.l.bf16 %v1171
  %v1173 = vunpack.c.h.bf16 %v1171
  %s1174 = scalar_lea.vmem %s1, 48
  %s1175 = scalar_lea.vmem %s0, 848
  %v1176 = vld [vmem:[%s1175] sm:$0xf]
  %v1177 = vunpack.c.l.bf16 %v1176
  %v1178 = vunpack.c.h.bf16 %v1176
  %s1179 = scalar_lea.vmem %s1, 528
  %s1180 = scalar_lea.vmem %s0, 368
  %v1181 = vld [vmem:[%s1180] sm:$0xf]
  %v1182 = vunpack.c.l.bf16 %v1181
  %v1183 = vunpack.c.h.bf16 %v1181
  %s1184 = scalar_lea.vmem %s1, 1008
  %s1185 = scalar_lea.vmem %s0, 1168
  %v1186 = vld [vmem:[%s1185] sm:$0xf]
  %v1187 = vunpack.c.l.bf16 %v1186
  %v1188 = vunpack.c.h.bf16 %v1186
  %s1189 = scalar_lea.vmem %s1, 208
  %s1190 = scalar_lea.vmem %s0, 688
  %v1191 = vld [vmem:[%s1190] sm:$0xf]
  %v1192 = vunpack.c.l.bf16 %v1191
  %v1193 = vunpack.c.h.bf16 %v1191
  %s1194 = scalar_lea.vmem %s1, 688
  %s1195 = scalar_lea.vmem %s0, 208
  %v1196 = vld [vmem:[%s1195] sm:$0xf]
  %v1197 = vunpack.c.l.bf16 %v1196
  %v1198 = vunpack.c.h.bf16 %v1196
  %s1199 = scalar_lea.vmem %s1, 1168
  %s1200 = scalar_lea.vmem %s0, 1008
  %v1201 = vld [vmem:[%s1200] sm:$0xf]
  %v1202 = vunpack.c.l.bf16 %v1201
  %v1203 = vunpack.c.h.bf16 %v1201
  %s1204 = scalar_lea.vmem %s1, 368
  %s1205 = scalar_lea.vmem %s0, 528
  %v1206 = vld [vmem:[%s1205] sm:$0xf]
  %v1207 = vunpack.c.l.bf16 %v1206
  %v1208 = vunpack.c.h.bf16 %v1206
  %s1209 = scalar_lea.vmem %s1, 848
  %s1210 = scalar_lea.vmem %s0, 48
  %v1211 = vld [vmem:[%s1210] sm:$0xf]
  %v1212 = vunpack.c.l.bf16 %v1211
  %v1213 = vunpack.c.h.bf16 %v1211
  %s1214 = scalar_lea.vmem %s1, 1328
  %s1215 = scalar_lea.vmem %s0, 1348
  %v1216 = vld [vmem:[%s1215] sm:$0xf]
  %v1217 = vunpack.c.l.bf16 %v1216
  %v1218 = vunpack.c.h.bf16 %v1216
  %s1219 = scalar_lea.vmem %s1, 68
  %s1220 = scalar_lea.vmem %s0, 868
  %v1221 = vld [vmem:[%s1220] sm:$0xf]
  %v1222 = vunpack.c.l.bf16 %v1221
  %v1223 = vunpack.c.h.bf16 %v1221
  %s1224 = scalar_lea.vmem %s1, 548
  %s1225 = scalar_lea.vmem %s0, 388
  %v1226 = vld [vmem:[%s1225] sm:$0xf]
  %v1227 = vunpack.c.l.bf16 %v1226
  %v1228 = vunpack.c.h.bf16 %v1226
  %s1229 = scalar_lea.vmem %s1, 1028
  %s1230 = scalar_lea.vmem %s0, 1188
  %v1231 = vld [vmem:[%s1230] sm:$0xf]
  %v1232 = vunpack.c.l.bf16 %v1231
  %v1233 = vunpack.c.h.bf16 %v1231
  %s1234 = scalar_lea.vmem %s1, 228
  %s1235 = scalar_lea.vmem %s0, 708
  %v1236 = vld [vmem:[%s1235] sm:$0xf]
  %v1237 = vunpack.c.l.bf16 %v1236
  %v1238 = vunpack.c.h.bf16 %v1236
  %s1239 = scalar_lea.vmem %s1, 708
  %s1240 = scalar_lea.vmem %s0, 228
  %v1241 = vld [vmem:[%s1240] sm:$0xf]
  %v1242 = vunpack.c.l.bf16 %v1241
  %v1243 = vunpack.c.h.bf16 %v1241
  %s1244 = scalar_lea.vmem %s1, 1188
  %s1245 = scalar_lea.vmem %s0, 1028
  %v1246 = vld [vmem:[%s1245] sm:$0xf]
  %v1247 = vunpack.c.l.bf16 %v1246
  %v1248 = vunpack.c.h.bf16 %v1246
  %s1249 = scalar_lea.vmem %s1, 388
  %s1250 = scalar_lea.vmem %s0, 548
  %v1251 = vld [vmem:[%s1250] sm:$0xf]
  %v1252 = vunpack.c.l.bf16 %v1251
  %v1253 = vunpack.c.h.bf16 %v1251
  %s1254 = scalar_lea.vmem %s1, 868
  %s1255 = scalar_lea.vmem %s0, 68
  %v1256 = vld [vmem:[%s1255] sm:$0xf]
  %v1257 = vunpack.c.l.bf16 %v1256
  %v1258 = vunpack.c.h.bf16 %v1256
  %s1259 = scalar_lea.vmem %s1, 1348
  %s1260 = scalar_lea.vmem %s0, 1368
  %v1261 = vld [vmem:[%s1260] sm:$0xf]
  %v1262 = vunpack.c.l.bf16 %v1261
  %v1263 = vunpack.c.h.bf16 %v1261
  %s1264 = scalar_lea.vmem %s1, 88
  %s1265 = scalar_lea.vmem %s0, 888
  %v1266 = vld [vmem:[%s1265] sm:$0xf]
  %v1267 = vunpack.c.l.bf16 %v1266
  %v1268 = vunpack.c.h.bf16 %v1266
  %s1269 = scalar_lea.vmem %s1, 568
  %s1270 = scalar_lea.vmem %s0, 408
  %v1271 = vld [vmem:[%s1270] sm:$0xf]
  %v1272 = vunpack.c.l.bf16 %v1271
  %v1273 = vunpack.c.h.bf16 %v1271
  %s1274 = scalar_lea.vmem %s1, 1048
  %s1275 = scalar_lea.vmem %s0, 1208
  %v1276 = vld [vmem:[%s1275] sm:$0xf]
  %v1277 = vunpack.c.l.bf16 %v1276
  %v1278 = vunpack.c.h.bf16 %v1276
  %s1279 = scalar_lea.vmem %s1, 248
  %s1280 = scalar_lea.vmem %s0, 728
  %v1281 = vld [vmem:[%s1280] sm:$0xf]
  %v1282 = vunpack.c.l.bf16 %v1281
  %v1283 = vunpack.c.h.bf16 %v1281
  %s1284 = scalar_lea.vmem %s1, 728
  %s1285 = scalar_lea.vmem %s0, 248
  %v1286 = vld [vmem:[%s1285] sm:$0xf]
  %v1287 = vunpack.c.l.bf16 %v1286
  %v1288 = vunpack.c.h.bf16 %v1286
  %s1289 = scalar_lea.vmem %s1, 1208
  %s1290 = scalar_lea.vmem %s0, 1048
  %v1291 = vld [vmem:[%s1290] sm:$0xf]
  %v1292 = vunpack.c.l.bf16 %v1291
  %v1293 = vunpack.c.h.bf16 %v1291
  %s1294 = scalar_lea.vmem %s1, 408
  %s1295 = scalar_lea.vmem %s0, 568
  %v1296 = vld [vmem:[%s1295] sm:$0xf]
  %v1297 = vunpack.c.l.bf16 %v1296
  %v1298 = vunpack.c.h.bf16 %v1296
  %s1299 = scalar_lea.vmem %s1, 888
  %s1300 = scalar_lea.vmem %s0, 88
  %v1301 = vld [vmem:[%s1300] sm:$0xf]
  %v1302 = vunpack.c.l.bf16 %v1301
  %v1303 = vunpack.c.h.bf16 %v1301
  %s1304 = scalar_lea.vmem %s1, 1368
  %s1305 = scalar_lea.vmem %s0, 1388
  %v1306 = vld [vmem:[%s1305] sm:$0xf]
  %v1307 = vunpack.c.l.bf16 %v1306
  %v1308 = vunpack.c.h.bf16 %v1306
  %s1309 = scalar_lea.vmem %s1, 108
  %s1310 = scalar_lea.vmem %s0, 908
  %v1311 = vld [vmem:[%s1310] sm:$0xf]
  %v1312 = vunpack.c.l.bf16 %v1311
  %v1313 = vunpack.c.h.bf16 %v1311
  %s1314 = scalar_lea.vmem %s1, 588
  %s1315 = scalar_lea.vmem %s0, 428
  %v1316 = vld [vmem:[%s1315] sm:$0xf]
  %v1317 = vunpack.c.l.bf16 %v1316
  %v1318 = vunpack.c.h.bf16 %v1316
  %s1319 = scalar_lea.vmem %s1, 1068
  %s1320 = scalar_lea.vmem %s0, 1228
  %v1321 = vld [vmem:[%s1320] sm:$0xf]
  %v1322 = vunpack.c.l.bf16 %v1321
  %v1323 = vunpack.c.h.bf16 %v1321
  %s1324 = scalar_lea.vmem %s1, 268
  %s1325 = scalar_lea.vmem %s0, 748
  %v1326 = vld [vmem:[%s1325] sm:$0xf]
  %v1327 = vunpack.c.l.bf16 %v1326
  %v1328 = vunpack.c.h.bf16 %v1326
  %s1329 = scalar_lea.vmem %s1, 748
  %s1330 = scalar_lea.vmem %s0, 268
  %v1331 = vld [vmem:[%s1330] sm:$0xf]
  %v1332 = vunpack.c.l.bf16 %v1331
  %v1333 = vunpack.c.h.bf16 %v1331
  %s1334 = scalar_lea.vmem %s1, 1228
  %s1335 = scalar_lea.vmem %s0, 1068
  %v1336 = vld [vmem:[%s1335] sm:$0xf]
  %v1337 = vunpack.c.l.bf16 %v1336
  %v1338 = vunpack.c.h.bf16 %v1336
  %s1339 = scalar_lea.vmem %s1, 428
  %s1340 = scalar_lea.vmem %s0, 588
  %v1341 = vld [vmem:[%s1340] sm:$0xf]
  %v1342 = vunpack.c.l.bf16 %v1341
  %v1343 = vunpack.c.h.bf16 %v1341
  %s1344 = scalar_lea.vmem %s1, 908
  %s1345 = scalar_lea.vmem %s0, 108
  %v1346 = vld [vmem:[%s1345] sm:$0xf]
  %v1347 = vunpack.c.l.bf16 %v1346
  %v1348 = vunpack.c.h.bf16 %v1346
  %s1349 = scalar_lea.vmem %s1, 1388
  %s1350 = scalar_lea.vmem %s0, 1408
  %v1351 = vld [vmem:[%s1350] sm:$0xf]
  %v1352 = vunpack.c.l.bf16 %v1351
  %v1353 = vunpack.c.h.bf16 %v1351
  %s1354 = scalar_lea.vmem %s1, 128
  %s1355 = scalar_lea.vmem %s0, 928
  %v1356 = vld [vmem:[%s1355] sm:$0xf]
  %v1357 = vunpack.c.l.bf16 %v1356
  %v1358 = vunpack.c.h.bf16 %v1356
  %s1359 = scalar_lea.vmem %s1, 608
  %s1360 = scalar_lea.vmem %s0, 448
  %v1361 = vld [vmem:[%s1360] sm:$0xf]
  %v1362 = vunpack.c.l.bf16 %v1361
  %v1363 = vunpack.c.h.bf16 %v1361
  %s1364 = scalar_lea.vmem %s1, 1088
  %s1365 = scalar_lea.vmem %s0, 1248
  %v1366 = vld [vmem:[%s1365] sm:$0xf]
  %v1367 = vunpack.c.l.bf16 %v1366
  %v1368 = vunpack.c.h.bf16 %v1366
  %s1369 = scalar_lea.vmem %s1, 288
  %s1370 = scalar_lea.vmem %s0, 768
  %v1371 = vld [vmem:[%s1370] sm:$0xf]
  %v1372 = vunpack.c.l.bf16 %v1371
  %v1373 = vunpack.c.h.bf16 %v1371
  %s1374 = scalar_lea.vmem %s1, 768
  %s1375 = scalar_lea.vmem %s0, 288
  %v1376 = vld [vmem:[%s1375] sm:$0xf]
  %v1377 = vunpack.c.l.bf16 %v1376
  %v1378 = vunpack.c.h.bf16 %v1376
  %s1379 = scalar_lea.vmem %s1, 1248
  %s1380 = scalar_lea.vmem %s0, 1088
  %v1381 = vld [vmem:[%s1380] sm:$0xf]
  %v1382 = vunpack.c.l.bf16 %v1381
  %v1383 = vunpack.c.h.bf16 %v1381
  %s1384 = scalar_lea.vmem %s1, 448
  %s1385 = scalar_lea.vmem %s0, 608
  %v1386 = vld [vmem:[%s1385] sm:$0xf]
  %v1387 = vunpack.c.l.bf16 %v1386
  %v1388 = vunpack.c.h.bf16 %v1386
  %s1389 = scalar_lea.vmem %s1, 928
  %s1390 = scalar_lea.vmem %s0, 128
  %v1391 = vld [vmem:[%s1390] sm:$0xf]
  %v1392 = vunpack.c.l.bf16 %v1391
  %v1393 = vunpack.c.h.bf16 %v1391
  %s1394 = scalar_lea.vmem %s1, 1408
  %s1395 = scalar_lea.vmem %s0, 1428
  %v1396 = vld [vmem:[%s1395] sm:$0xf]
  %v1397 = vunpack.c.l.bf16 %v1396
  %v1398 = vunpack.c.h.bf16 %v1396
  %s1399 = scalar_lea.vmem %s1, 148
  %s1400 = scalar_lea.vmem %s0, 948
  %v1401 = vld [vmem:[%s1400] sm:$0xf]
  %v1402 = vunpack.c.l.bf16 %v1401
  %v1403 = vunpack.c.h.bf16 %v1401
  %s1404 = scalar_lea.vmem %s1, 628
  %s1405 = scalar_lea.vmem %s0, 468
  %v1406 = vld [vmem:[%s1405] sm:$0xf]
  %v1407 = vunpack.c.l.bf16 %v1406
  %v1408 = vunpack.c.h.bf16 %v1406
  %s1409 = scalar_lea.vmem %s1, 1108
  %s1410 = scalar_lea.vmem %s0, 1268
  %v1411 = vld [vmem:[%s1410] sm:$0xf]
  %v1412 = vunpack.c.l.bf16 %v1411
  %v1413 = vunpack.c.h.bf16 %v1411
  %s1414 = scalar_lea.vmem %s1, 308
  %s1415 = scalar_lea.vmem %s0, 788
  %v1416 = vld [vmem:[%s1415] sm:$0xf]
  %v1417 = vunpack.c.l.bf16 %v1416
  %v1418 = vunpack.c.h.bf16 %v1416
  %s1419 = scalar_lea.vmem %s1, 788
  %s1420 = scalar_lea.vmem %s0, 308
  %v1421 = vld [vmem:[%s1420] sm:$0xf]
  %v1422 = vunpack.c.l.bf16 %v1421
  %v1423 = vunpack.c.h.bf16 %v1421
  %s1424 = scalar_lea.vmem %s1, 1268
  %s1425 = scalar_lea.vmem %s0, 1108
  %v1426 = vld [vmem:[%s1425] sm:$0xf]
  %v1427 = vunpack.c.l.bf16 %v1426
  %v1428 = vunpack.c.h.bf16 %v1426
  %s1429 = scalar_lea.vmem %s1, 468
  %s1430 = scalar_lea.vmem %s0, 628
  %v1431 = vld [vmem:[%s1430] sm:$0xf]
  %v1432 = vunpack.c.l.bf16 %v1431
  %v1433 = vunpack.c.h.bf16 %v1431
  %s1434 = scalar_lea.vmem %s1, 948
  %s1435 = scalar_lea.vmem %s0, 148
  %v1436 = vld [vmem:[%s1435] sm:$0xf]
  %v1437 = vunpack.c.l.bf16 %v1436
  %v1438 = vunpack.c.h.bf16 %v1436
  %s1439 = scalar_lea.vmem %s1, 1428
  %s1440 = scalar_lea.vmem %s0, 1292
  %v1441 = vld [vmem:[%s1440] sm:$0xf]
  %v1442 = vunpack.c.l.bf16 %v1441
  %v1443 = vunpack.c.h.bf16 %v1441
  %s1444 = scalar_lea.vmem %s1, 12
  %s1446 = ssub.s32 0, 4
  %s1447 = scalar_lea.vmem %s1444, %s1446
  %v1448 = vpack.c.bf16 %v1442, %v1082
  %1449 = vst [vmem:[%s1447] sm:$0xff] %v1448
  %s1450 = scalar_lea.vmem %s0, 812
  %v1451 = vld [vmem:[%s1450] sm:$0xf]
  %v1452 = vunpack.c.l.bf16 %v1451
  %v1453 = vunpack.c.h.bf16 %v1451
  %s1454 = scalar_lea.vmem %s1, 492
  %s1456 = ssub.s32 0, 4
  %s1457 = scalar_lea.vmem %s1454, %s1456
  %v1458 = vpack.c.bf16 %v1452, %v1087
  %1459 = vst [vmem:[%s1457] sm:$0xff] %v1458
  %s1460 = scalar_lea.vmem %s0, 332
  %v1461 = vld [vmem:[%s1460] sm:$0xf]
  %v1462 = vunpack.c.l.bf16 %v1461
  %v1463 = vunpack.c.h.bf16 %v1461
  %s1464 = scalar_lea.vmem %s1, 972
  %s1466 = ssub.s32 0, 4
  %s1467 = scalar_lea.vmem %s1464, %s1466
  %v1468 = vpack.c.bf16 %v1462, %v1092
  %1469 = vst [vmem:[%s1467] sm:$0xff] %v1468
  %s1470 = scalar_lea.vmem %s0, 1132
  %v1471 = vld [vmem:[%s1470] sm:$0xf]
  %v1472 = vunpack.c.l.bf16 %v1471
  %v1473 = vunpack.c.h.bf16 %v1471
  %s1474 = scalar_lea.vmem %s1, 172
  %s1476 = ssub.s32 0, 4
  %s1477 = scalar_lea.vmem %s1474, %s1476
  %v1478 = vpack.c.bf16 %v1472, %v1097
  %1479 = vst [vmem:[%s1477] sm:$0xff] %v1478
  %s1480 = scalar_lea.vmem %s0, 652
  %v1481 = vld [vmem:[%s1480] sm:$0xf]
  %v1482 = vunpack.c.l.bf16 %v1481
  %v1483 = vunpack.c.h.bf16 %v1481
  %s1484 = scalar_lea.vmem %s1, 652
  %s1486 = ssub.s32 0, 4
  %s1487 = scalar_lea.vmem %s1484, %s1486
  %v1488 = vpack.c.bf16 %v1482, %v1102
  %1489 = vst [vmem:[%s1487] sm:$0xff] %v1488
  %s1490 = scalar_lea.vmem %s0, 172
  %v1491 = vld [vmem:[%s1490] sm:$0xf]
  %v1492 = vunpack.c.l.bf16 %v1491
  %v1493 = vunpack.c.h.bf16 %v1491
  %s1494 = scalar_lea.vmem %s1, 1132
  %s1496 = ssub.s32 0, 4
  %s1497 = scalar_lea.vmem %s1494, %s1496
  %v1498 = vpack.c.bf16 %v1492, %v1107
  %1499 = vst [vmem:[%s1497] sm:$0xff] %v1498
  %s1500 = scalar_lea.vmem %s0, 972
  %v1501 = vld [vmem:[%s1500] sm:$0xf]
  %v1502 = vunpack.c.l.bf16 %v1501
  %v1503 = vunpack.c.h.bf16 %v1501
  %s1504 = scalar_lea.vmem %s1, 332
  %s1506 = ssub.s32 0, 4
  %s1507 = scalar_lea.vmem %s1504, %s1506
  %v1508 = vpack.c.bf16 %v1502, %v1112
  %1509 = vst [vmem:[%s1507] sm:$0xff] %v1508
  %s1510 = scalar_lea.vmem %s0, 492
  %v1511 = vld [vmem:[%s1510] sm:$0xf]
  %v1512 = vunpack.c.l.bf16 %v1511
  %v1513 = vunpack.c.h.bf16 %v1511
  %s1514 = scalar_lea.vmem %s1, 812
  %s1516 = ssub.s32 0, 4
  %s1517 = scalar_lea.vmem %s1514, %s1516
  %v1518 = vpack.c.bf16 %v1512, %v1117
  %1519 = vst [vmem:[%s1517] sm:$0xff] %v1518
  %s1520 = scalar_lea.vmem %s0, 12
  %v1521 = vld [vmem:[%s1520] sm:$0xf]
  %v1522 = vunpack.c.l.bf16 %v1521
  %v1523 = vunpack.c.h.bf16 %v1521
  %s1524 = scalar_lea.vmem %s1, 1292
  %s1526 = ssub.s32 0, 4
  %s1527 = scalar_lea.vmem %s1524, %s1526
  %v1528 = vpack.c.bf16 %v1522, %v1122
  %1529 = vst [vmem:[%s1527] sm:$0xff] %v1528
  %s1530 = scalar_lea.vmem %s0, 1312
  %v1531 = vld [vmem:[%s1530] sm:$0xf]
  %v1532 = vunpack.c.l.bf16 %v1531
  %v1533 = vunpack.c.h.bf16 %v1531
  %s1534 = scalar_lea.vmem %s1, 32
  %s1536 = ssub.s32 0, 4
  %s1537 = scalar_lea.vmem %s1534, %s1536
  %v1538 = vpack.c.bf16 %v1532, %v1127
  %1539 = vst [vmem:[%s1537] sm:$0xff] %v1538
  %s1540 = scalar_lea.vmem %s0, 832
  %v1541 = vld [vmem:[%s1540] sm:$0xf]
  %v1542 = vunpack.c.l.bf16 %v1541
  %v1543 = vunpack.c.h.bf16 %v1541
  %s1544 = scalar_lea.vmem %s1, 512
  %s1546 = ssub.s32 0, 4
  %s1547 = scalar_lea.vmem %s1544, %s1546
  %v1548 = vpack.c.bf16 %v1542, %v1132
  %1549 = vst [vmem:[%s1547] sm:$0xff] %v1548
  %s1550 = scalar_lea.vmem %s0, 352
  %v1551 = vld [vmem:[%s1550] sm:$0xf]
  %v1552 = vunpack.c.l.bf16 %v1551
  %v1553 = vunpack.c.h.bf16 %v1551
  %s1554 = scalar_lea.vmem %s1, 992
  %s1556 = ssub.s32 0, 4
  %s1557 = scalar_lea.vmem %s1554, %s1556
  %v1558 = vpack.c.bf16 %v1552, %v1137
  %1559 = vst [vmem:[%s1557] sm:$0xff] %v1558
  %s1560 = scalar_lea.vmem %s0, 1152
  %v1561 = vld [vmem:[%s1560] sm:$0xf]
  %v1562 = vunpack.c.l.bf16 %v1561
  %v1563 = vunpack.c.h.bf16 %v1561
  %s1564 = scalar_lea.vmem %s1, 192
  %s1566 = ssub.s32 0, 4
  %s1567 = scalar_lea.vmem %s1564, %s1566
  %v1568 = vpack.c.bf16 %v1562, %v1142
  %1569 = vst [vmem:[%s1567] sm:$0xff] %v1568
  %s1570 = scalar_lea.vmem %s0, 672
  %v1571 = vld [vmem:[%s1570] sm:$0xf]
  %v1572 = vunpack.c.l.bf16 %v1571
  %v1573 = vunpack.c.h.bf16 %v1571
  %s1574 = scalar_lea.vmem %s1, 672
  %s1576 = ssub.s32 0, 4
  %s1577 = scalar_lea.vmem %s1574, %s1576
  %v1578 = vpack.c.bf16 %v1572, %v1147
  %1579 = vst [vmem:[%s1577] sm:$0xff] %v1578
  %s1580 = scalar_lea.vmem %s0, 192
  %v1581 = vld [vmem:[%s1580] sm:$0xf]
  %v1582 = vunpack.c.l.bf16 %v1581
  %v1583 = vunpack.c.h.bf16 %v1581
  %s1584 = scalar_lea.vmem %s1, 1152
  %s1586 = ssub.s32 0, 4
  %s1587 = scalar_lea.vmem %s1584, %s1586
  %v1588 = vpack.c.bf16 %v1582, %v1152
  %1589 = vst [vmem:[%s1587] sm:$0xff] %v1588
  %s1590 = scalar_lea.vmem %s0, 992
  %v1591 = vld [vmem:[%s1590] sm:$0xf]
  %v1592 = vunpack.c.l.bf16 %v1591
  %v1593 = vunpack.c.h.bf16 %v1591
  %s1594 = scalar_lea.vmem %s1, 352
  %s1596 = ssub.s32 0, 4
  %s1597 = scalar_lea.vmem %s1594, %s1596
  %v1598 = vpack.c.bf16 %v1592, %v1157
  %1599 = vst [vmem:[%s1597] sm:$0xff] %v1598
  %s1600 = scalar_lea.vmem %s0, 512
  %v1601 = vld [vmem:[%s1600] sm:$0xf]
  %v1602 = vunpack.c.l.bf16 %v1601
  %v1603 = vunpack.c.h.bf16 %v1601
  %s1604 = scalar_lea.vmem %s1, 832
  %s1606 = ssub.s32 0, 4
  %s1607 = scalar_lea.vmem %s1604, %s1606
  %v1608 = vpack.c.bf16 %v1602, %v1162
  %1609 = vst [vmem:[%s1607] sm:$0xff] %v1608
  %s1610 = scalar_lea.vmem %s0, 32
  %v1611 = vld [vmem:[%s1610] sm:$0xf]
  %v1612 = vunpack.c.l.bf16 %v1611
  %v1613 = vunpack.c.h.bf16 %v1611
  %s1614 = scalar_lea.vmem %s1, 1312
  %s1616 = ssub.s32 0, 4
  %s1617 = scalar_lea.vmem %s1614, %s1616
  %v1618 = vpack.c.bf16 %v1612, %v1167
  %1619 = vst [vmem:[%s1617] sm:$0xff] %v1618
  %s1620 = scalar_lea.vmem %s0, 1332
  %v1621 = vld [vmem:[%s1620] sm:$0xf]
  %v1622 = vunpack.c.l.bf16 %v1621
  %v1623 = vunpack.c.h.bf16 %v1621
  %s1624 = scalar_lea.vmem %s1, 52
  %s1626 = ssub.s32 0, 4
  %s1627 = scalar_lea.vmem %s1624, %s1626
  %v1628 = vpack.c.bf16 %v1622, %v1172
  %1629 = vst [vmem:[%s1627] sm:$0xff] %v1628
  %s1630 = scalar_lea.vmem %s0, 852
  %v1631 = vld [vmem:[%s1630] sm:$0xf]
  %v1632 = vunpack.c.l.bf16 %v1631
  %v1633 = vunpack.c.h.bf16 %v1631
  %s1634 = scalar_lea.vmem %s1, 532
  %s1636 = ssub.s32 0, 4
  %s1637 = scalar_lea.vmem %s1634, %s1636
  %v1638 = vpack.c.bf16 %v1632, %v1177
  %1639 = vst [vmem:[%s1637] sm:$0xff] %v1638
  %s1640 = scalar_lea.vmem %s0, 372
  %v1641 = vld [vmem:[%s1640] sm:$0xf]
  %v1642 = vunpack.c.l.bf16 %v1641
  %v1643 = vunpack.c.h.bf16 %v1641
  %s1644 = scalar_lea.vmem %s1, 1012
  %s1646 = ssub.s32 0, 4
  %s1647 = scalar_lea.vmem %s1644, %s1646
  %v1648 = vpack.c.bf16 %v1642, %v1182
  %1649 = vst [vmem:[%s1647] sm:$0xff] %v1648
  %s1650 = scalar_lea.vmem %s0, 1172
  %v1651 = vld [vmem:[%s1650] sm:$0xf]
  %v1652 = vunpack.c.l.bf16 %v1651
  %v1653 = vunpack.c.h.bf16 %v1651
  %s1654 = scalar_lea.vmem %s1, 212
  %s1656 = ssub.s32 0, 4
  %s1657 = scalar_lea.vmem %s1654, %s1656
  %v1658 = vpack.c.bf16 %v1652, %v1187
  %1659 = vst [vmem:[%s1657] sm:$0xff] %v1658
  %s1660 = scalar_lea.vmem %s0, 692
  %v1661 = vld [vmem:[%s1660] sm:$0xf]
  %v1662 = vunpack.c.l.bf16 %v1661
  %v1663 = vunpack.c.h.bf16 %v1661
  %s1664 = scalar_lea.vmem %s1, 692
  %s1666 = ssub.s32 0, 4
  %s1667 = scalar_lea.vmem %s1664, %s1666
  %v1668 = vpack.c.bf16 %v1662, %v1192
  %1669 = vst [vmem:[%s1667] sm:$0xff] %v1668
  %s1670 = scalar_lea.vmem %s0, 212
  %v1671 = vld [vmem:[%s1670] sm:$0xf]
  %v1672 = vunpack.c.l.bf16 %v1671
  %v1673 = vunpack.c.h.bf16 %v1671
  %s1674 = scalar_lea.vmem %s1, 1172
  %s1676 = ssub.s32 0, 4
  %s1677 = scalar_lea.vmem %s1674, %s1676
  %v1678 = vpack.c.bf16 %v1672, %v1197
  %1679 = vst [vmem:[%s1677] sm:$0xff] %v1678
  %s1680 = scalar_lea.vmem %s0, 1012
  %v1681 = vld [vmem:[%s1680] sm:$0xf]
  %v1682 = vunpack.c.l.bf16 %v1681
  %v1683 = vunpack.c.h.bf16 %v1681
  %s1684 = scalar_lea.vmem %s1, 372
  %s1686 = ssub.s32 0, 4
  %s1687 = scalar_lea.vmem %s1684, %s1686
  %v1688 = vpack.c.bf16 %v1682, %v1202
  %1689 = vst [vmem:[%s1687] sm:$0xff] %v1688
  %s1690 = scalar_lea.vmem %s0, 532
  %v1691 = vld [vmem:[%s1690] sm:$0xf]
  %v1692 = vunpack.c.l.bf16 %v1691
  %v1693 = vunpack.c.h.bf16 %v1691
  %s1694 = scalar_lea.vmem %s1, 852
  %s1696 = ssub.s32 0, 4
  %s1697 = scalar_lea.vmem %s1694, %s1696
  %v1698 = vpack.c.bf16 %v1692, %v1207
  %1699 = vst [vmem:[%s1697] sm:$0xff] %v1698
  %s1700 = scalar_lea.vmem %s0, 52
  %v1701 = vld [vmem:[%s1700] sm:$0xf]
  %v1702 = vunpack.c.l.bf16 %v1701
  %v1703 = vunpack.c.h.bf16 %v1701
  %s1704 = scalar_lea.vmem %s1, 1332
  %s1706 = ssub.s32 0, 4
  %s1707 = scalar_lea.vmem %s1704, %s1706
  %v1708 = vpack.c.bf16 %v1702, %v1212
  %1709 = vst [vmem:[%s1707] sm:$0xff] %v1708
  %s1710 = scalar_lea.vmem %s0, 1352
  %v1711 = vld [vmem:[%s1710] sm:$0xf]
  %v1712 = vunpack.c.l.bf16 %v1711
  %v1713 = vunpack.c.h.bf16 %v1711
  %s1714 = scalar_lea.vmem %s1, 72
  %s1716 = ssub.s32 0, 4
  %s1717 = scalar_lea.vmem %s1714, %s1716
  %v1718 = vpack.c.bf16 %v1712, %v1217
  %1719 = vst [vmem:[%s1717] sm:$0xff] %v1718
  %s1720 = scalar_lea.vmem %s0, 872
  %v1721 = vld [vmem:[%s1720] sm:$0xf]
  %v1722 = vunpack.c.l.bf16 %v1721
  %v1723 = vunpack.c.h.bf16 %v1721
  %s1724 = scalar_lea.vmem %s1, 552
  %s1726 = ssub.s32 0, 4
  %s1727 = scalar_lea.vmem %s1724, %s1726
  %v1728 = vpack.c.bf16 %v1722, %v1222
  %1729 = vst [vmem:[%s1727] sm:$0xff] %v1728
  %s1730 = scalar_lea.vmem %s0, 392
  %v1731 = vld [vmem:[%s1730] sm:$0xf]
  %v1732 = vunpack.c.l.bf16 %v1731
  %v1733 = vunpack.c.h.bf16 %v1731
  %s1734 = scalar_lea.vmem %s1, 1032
  %s1736 = ssub.s32 0, 4
  %s1737 = scalar_lea.vmem %s1734, %s1736
  %v1738 = vpack.c.bf16 %v1732, %v1227
  %1739 = vst [vmem:[%s1737] sm:$0xff] %v1738
  %s1740 = scalar_lea.vmem %s0, 1192
  %v1741 = vld [vmem:[%s1740] sm:$0xf]
  %v1742 = vunpack.c.l.bf16 %v1741
  %v1743 = vunpack.c.h.bf16 %v1741
  %s1744 = scalar_lea.vmem %s1, 232
  %s1746 = ssub.s32 0, 4
  %s1747 = scalar_lea.vmem %s1744, %s1746
  %v1748 = vpack.c.bf16 %v1742, %v1232
  %1749 = vst [vmem:[%s1747] sm:$0xff] %v1748
  %s1750 = scalar_lea.vmem %s0, 712
  %v1751 = vld [vmem:[%s1750] sm:$0xf]
  %v1752 = vunpack.c.l.bf16 %v1751
  %v1753 = vunpack.c.h.bf16 %v1751
  %s1754 = scalar_lea.vmem %s1, 712
  %s1756 = ssub.s32 0, 4
  %s1757 = scalar_lea.vmem %s1754, %s1756
  %v1758 = vpack.c.bf16 %v1752, %v1237
  %1759 = vst [vmem:[%s1757] sm:$0xff] %v1758
  %s1760 = scalar_lea.vmem %s0, 232
  %v1761 = vld [vmem:[%s1760] sm:$0xf]
  %v1762 = vunpack.c.l.bf16 %v1761
  %v1763 = vunpack.c.h.bf16 %v1761
  %s1764 = scalar_lea.vmem %s1, 1192
  %s1766 = ssub.s32 0, 4
  %s1767 = scalar_lea.vmem %s1764, %s1766
  %v1768 = vpack.c.bf16 %v1762, %v1242
  %1769 = vst [vmem:[%s1767] sm:$0xff] %v1768
  %s1770 = scalar_lea.vmem %s0, 1032
  %v1771 = vld [vmem:[%s1770] sm:$0xf]
  %v1772 = vunpack.c.l.bf16 %v1771
  %v1773 = vunpack.c.h.bf16 %v1771
  %s1774 = scalar_lea.vmem %s1, 392
  %s1776 = ssub.s32 0, 4
  %s1777 = scalar_lea.vmem %s1774, %s1776
  %v1778 = vpack.c.bf16 %v1772, %v1247
  %1779 = vst [vmem:[%s1777] sm:$0xff] %v1778
  %s1780 = scalar_lea.vmem %s0, 552
  %v1781 = vld [vmem:[%s1780] sm:$0xf]
  %v1782 = vunpack.c.l.bf16 %v1781
  %v1783 = vunpack.c.h.bf16 %v1781
  %s1784 = scalar_lea.vmem %s1, 872
  %s1786 = ssub.s32 0, 4
  %s1787 = scalar_lea.vmem %s1784, %s1786
  %v1788 = vpack.c.bf16 %v1782, %v1252
  %1789 = vst [vmem:[%s1787] sm:$0xff] %v1788
  %s1790 = scalar_lea.vmem %s0, 72
  %v1791 = vld [vmem:[%s1790] sm:$0xf]
  %v1792 = vunpack.c.l.bf16 %v1791
  %v1793 = vunpack.c.h.bf16 %v1791
  %s1794 = scalar_lea.vmem %s1, 1352
  %s1796 = ssub.s32 0, 4
  %s1797 = scalar_lea.vmem %s1794, %s1796
  %v1798 = vpack.c.bf16 %v1792, %v1257
  %1799 = vst [vmem:[%s1797] sm:$0xff] %v1798
  %s1800 = scalar_lea.vmem %s0, 1372
  %v1801 = vld [vmem:[%s1800] sm:$0xf]
  %v1802 = vunpack.c.l.bf16 %v1801
  %v1803 = vunpack.c.h.bf16 %v1801
  %s1804 = scalar_lea.vmem %s1, 92
  %s1806 = ssub.s32 0, 4
  %s1807 = scalar_lea.vmem %s1804, %s1806
  %v1808 = vpack.c.bf16 %v1802, %v1262
  %1809 = vst [vmem:[%s1807] sm:$0xff] %v1808
  %s1810 = scalar_lea.vmem %s0, 892
  %v1811 = vld [vmem:[%s1810] sm:$0xf]
  %v1812 = vunpack.c.l.bf16 %v1811
  %v1813 = vunpack.c.h.bf16 %v1811
  %s1814 = scalar_lea.vmem %s1, 572
  %s1816 = ssub.s32 0, 4
  %s1817 = scalar_lea.vmem %s1814, %s1816
  %v1818 = vpack.c.bf16 %v1812, %v1267
  %1819 = vst [vmem:[%s1817] sm:$0xff] %v1818
  %s1820 = scalar_lea.vmem %s0, 412
  %v1821 = vld [vmem:[%s1820] sm:$0xf]
  %v1822 = vunpack.c.l.bf16 %v1821
  %v1823 = vunpack.c.h.bf16 %v1821
  %s1824 = scalar_lea.vmem %s1, 1052
  %s1826 = ssub.s32 0, 4
  %s1827 = scalar_lea.vmem %s1824, %s1826
  %v1828 = vpack.c.bf16 %v1822, %v1272
  %1829 = vst [vmem:[%s1827] sm:$0xff] %v1828
  %s1830 = scalar_lea.vmem %s0, 1212
  %v1831 = vld [vmem:[%s1830] sm:$0xf]
  %v1832 = vunpack.c.l.bf16 %v1831
  %v1833 = vunpack.c.h.bf16 %v1831
  %s1834 = scalar_lea.vmem %s1, 252
  %s1836 = ssub.s32 0, 4
  %s1837 = scalar_lea.vmem %s1834, %s1836
  %v1838 = vpack.c.bf16 %v1832, %v1277
  %1839 = vst [vmem:[%s1837] sm:$0xff] %v1838
  %s1840 = scalar_lea.vmem %s0, 732
  %v1841 = vld [vmem:[%s1840] sm:$0xf]
  %v1842 = vunpack.c.l.bf16 %v1841
  %v1843 = vunpack.c.h.bf16 %v1841
  %s1844 = scalar_lea.vmem %s1, 732
  %s1846 = ssub.s32 0, 4
  %s1847 = scalar_lea.vmem %s1844, %s1846
  %v1848 = vpack.c.bf16 %v1842, %v1282
  %1849 = vst [vmem:[%s1847] sm:$0xff] %v1848
  %s1850 = scalar_lea.vmem %s0, 252
  %v1851 = vld [vmem:[%s1850] sm:$0xf]
  %v1852 = vunpack.c.l.bf16 %v1851
  %v1853 = vunpack.c.h.bf16 %v1851
  %s1854 = scalar_lea.vmem %s1, 1212
  %s1856 = ssub.s32 0, 4
  %s1857 = scalar_lea.vmem %s1854, %s1856
  %v1858 = vpack.c.bf16 %v1852, %v1287
  %1859 = vst [vmem:[%s1857] sm:$0xff] %v1858
  %s1860 = scalar_lea.vmem %s0, 1052
  %v1861 = vld [vmem:[%s1860] sm:$0xf]
  %v1862 = vunpack.c.l.bf16 %v1861
  %v1863 = vunpack.c.h.bf16 %v1861
  %s1864 = scalar_lea.vmem %s1, 412
  %s1866 = ssub.s32 0, 4
  %s1867 = scalar_lea.vmem %s1864, %s1866
  %v1868 = vpack.c.bf16 %v1862, %v1292
  %1869 = vst [vmem:[%s1867] sm:$0xff] %v1868
  %s1870 = scalar_lea.vmem %s0, 572
  %v1871 = vld [vmem:[%s1870] sm:$0xf]
  %v1872 = vunpack.c.l.bf16 %v1871
  %v1873 = vunpack.c.h.bf16 %v1871
  %s1874 = scalar_lea.vmem %s1, 892
  %s1876 = ssub.s32 0, 4
  %s1877 = scalar_lea.vmem %s1874, %s1876
  %v1878 = vpack.c.bf16 %v1872, %v1297
  %1879 = vst [vmem:[%s1877] sm:$0xff] %v1878
  %s1880 = scalar_lea.vmem %s0, 92
  %v1881 = vld [vmem:[%s1880] sm:$0xf]
  %v1882 = vunpack.c.l.bf16 %v1881
  %v1883 = vunpack.c.h.bf16 %v1881
  %s1884 = scalar_lea.vmem %s1, 1372
  %s1886 = ssub.s32 0, 4
  %s1887 = scalar_lea.vmem %s1884, %s1886
  %v1888 = vpack.c.bf16 %v1882, %v1302
  %1889 = vst [vmem:[%s1887] sm:$0xff] %v1888
  %s1890 = scalar_lea.vmem %s0, 1392
  %v1891 = vld [vmem:[%s1890] sm:$0xf]
  %v1892 = vunpack.c.l.bf16 %v1891
  %v1893 = vunpack.c.h.bf16 %v1891
  %s1894 = scalar_lea.vmem %s1, 112
  %s1896 = ssub.s32 0, 4
  %s1897 = scalar_lea.vmem %s1894, %s1896
  %v1898 = vpack.c.bf16 %v1892, %v1307
  %1899 = vst [vmem:[%s1897] sm:$0xff] %v1898
  %s1900 = scalar_lea.vmem %s0, 912
  %v1901 = vld [vmem:[%s1900] sm:$0xf]
  %v1902 = vunpack.c.l.bf16 %v1901
  %v1903 = vunpack.c.h.bf16 %v1901
  %s1904 = scalar_lea.vmem %s1, 592
  %s1906 = ssub.s32 0, 4
  %s1907 = scalar_lea.vmem %s1904, %s1906
  %v1908 = vpack.c.bf16 %v1902, %v1312
  %1909 = vst [vmem:[%s1907] sm:$0xff] %v1908
  %s1910 = scalar_lea.vmem %s0, 432
  %v1911 = vld [vmem:[%s1910] sm:$0xf]
  %v1912 = vunpack.c.l.bf16 %v1911
  %v1913 = vunpack.c.h.bf16 %v1911
  %s1914 = scalar_lea.vmem %s1, 1072
  %s1916 = ssub.s32 0, 4
  %s1917 = scalar_lea.vmem %s1914, %s1916
  %v1918 = vpack.c.bf16 %v1912, %v1317
  %1919 = vst [vmem:[%s1917] sm:$0xff] %v1918
  %s1920 = scalar_lea.vmem %s0, 1232
  %v1921 = vld [vmem:[%s1920] sm:$0xf]
  %v1922 = vunpack.c.l.bf16 %v1921
  %v1923 = vunpack.c.h.bf16 %v1921
  %s1924 = scalar_lea.vmem %s1, 272
  %s1926 = ssub.s32 0, 4
  %s1927 = scalar_lea.vmem %s1924, %s1926
  %v1928 = vpack.c.bf16 %v1922, %v1322
  %1929 = vst [vmem:[%s1927] sm:$0xff] %v1928
  %s1930 = scalar_lea.vmem %s0, 752
  %v1931 = vld [vmem:[%s1930] sm:$0xf]
  %v1932 = vunpack.c.l.bf16 %v1931
  %v1933 = vunpack.c.h.bf16 %v1931
  %s1934 = scalar_lea.vmem %s1, 752
  %s1936 = ssub.s32 0, 4
  %s1937 = scalar_lea.vmem %s1934, %s1936
  %v1938 = vpack.c.bf16 %v1932, %v1327
  %1939 = vst [vmem:[%s1937] sm:$0xff] %v1938
  %s1940 = scalar_lea.vmem %s0, 272
  %v1941 = vld [vmem:[%s1940] sm:$0xf]
  %v1942 = vunpack.c.l.bf16 %v1941
  %v1943 = vunpack.c.h.bf16 %v1941
  %s1944 = scalar_lea.vmem %s1, 1232
  %s1946 = ssub.s32 0, 4
  %s1947 = scalar_lea.vmem %s1944, %s1946
  %v1948 = vpack.c.bf16 %v1942, %v1332
  %1949 = vst [vmem:[%s1947] sm:$0xff] %v1948
  %s1950 = scalar_lea.vmem %s0, 1072
  %v1951 = vld [vmem:[%s1950] sm:$0xf]
  %v1952 = vunpack.c.l.bf16 %v1951
  %v1953 = vunpack.c.h.bf16 %v1951
  %s1954 = scalar_lea.vmem %s1, 432
  %s1956 = ssub.s32 0, 4
  %s1957 = scalar_lea.vmem %s1954, %s1956
  %v1958 = vpack.c.bf16 %v1952, %v1337
  %1959 = vst [vmem:[%s1957] sm:$0xff] %v1958
  %s1960 = scalar_lea.vmem %s0, 592
  %v1961 = vld [vmem:[%s1960] sm:$0xf]
  %v1962 = vunpack.c.l.bf16 %v1961
  %v1963 = vunpack.c.h.bf16 %v1961
  %s1964 = scalar_lea.vmem %s1, 912
  %s1966 = ssub.s32 0, 4
  %s1967 = scalar_lea.vmem %s1964, %s1966
  %v1968 = vpack.c.bf16 %v1962, %v1342
  %1969 = vst [vmem:[%s1967] sm:$0xff] %v1968
  %s1970 = scalar_lea.vmem %s0, 112
  %v1971 = vld [vmem:[%s1970] sm:$0xf]
  %v1972 = vunpack.c.l.bf16 %v1971
  %v1973 = vunpack.c.h.bf16 %v1971
  %s1974 = scalar_lea.vmem %s1, 1392
  %s1976 = ssub.s32 0, 4
  %s1977 = scalar_lea.vmem %s1974, %s1976
  %v1978 = vpack.c.bf16 %v1972, %v1347
  %1979 = vst [vmem:[%s1977] sm:$0xff] %v1978
  %s1980 = scalar_lea.vmem %s0, 1412
  %v1981 = vld [vmem:[%s1980] sm:$0xf]
  %v1982 = vunpack.c.l.bf16 %v1981
  %v1983 = vunpack.c.h.bf16 %v1981
  %s1984 = scalar_lea.vmem %s1, 132
  %s1986 = ssub.s32 0, 4
  %s1987 = scalar_lea.vmem %s1984, %s1986
  %v1988 = vpack.c.bf16 %v1982, %v1352
  %1989 = vst [vmem:[%s1987] sm:$0xff] %v1988
  %s1990 = scalar_lea.vmem %s0, 932
  %v1991 = vld [vmem:[%s1990] sm:$0xf]
  %v1992 = vunpack.c.l.bf16 %v1991
  %v1993 = vunpack.c.h.bf16 %v1991
  %s1994 = scalar_lea.vmem %s1, 612
  %s1996 = ssub.s32 0, 4
  %s1997 = scalar_lea.vmem %s1994, %s1996
  %v1998 = vpack.c.bf16 %v1992, %v1357
  %1999 = vst [vmem:[%s1997] sm:$0xff] %v1998
  %s2000 = scalar_lea.vmem %s0, 452
  %v2001 = vld [vmem:[%s2000] sm:$0xf]
  %v2002 = vunpack.c.l.bf16 %v2001
  %v2003 = vunpack.c.h.bf16 %v2001
  %s2004 = scalar_lea.vmem %s1, 1092
  %s2006 = ssub.s32 0, 4
  %s2007 = scalar_lea.vmem %s2004, %s2006
  %v2008 = vpack.c.bf16 %v2002, %v1362
  %2009 = vst [vmem:[%s2007] sm:$0xff] %v2008
  %s2010 = scalar_lea.vmem %s0, 1252
  %v2011 = vld [vmem:[%s2010] sm:$0xf]
  %v2012 = vunpack.c.l.bf16 %v2011
  %v2013 = vunpack.c.h.bf16 %v2011
  %s2014 = scalar_lea.vmem %s1, 292
  %s2016 = ssub.s32 0, 4
  %s2017 = scalar_lea.vmem %s2014, %s2016
  %v2018 = vpack.c.bf16 %v2012, %v1367
  %2019 = vst [vmem:[%s2017] sm:$0xff] %v2018
  %s2020 = scalar_lea.vmem %s0, 772
  %v2021 = vld [vmem:[%s2020] sm:$0xf]
  %v2022 = vunpack.c.l.bf16 %v2021
  %v2023 = vunpack.c.h.bf16 %v2021
  %s2024 = scalar_lea.vmem %s1, 772
  %s2026 = ssub.s32 0, 4
  %s2027 = scalar_lea.vmem %s2024, %s2026
  %v2028 = vpack.c.bf16 %v2022, %v1372
  %2029 = vst [vmem:[%s2027] sm:$0xff] %v2028
  %s2030 = scalar_lea.vmem %s0, 292
  %v2031 = vld [vmem:[%s2030] sm:$0xf]
  %v2032 = vunpack.c.l.bf16 %v2031
  %v2033 = vunpack.c.h.bf16 %v2031
  %s2034 = scalar_lea.vmem %s1, 1252
  %s2036 = ssub.s32 0, 4
  %s2037 = scalar_lea.vmem %s2034, %s2036
  %v2038 = vpack.c.bf16 %v2032, %v1377
  %2039 = vst [vmem:[%s2037] sm:$0xff] %v2038
  %s2040 = scalar_lea.vmem %s0, 1092
  %v2041 = vld [vmem:[%s2040] sm:$0xf]
  %v2042 = vunpack.c.l.bf16 %v2041
  %v2043 = vunpack.c.h.bf16 %v2041
  %s2044 = scalar_lea.vmem %s1, 452
  %s2046 = ssub.s32 0, 4
  %s2047 = scalar_lea.vmem %s2044, %s2046
  %v2048 = vpack.c.bf16 %v2042, %v1382
  %2049 = vst [vmem:[%s2047] sm:$0xff] %v2048
  %s2050 = scalar_lea.vmem %s0, 612
  %v2051 = vld [vmem:[%s2050] sm:$0xf]
  %v2052 = vunpack.c.l.bf16 %v2051
  %v2053 = vunpack.c.h.bf16 %v2051
  %s2054 = scalar_lea.vmem %s1, 932
  %s2056 = ssub.s32 0, 4
  %s2057 = scalar_lea.vmem %s2054, %s2056
  %v2058 = vpack.c.bf16 %v2052, %v1387
  %2059 = vst [vmem:[%s2057] sm:$0xff] %v2058
  %s2060 = scalar_lea.vmem %s0, 132
  %v2061 = vld [vmem:[%s2060] sm:$0xf]
  %v2062 = vunpack.c.l.bf16 %v2061
  %v2063 = vunpack.c.h.bf16 %v2061
  %s2064 = scalar_lea.vmem %s1, 1412
  %s2066 = ssub.s32 0, 4
  %s2067 = scalar_lea.vmem %s2064, %s2066
  %v2068 = vpack.c.bf16 %v2062, %v1392
  %2069 = vst [vmem:[%s2067] sm:$0xff] %v2068
  %s2070 = scalar_lea.vmem %s0, 1432
  %v2071 = vld [vmem:[%s2070] sm:$0xf]
  %v2072 = vunpack.c.l.bf16 %v2071
  %v2073 = vunpack.c.h.bf16 %v2071
  %s2074 = scalar_lea.vmem %s1, 152
  %s2076 = ssub.s32 0, 4
  %s2077 = scalar_lea.vmem %s2074, %s2076
  %v2078 = vpack.c.bf16 %v2072, %v1397
  %2079 = vst [vmem:[%s2077] sm:$0xff] %v2078
  %s2080 = scalar_lea.vmem %s0, 952
  %v2081 = vld [vmem:[%s2080] sm:$0xf]
  %v2082 = vunpack.c.l.bf16 %v2081
  %v2083 = vunpack.c.h.bf16 %v2081
  %s2084 = scalar_lea.vmem %s1, 632
  %s2086 = ssub.s32 0, 4
  %s2087 = scalar_lea.vmem %s2084, %s2086
  %v2088 = vpack.c.bf16 %v2082, %v1402
  %2089 = vst [vmem:[%s2087] sm:$0xff] %v2088
  %s2090 = scalar_lea.vmem %s0, 472
  %v2091 = vld [vmem:[%s2090] sm:$0xf]
  %v2092 = vunpack.c.l.bf16 %v2091
  %v2093 = vunpack.c.h.bf16 %v2091
  %s2094 = scalar_lea.vmem %s1, 1112
  %s2096 = ssub.s32 0, 4
  %s2097 = scalar_lea.vmem %s2094, %s2096
  %v2098 = vpack.c.bf16 %v2092, %v1407
  %2099 = vst [vmem:[%s2097] sm:$0xff] %v2098
  %s2100 = scalar_lea.vmem %s0, 1272
  %v2101 = vld [vmem:[%s2100] sm:$0xf]
  %v2102 = vunpack.c.l.bf16 %v2101
  %v2103 = vunpack.c.h.bf16 %v2101
  %s2104 = scalar_lea.vmem %s1, 312
  %s2106 = ssub.s32 0, 4
  %s2107 = scalar_lea.vmem %s2104, %s2106
  %v2108 = vpack.c.bf16 %v2102, %v1412
  %2109 = vst [vmem:[%s2107] sm:$0xff] %v2108
  %s2110 = scalar_lea.vmem %s0, 792
  %v2111 = vld [vmem:[%s2110] sm:$0xf]
  %v2112 = vunpack.c.l.bf16 %v2111
  %v2113 = vunpack.c.h.bf16 %v2111
  %s2114 = scalar_lea.vmem %s1, 792
  %s2116 = ssub.s32 0, 4
  %s2117 = scalar_lea.vmem %s2114, %s2116
  %v2118 = vpack.c.bf16 %v2112, %v1417
  %2119 = vst [vmem:[%s2117] sm:$0xff] %v2118
  %s2120 = scalar_lea.vmem %s0, 312
  %v2121 = vld [vmem:[%s2120] sm:$0xf]
  %v2122 = vunpack.c.l.bf16 %v2121
  %v2123 = vunpack.c.h.bf16 %v2121
  %s2124 = scalar_lea.vmem %s1, 1272
  %s2126 = ssub.s32 0, 4
  %s2127 = scalar_lea.vmem %s2124, %s2126
  %v2128 = vpack.c.bf16 %v2122, %v1422
  %2129 = vst [vmem:[%s2127] sm:$0xff] %v2128
  %s2130 = scalar_lea.vmem %s0, 1112
  %v2131 = vld [vmem:[%s2130] sm:$0xf]
  %v2132 = vunpack.c.l.bf16 %v2131
  %v2133 = vunpack.c.h.bf16 %v2131
  %s2134 = scalar_lea.vmem %s1, 472
  %s2136 = ssub.s32 0, 4
  %s2137 = scalar_lea.vmem %s2134, %s2136
  %v2138 = vpack.c.bf16 %v2132, %v1427
  %2139 = vst [vmem:[%s2137] sm:$0xff] %v2138
  %s2140 = scalar_lea.vmem %s0, 632
  %v2141 = vld [vmem:[%s2140] sm:$0xf]
  %v2142 = vunpack.c.l.bf16 %v2141
  %v2143 = vunpack.c.h.bf16 %v2141
  %s2144 = scalar_lea.vmem %s1, 952
  %s2146 = ssub.s32 0, 4
  %s2147 = scalar_lea.vmem %s2144, %s2146
  %v2148 = vpack.c.bf16 %v2142, %v1432
  %2149 = vst [vmem:[%s2147] sm:$0xff] %v2148
  %s2150 = scalar_lea.vmem %s0, 152
  %v2151 = vld [vmem:[%s2150] sm:$0xf]
  %v2152 = vunpack.c.l.bf16 %v2151
  %v2153 = vunpack.c.h.bf16 %v2151
  %s2154 = scalar_lea.vmem %s1, 1432
  %s2156 = ssub.s32 0, 4
  %s2157 = scalar_lea.vmem %s2154, %s2156
  %v2158 = vpack.c.bf16 %v2152, %v1437
  %2159 = vst [vmem:[%s2157] sm:$0xff] %v2158
  %s2160 = scalar_lea.vmem %s0, 1296
  %v2161 = vld [vmem:[%s2160] sm:$0xf]
  %v2162 = vunpack.c.l.bf16 %v2161
  %v2163 = vunpack.c.h.bf16 %v2161
  %s2164 = scalar_lea.vmem %s1, 16
  %v2165 = vpack.c.bf16 0.0, %v2162
  %2166 = vst [vmem:[%s2164] sm:$0xf] %v2165
  %s2167 = scalar_lea.vmem %s0, 816
  %v2168 = vld [vmem:[%s2167] sm:$0xf]
  %v2169 = vunpack.c.l.bf16 %v2168
  %v2170 = vunpack.c.h.bf16 %v2168
  %s2171 = scalar_lea.vmem %s1, 496
  %v2172 = vpack.c.bf16 0.0, %v2169
  %2173 = vst [vmem:[%s2171] sm:$0xf] %v2172
  %s2174 = scalar_lea.vmem %s0, 336
  %v2175 = vld [vmem:[%s2174] sm:$0xf]
  %v2176 = vunpack.c.l.bf16 %v2175
  %v2177 = vunpack.c.h.bf16 %v2175
  %s2178 = scalar_lea.vmem %s1, 976
  %v2179 = vpack.c.bf16 0.0, %v2176
  %2180 = vst [vmem:[%s2178] sm:$0xf] %v2179
  %s2181 = scalar_lea.vmem %s0, 1136
  %v2182 = vld [vmem:[%s2181] sm:$0xf]
  %v2183 = vunpack.c.l.bf16 %v2182
  %v2184 = vunpack.c.h.bf16 %v2182
  %s2185 = scalar_lea.vmem %s1, 176
  %v2186 = vpack.c.bf16 0.0, %v2183
  %2187 = vst [vmem:[%s2185] sm:$0xf] %v2186
  %s2188 = scalar_lea.vmem %s0, 656
  %v2189 = vld [vmem:[%s2188] sm:$0xf]
  %v2190 = vunpack.c.l.bf16 %v2189
  %v2191 = vunpack.c.h.bf16 %v2189
  %s2192 = scalar_lea.vmem %s1, 656
  %v2193 = vpack.c.bf16 0.0, %v2190
  %2194 = vst [vmem:[%s2192] sm:$0xf] %v2193
  %s2195 = scalar_lea.vmem %s0, 176
  %v2196 = vld [vmem:[%s2195] sm:$0xf]
  %v2197 = vunpack.c.l.bf16 %v2196
  %v2198 = vunpack.c.h.bf16 %v2196
  %s2199 = scalar_lea.vmem %s1, 1136
  %v2200 = vpack.c.bf16 0.0, %v2197
  %2201 = vst [vmem:[%s2199] sm:$0xf] %v2200
  %s2202 = scalar_lea.vmem %s0, 976
  %v2203 = vld [vmem:[%s2202] sm:$0xf]
  %v2204 = vunpack.c.l.bf16 %v2203
  %v2205 = vunpack.c.h.bf16 %v2203
  %s2206 = scalar_lea.vmem %s1, 336
  %v2207 = vpack.c.bf16 0.0, %v2204
  %2208 = vst [vmem:[%s2206] sm:$0xf] %v2207
  %s2209 = scalar_lea.vmem %s0, 496
  %v2210 = vld [vmem:[%s2209] sm:$0xf]
  %v2211 = vunpack.c.l.bf16 %v2210
  %v2212 = vunpack.c.h.bf16 %v2210
  %s2213 = scalar_lea.vmem %s1, 816
  %v2214 = vpack.c.bf16 0.0, %v2211
  %2215 = vst [vmem:[%s2213] sm:$0xf] %v2214
  %s2216 = scalar_lea.vmem %s0, 16
  %v2217 = vld [vmem:[%s2216] sm:$0xf]
  %v2218 = vunpack.c.l.bf16 %v2217
  %v2219 = vunpack.c.h.bf16 %v2217
  %s2220 = scalar_lea.vmem %s1, 1296
  %v2221 = vpack.c.bf16 0.0, %v2218
  %2222 = vst [vmem:[%s2220] sm:$0xf] %v2221
  %s2223 = scalar_lea.vmem %s0, 1316
  %v2224 = vld [vmem:[%s2223] sm:$0xf]
  %v2225 = vunpack.c.l.bf16 %v2224
  %v2226 = vunpack.c.h.bf16 %v2224
  %s2227 = scalar_lea.vmem %s1, 36
  %v2228 = vpack.c.bf16 0.0, %v2225
  %2229 = vst [vmem:[%s2227] sm:$0xf] %v2228
  %s2230 = scalar_lea.vmem %s0, 836
  %v2231 = vld [vmem:[%s2230] sm:$0xf]
  %v2232 = vunpack.c.l.bf16 %v2231
  %v2233 = vunpack.c.h.bf16 %v2231
  %s2234 = scalar_lea.vmem %s1, 516
  %v2235 = vpack.c.bf16 0.0, %v2232
  %2236 = vst [vmem:[%s2234] sm:$0xf] %v2235
  %s2237 = scalar_lea.vmem %s0, 356
  %v2238 = vld [vmem:[%s2237] sm:$0xf]
  %v2239 = vunpack.c.l.bf16 %v2238
  %v2240 = vunpack.c.h.bf16 %v2238
  %s2241 = scalar_lea.vmem %s1, 996
  %v2242 = vpack.c.bf16 0.0, %v2239
  %2243 = vst [vmem:[%s2241] sm:$0xf] %v2242
  %s2244 = scalar_lea.vmem %s0, 1156
  %v2245 = vld [vmem:[%s2244] sm:$0xf]
  %v2246 = vunpack.c.l.bf16 %v2245
  %v2247 = vunpack.c.h.bf16 %v2245
  %s2248 = scalar_lea.vmem %s1, 196
  %v2249 = vpack.c.bf16 0.0, %v2246
  %2250 = vst [vmem:[%s2248] sm:$0xf] %v2249
  %s2251 = scalar_lea.vmem %s0, 676
  %v2252 = vld [vmem:[%s2251] sm:$0xf]
  %v2253 = vunpack.c.l.bf16 %v2252
  %v2254 = vunpack.c.h.bf16 %v2252
  %s2255 = scalar_lea.vmem %s1, 676
  %v2256 = vpack.c.bf16 0.0, %v2253
  %2257 = vst [vmem:[%s2255] sm:$0xf] %v2256
  %s2258 = scalar_lea.vmem %s0, 196
  %v2259 = vld [vmem:[%s2258] sm:$0xf]
  %v2260 = vunpack.c.l.bf16 %v2259
  %v2261 = vunpack.c.h.bf16 %v2259
  %s2262 = scalar_lea.vmem %s1, 1156
  %v2263 = vpack.c.bf16 0.0, %v2260
  %2264 = vst [vmem:[%s2262] sm:$0xf] %v2263
  %s2265 = scalar_lea.vmem %s0, 996
  %v2266 = vld [vmem:[%s2265] sm:$0xf]
  %v2267 = vunpack.c.l.bf16 %v2266
  %v2268 = vunpack.c.h.bf16 %v2266
  %s2269 = scalar_lea.vmem %s1, 356
  %v2270 = vpack.c.bf16 0.0, %v2267
  %2271 = vst [vmem:[%s2269] sm:$0xf] %v2270
  %s2272 = scalar_lea.vmem %s0, 516
  %v2273 = vld [vmem:[%s2272] sm:$0xf]
  %v2274 = vunpack.c.l.bf16 %v2273
  %v2275 = vunpack.c.h.bf16 %v2273
  %s2276 = scalar_lea.vmem %s1, 836
  %v2277 = vpack.c.bf16 0.0, %v2274
  %2278 = vst [vmem:[%s2276] sm:$0xf] %v2277
  %s2279 = scalar_lea.vmem %s0, 36
  %v2280 = vld [vmem:[%s2279] sm:$0xf]
  %v2281 = vunpack.c.l.bf16 %v2280
  %v2282 = vunpack.c.h.bf16 %v2280
  %s2283 = scalar_lea.vmem %s1, 1316
  %v2284 = vpack.c.bf16 0.0, %v2281
  %2285 = vst [vmem:[%s2283] sm:$0xf] %v2284
  %s2286 = scalar_lea.vmem %s0, 1336
  %v2287 = vld [vmem:[%s2286] sm:$0xf]
  %v2288 = vunpack.c.l.bf16 %v2287
  %v2289 = vunpack.c.h.bf16 %v2287
  %s2290 = scalar_lea.vmem %s1, 56
  %v2291 = vpack.c.bf16 0.0, %v2288
  %2292 = vst [vmem:[%s2290] sm:$0xf] %v2291
  %s2293 = scalar_lea.vmem %s0, 856
  %v2294 = vld [vmem:[%s2293] sm:$0xf]
  %v2295 = vunpack.c.l.bf16 %v2294
  %v2296 = vunpack.c.h.bf16 %v2294
  %s2297 = scalar_lea.vmem %s1, 536
  %v2298 = vpack.c.bf16 0.0, %v2295
  %2299 = vst [vmem:[%s2297] sm:$0xf] %v2298
  %s2300 = scalar_lea.vmem %s0, 376
  %v2301 = vld [vmem:[%s2300] sm:$0xf]
  %v2302 = vunpack.c.l.bf16 %v2301
  %v2303 = vunpack.c.h.bf16 %v2301
  %s2304 = scalar_lea.vmem %s1, 1016
  %v2305 = vpack.c.bf16 0.0, %v2302
  %2306 = vst [vmem:[%s2304] sm:$0xf] %v2305
  %s2307 = scalar_lea.vmem %s0, 1176
  %v2308 = vld [vmem:[%s2307] sm:$0xf]
  %v2309 = vunpack.c.l.bf16 %v2308
  %v2310 = vunpack.c.h.bf16 %v2308
  %s2311 = scalar_lea.vmem %s1, 216
  %v2312 = vpack.c.bf16 0.0, %v2309
  %2313 = vst [vmem:[%s2311] sm:$0xf] %v2312
  %s2314 = scalar_lea.vmem %s0, 696
  %v2315 = vld [vmem:[%s2314] sm:$0xf]
  %v2316 = vunpack.c.l.bf16 %v2315
  %v2317 = vunpack.c.h.bf16 %v2315
  %s2318 = scalar_lea.vmem %s1, 696
  %v2319 = vpack.c.bf16 0.0, %v2316
  %2320 = vst [vmem:[%s2318] sm:$0xf] %v2319
  %s2321 = scalar_lea.vmem %s0, 216
  %v2322 = vld [vmem:[%s2321] sm:$0xf]
  %v2323 = vunpack.c.l.bf16 %v2322
  %v2324 = vunpack.c.h.bf16 %v2322
  %s2325 = scalar_lea.vmem %s1, 1176
  %v2326 = vpack.c.bf16 0.0, %v2323
  %2327 = vst [vmem:[%s2325] sm:$0xf] %v2326
  %s2328 = scalar_lea.vmem %s0, 1016
  %v2329 = vld [vmem:[%s2328] sm:$0xf]
  %v2330 = vunpack.c.l.bf16 %v2329
  %v2331 = vunpack.c.h.bf16 %v2329
  %s2332 = scalar_lea.vmem %s1, 376
  %v2333 = vpack.c.bf16 0.0, %v2330
  %2334 = vst [vmem:[%s2332] sm:$0xf] %v2333
  %s2335 = scalar_lea.vmem %s0, 536
  %v2336 = vld [vmem:[%s2335] sm:$0xf]
  %v2337 = vunpack.c.l.bf16 %v2336
  %v2338 = vunpack.c.h.bf16 %v2336
  %s2339 = scalar_lea.vmem %s1, 856
  %v2340 = vpack.c.bf16 0.0, %v2337
  %2341 = vst [vmem:[%s2339] sm:$0xf] %v2340
  %s2342 = scalar_lea.vmem %s0, 56
  %v2343 = vld [vmem:[%s2342] sm:$0xf]
  %v2344 = vunpack.c.l.bf16 %v2343
  %v2345 = vunpack.c.h.bf16 %v2343
  %s2346 = scalar_lea.vmem %s1, 1336
  %v2347 = vpack.c.bf16 0.0, %v2344
  %2348 = vst [vmem:[%s2346] sm:$0xf] %v2347
  %s2349 = scalar_lea.vmem %s0, 1356
  %v2350 = vld [vmem:[%s2349] sm:$0xf]
  %v2351 = vunpack.c.l.bf16 %v2350
  %v2352 = vunpack.c.h.bf16 %v2350
  %s2353 = scalar_lea.vmem %s1, 76
  %v2354 = vpack.c.bf16 0.0, %v2351
  %2355 = vst [vmem:[%s2353] sm:$0xf] %v2354
  %s2356 = scalar_lea.vmem %s0, 876
  %v2357 = vld [vmem:[%s2356] sm:$0xf]
  %v2358 = vunpack.c.l.bf16 %v2357
  %v2359 = vunpack.c.h.bf16 %v2357
  %s2360 = scalar_lea.vmem %s1, 556
  %v2361 = vpack.c.bf16 0.0, %v2358
  %2362 = vst [vmem:[%s2360] sm:$0xf] %v2361
  %s2363 = scalar_lea.vmem %s0, 396
  %v2364 = vld [vmem:[%s2363] sm:$0xf]
  %v2365 = vunpack.c.l.bf16 %v2364
  %v2366 = vunpack.c.h.bf16 %v2364
  %s2367 = scalar_lea.vmem %s1, 1036
  %v2368 = vpack.c.bf16 0.0, %v2365
  %2369 = vst [vmem:[%s2367] sm:$0xf] %v2368
  %s2370 = scalar_lea.vmem %s0, 1196
  %v2371 = vld [vmem:[%s2370] sm:$0xf]
  %v2372 = vunpack.c.l.bf16 %v2371
  %v2373 = vunpack.c.h.bf16 %v2371
  %s2374 = scalar_lea.vmem %s1, 236
  %v2375 = vpack.c.bf16 0.0, %v2372
  %2376 = vst [vmem:[%s2374] sm:$0xf] %v2375
  %s2377 = scalar_lea.vmem %s0, 716
  %v2378 = vld [vmem:[%s2377] sm:$0xf]
  %v2379 = vunpack.c.l.bf16 %v2378
  %v2380 = vunpack.c.h.bf16 %v2378
  %s2381 = scalar_lea.vmem %s1, 716
  %v2382 = vpack.c.bf16 0.0, %v2379
  %2383 = vst [vmem:[%s2381] sm:$0xf] %v2382
  %s2384 = scalar_lea.vmem %s0, 236
  %v2385 = vld [vmem:[%s2384] sm:$0xf]
  %v2386 = vunpack.c.l.bf16 %v2385
  %v2387 = vunpack.c.h.bf16 %v2385
  %s2388 = scalar_lea.vmem %s1, 1196
  %v2389 = vpack.c.bf16 0.0, %v2386
  %2390 = vst [vmem:[%s2388] sm:$0xf] %v2389
  %s2391 = scalar_lea.vmem %s0, 1036
  %v2392 = vld [vmem:[%s2391] sm:$0xf]
  %v2393 = vunpack.c.l.bf16 %v2392
  %v2394 = vunpack.c.h.bf16 %v2392
  %s2395 = scalar_lea.vmem %s1, 396
  %v2396 = vpack.c.bf16 0.0, %v2393
  %2397 = vst [vmem:[%s2395] sm:$0xf] %v2396
  %s2398 = scalar_lea.vmem %s0, 556
  %v2399 = vld [vmem:[%s2398] sm:$0xf]
  %v2400 = vunpack.c.l.bf16 %v2399
  %v2401 = vunpack.c.h.bf16 %v2399
  %s2402 = scalar_lea.vmem %s1, 876
  %v2403 = vpack.c.bf16 0.0, %v2400
  %2404 = vst [vmem:[%s2402] sm:$0xf] %v2403
  %s2405 = scalar_lea.vmem %s0, 76
  %v2406 = vld [vmem:[%s2405] sm:$0xf]
  %v2407 = vunpack.c.l.bf16 %v2406
  %v2408 = vunpack.c.h.bf16 %v2406
  %s2409 = scalar_lea.vmem %s1, 1356
  %v2410 = vpack.c.bf16 0.0, %v2407
  %2411 = vst [vmem:[%s2409] sm:$0xf] %v2410
  %s2412 = scalar_lea.vmem %s0, 1376
  %v2413 = vld [vmem:[%s2412] sm:$0xf]
  %v2414 = vunpack.c.l.bf16 %v2413
  %v2415 = vunpack.c.h.bf16 %v2413
  %s2416 = scalar_lea.vmem %s1, 96
  %v2417 = vpack.c.bf16 0.0, %v2414
  %2418 = vst [vmem:[%s2416] sm:$0xf] %v2417
  %s2419 = scalar_lea.vmem %s0, 896
  %v2420 = vld [vmem:[%s2419] sm:$0xf]
  %v2421 = vunpack.c.l.bf16 %v2420
  %v2422 = vunpack.c.h.bf16 %v2420
  %s2423 = scalar_lea.vmem %s1, 576
  %v2424 = vpack.c.bf16 0.0, %v2421
  %2425 = vst [vmem:[%s2423] sm:$0xf] %v2424
  %s2426 = scalar_lea.vmem %s0, 416
  %v2427 = vld [vmem:[%s2426] sm:$0xf]
  %v2428 = vunpack.c.l.bf16 %v2427
  %v2429 = vunpack.c.h.bf16 %v2427
  %s2430 = scalar_lea.vmem %s1, 1056
  %v2431 = vpack.c.bf16 0.0, %v2428
  %2432 = vst [vmem:[%s2430] sm:$0xf] %v2431
  %s2433 = scalar_lea.vmem %s0, 1216
  %v2434 = vld [vmem:[%s2433] sm:$0xf]
  %v2435 = vunpack.c.l.bf16 %v2434
  %v2436 = vunpack.c.h.bf16 %v2434
  %s2437 = scalar_lea.vmem %s1, 256
  %v2438 = vpack.c.bf16 0.0, %v2435
  %2439 = vst [vmem:[%s2437] sm:$0xf] %v2438
  %s2440 = scalar_lea.vmem %s0, 736
  %v2441 = vld [vmem:[%s2440] sm:$0xf]
  %v2442 = vunpack.c.l.bf16 %v2441
  %v2443 = vunpack.c.h.bf16 %v2441
  %s2444 = scalar_lea.vmem %s1, 736
  %v2445 = vpack.c.bf16 0.0, %v2442
  %2446 = vst [vmem:[%s2444] sm:$0xf] %v2445
  %s2447 = scalar_lea.vmem %s0, 256
  %v2448 = vld [vmem:[%s2447] sm:$0xf]
  %v2449 = vunpack.c.l.bf16 %v2448
  %v2450 = vunpack.c.h.bf16 %v2448
  %s2451 = scalar_lea.vmem %s1, 1216
  %v2452 = vpack.c.bf16 0.0, %v2449
  %2453 = vst [vmem:[%s2451] sm:$0xf] %v2452
  %s2454 = scalar_lea.vmem %s0, 1056
  %v2455 = vld [vmem:[%s2454] sm:$0xf]
  %v2456 = vunpack.c.l.bf16 %v2455
  %v2457 = vunpack.c.h.bf16 %v2455
  %s2458 = scalar_lea.vmem %s1, 416
  %v2459 = vpack.c.bf16 0.0, %v2456
  %2460 = vst [vmem:[%s2458] sm:$0xf] %v2459
  %s2461 = scalar_lea.vmem %s0, 576
  %v2462 = vld [vmem:[%s2461] sm:$0xf]
  %v2463 = vunpack.c.l.bf16 %v2462
  %v2464 = vunpack.c.h.bf16 %v2462
  %s2465 = scalar_lea.vmem %s1, 896
  %v2466 = vpack.c.bf16 0.0, %v2463
  %2467 = vst [vmem:[%s2465] sm:$0xf] %v2466
  %s2468 = scalar_lea.vmem %s0, 96
  %v2469 = vld [vmem:[%s2468] sm:$0xf]
  %v2470 = vunpack.c.l.bf16 %v2469
  %v2471 = vunpack.c.h.bf16 %v2469
  %s2472 = scalar_lea.vmem %s1, 1376
  %v2473 = vpack.c.bf16 0.0, %v2470
  %2474 = vst [vmem:[%s2472] sm:$0xf] %v2473
  %s2475 = scalar_lea.vmem %s0, 1396
  %v2476 = vld [vmem:[%s2475] sm:$0xf]
  %v2477 = vunpack.c.l.bf16 %v2476
  %v2478 = vunpack.c.h.bf16 %v2476
  %s2479 = scalar_lea.vmem %s1, 116
  %v2480 = vpack.c.bf16 0.0, %v2477
  %2481 = vst [vmem:[%s2479] sm:$0xf] %v2480
  %s2482 = scalar_lea.vmem %s0, 916
  %v2483 = vld [vmem:[%s2482] sm:$0xf]
  %v2484 = vunpack.c.l.bf16 %v2483
  %v2485 = vunpack.c.h.bf16 %v2483
  %s2486 = scalar_lea.vmem %s1, 596
  %v2487 = vpack.c.bf16 0.0, %v2484
  %2488 = vst [vmem:[%s2486] sm:$0xf] %v2487
  %s2489 = scalar_lea.vmem %s0, 436
  %v2490 = vld [vmem:[%s2489] sm:$0xf]
  %v2491 = vunpack.c.l.bf16 %v2490
  %v2492 = vunpack.c.h.bf16 %v2490
  %s2493 = scalar_lea.vmem %s1, 1076
  %v2494 = vpack.c.bf16 0.0, %v2491
  %2495 = vst [vmem:[%s2493] sm:$0xf] %v2494
  %s2496 = scalar_lea.vmem %s0, 1236
  %v2497 = vld [vmem:[%s2496] sm:$0xf]
  %v2498 = vunpack.c.l.bf16 %v2497
  %v2499 = vunpack.c.h.bf16 %v2497
  %s2500 = scalar_lea.vmem %s1, 276
  %v2501 = vpack.c.bf16 0.0, %v2498
  %2502 = vst [vmem:[%s2500] sm:$0xf] %v2501
  %s2503 = scalar_lea.vmem %s0, 756
  %v2504 = vld [vmem:[%s2503] sm:$0xf]
  %v2505 = vunpack.c.l.bf16 %v2504
  %v2506 = vunpack.c.h.bf16 %v2504
  %s2507 = scalar_lea.vmem %s1, 756
  %v2508 = vpack.c.bf16 0.0, %v2505
  %2509 = vst [vmem:[%s2507] sm:$0xf] %v2508
  %s2510 = scalar_lea.vmem %s0, 276
  %v2511 = vld [vmem:[%s2510] sm:$0xf]
  %v2512 = vunpack.c.l.bf16 %v2511
  %v2513 = vunpack.c.h.bf16 %v2511
  %s2514 = scalar_lea.vmem %s1, 1236
  %v2515 = vpack.c.bf16 0.0, %v2512
  %2516 = vst [vmem:[%s2514] sm:$0xf] %v2515
  %s2517 = scalar_lea.vmem %s0, 1076
  %v2518 = vld [vmem:[%s2517] sm:$0xf]
  %v2519 = vunpack.c.l.bf16 %v2518
  %v2520 = vunpack.c.h.bf16 %v2518
  %s2521 = scalar_lea.vmem %s1, 436
  %v2522 = vpack.c.bf16 0.0, %v2519
  %2523 = vst [vmem:[%s2521] sm:$0xf] %v2522
  %s2524 = scalar_lea.vmem %s0, 596
  %v2525 = vld [vmem:[%s2524] sm:$0xf]
  %v2526 = vunpack.c.l.bf16 %v2525
  %v2527 = vunpack.c.h.bf16 %v2525
  %s2528 = scalar_lea.vmem %s1, 916
  %v2529 = vpack.c.bf16 0.0, %v2526
  %2530 = vst [vmem:[%s2528] sm:$0xf] %v2529
  %s2531 = scalar_lea.vmem %s0, 116
  %v2532 = vld [vmem:[%s2531] sm:$0xf]
  %v2533 = vunpack.c.l.bf16 %v2532
  %v2534 = vunpack.c.h.bf16 %v2532
  %s2535 = scalar_lea.vmem %s1, 1396
  %v2536 = vpack.c.bf16 0.0, %v2533
  %2537 = vst [vmem:[%s2535] sm:$0xf] %v2536
  %s2538 = scalar_lea.vmem %s0, 1416
  %v2539 = vld [vmem:[%s2538] sm:$0xf]
  %v2540 = vunpack.c.l.bf16 %v2539
  %v2541 = vunpack.c.h.bf16 %v2539
  %s2542 = scalar_lea.vmem %s1, 136
  %v2543 = vpack.c.bf16 0.0, %v2540
  %2544 = vst [vmem:[%s2542] sm:$0xf] %v2543
  %s2545 = scalar_lea.vmem %s0, 936
  %v2546 = vld [vmem:[%s2545] sm:$0xf]
  %v2547 = vunpack.c.l.bf16 %v2546
  %v2548 = vunpack.c.h.bf16 %v2546
  %s2549 = scalar_lea.vmem %s1, 616
  %v2550 = vpack.c.bf16 0.0, %v2547
  %2551 = vst [vmem:[%s2549] sm:$0xf] %v2550
  %s2552 = scalar_lea.vmem %s0, 456
  %v2553 = vld [vmem:[%s2552] sm:$0xf]
  %v2554 = vunpack.c.l.bf16 %v2553
  %v2555 = vunpack.c.h.bf16 %v2553
  %s2556 = scalar_lea.vmem %s1, 1096
  %v2557 = vpack.c.bf16 0.0, %v2554
  %2558 = vst [vmem:[%s2556] sm:$0xf] %v2557
  %s2559 = scalar_lea.vmem %s0, 1256
  %v2560 = vld [vmem:[%s2559] sm:$0xf]
  %v2561 = vunpack.c.l.bf16 %v2560
  %v2562 = vunpack.c.h.bf16 %v2560
  %s2563 = scalar_lea.vmem %s1, 296
  %v2564 = vpack.c.bf16 0.0, %v2561
  %2565 = vst [vmem:[%s2563] sm:$0xf] %v2564
  %s2566 = scalar_lea.vmem %s0, 776
  %v2567 = vld [vmem:[%s2566] sm:$0xf]
  %v2568 = vunpack.c.l.bf16 %v2567
  %v2569 = vunpack.c.h.bf16 %v2567
  %s2570 = scalar_lea.vmem %s1, 776
  %v2571 = vpack.c.bf16 0.0, %v2568
  %2572 = vst [vmem:[%s2570] sm:$0xf] %v2571
  %s2573 = scalar_lea.vmem %s0, 296
  %v2574 = vld [vmem:[%s2573] sm:$0xf]
  %v2575 = vunpack.c.l.bf16 %v2574
  %v2576 = vunpack.c.h.bf16 %v2574
  %s2577 = scalar_lea.vmem %s1, 1256
  %v2578 = vpack.c.bf16 0.0, %v2575
  %2579 = vst [vmem:[%s2577] sm:$0xf] %v2578
  %s2580 = scalar_lea.vmem %s0, 1096
  %v2581 = vld [vmem:[%s2580] sm:$0xf]
  %v2582 = vunpack.c.l.bf16 %v2581
  %v2583 = vunpack.c.h.bf16 %v2581
  %s2584 = scalar_lea.vmem %s1, 456
  %v2585 = vpack.c.bf16 0.0, %v2582
  %2586 = vst [vmem:[%s2584] sm:$0xf] %v2585
  %s2587 = scalar_lea.vmem %s0, 616
  %v2588 = vld [vmem:[%s2587] sm:$0xf]
  %v2589 = vunpack.c.l.bf16 %v2588
  %v2590 = vunpack.c.h.bf16 %v2588
  %s2591 = scalar_lea.vmem %s1, 936
  %v2592 = vpack.c.bf16 0.0, %v2589
  %2593 = vst [vmem:[%s2591] sm:$0xf] %v2592
  %s2594 = scalar_lea.vmem %s0, 136
  %v2595 = vld [vmem:[%s2594] sm:$0xf]
  %v2596 = vunpack.c.l.bf16 %v2595
  %v2597 = vunpack.c.h.bf16 %v2595
  %s2598 = scalar_lea.vmem %s1, 1416
  %v2599 = vpack.c.bf16 0.0, %v2596
  %2600 = vst [vmem:[%s2598] sm:$0xf] %v2599
  %s2601 = scalar_lea.vmem %s0, 1436
  %v2602 = vld [vmem:[%s2601] sm:$0xf]
  %v2603 = vunpack.c.l.bf16 %v2602
  %v2604 = vunpack.c.h.bf16 %v2602
  %s2605 = scalar_lea.vmem %s1, 156
  %v2606 = vpack.c.bf16 0.0, %v2603
  %2607 = vst [vmem:[%s2605] sm:$0xf] %v2606
  %s2608 = scalar_lea.vmem %s0, 956
  %v2609 = vld [vmem:[%s2608] sm:$0xf]
  %v2610 = vunpack.c.l.bf16 %v2609
  %v2611 = vunpack.c.h.bf16 %v2609
  %s2612 = scalar_lea.vmem %s1, 636
  %v2613 = vpack.c.bf16 0.0, %v2610
  %2614 = vst [vmem:[%s2612] sm:$0xf] %v2613
  %s2615 = scalar_lea.vmem %s0, 476
  %v2616 = vld [vmem:[%s2615] sm:$0xf]
  %v2617 = vunpack.c.l.bf16 %v2616
  %v2618 = vunpack.c.h.bf16 %v2616
  %s2619 = scalar_lea.vmem %s1, 1116
  %v2620 = vpack.c.bf16 0.0, %v2617
  %2621 = vst [vmem:[%s2619] sm:$0xf] %v2620
  %s2622 = scalar_lea.vmem %s0, 1276
  %v2623 = vld [vmem:[%s2622] sm:$0xf]
  %v2624 = vunpack.c.l.bf16 %v2623
  %v2625 = vunpack.c.h.bf16 %v2623
  %s2626 = scalar_lea.vmem %s1, 316
  %v2627 = vpack.c.bf16 0.0, %v2624
  %2628 = vst [vmem:[%s2626] sm:$0xf] %v2627
  %s2629 = scalar_lea.vmem %s0, 796
  %v2630 = vld [vmem:[%s2629] sm:$0xf]
  %v2631 = vunpack.c.l.bf16 %v2630
  %v2632 = vunpack.c.h.bf16 %v2630
  %s2633 = scalar_lea.vmem %s1, 796
  %v2634 = vpack.c.bf16 0.0, %v2631
  %2635 = vst [vmem:[%s2633] sm:$0xf] %v2634
  %s2636 = scalar_lea.vmem %s0, 316
  %v2637 = vld [vmem:[%s2636] sm:$0xf]
  %v2638 = vunpack.c.l.bf16 %v2637
  %v2639 = vunpack.c.h.bf16 %v2637
  %s2640 = scalar_lea.vmem %s1, 1276
  %v2641 = vpack.c.bf16 0.0, %v2638
  %2642 = vst [vmem:[%s2640] sm:$0xf] %v2641
  %s2643 = scalar_lea.vmem %s0, 1116
  %v2644 = vld [vmem:[%s2643] sm:$0xf]
  %v2645 = vunpack.c.l.bf16 %v2644
  %v2646 = vunpack.c.h.bf16 %v2644
  %s2647 = scalar_lea.vmem %s1, 476
  %v2648 = vpack.c.bf16 0.0, %v2645
  %2649 = vst [vmem:[%s2647] sm:$0xf] %v2648
  %s2650 = scalar_lea.vmem %s0, 636
  %v2651 = vld [vmem:[%s2650] sm:$0xf]
  %v2652 = vunpack.c.l.bf16 %v2651
  %v2653 = vunpack.c.h.bf16 %v2651
  %s2654 = scalar_lea.vmem %s1, 956
  %v2655 = vpack.c.bf16 0.0, %v2652
  %2656 = vst [vmem:[%s2654] sm:$0xf] %v2655
  %s2657 = scalar_lea.vmem %s0, 156
  %v2658 = vld [vmem:[%s2657] sm:$0xf]
  %v2659 = vunpack.c.l.bf16 %v2658
  %v2660 = vunpack.c.h.bf16 %v2658
  %s2661 = scalar_lea.vmem %s1, 1436
  %v2662 = vpack.c.bf16 0.0, %v2659
  %2663 = vst [vmem:[%s2661] sm:$0xf] %v2662

// kernel: triple_dqn_forward.4
$region0: #{triple_dqn_forward.4}
  #allocation0 [shape = 'u32[]', space=smem, size = 0x4, offset = 0x4, fixed_abs, tag = 'smem constant byte address 0x4 - core index']
  #allocation1 [shape = 'u32[144,128]{1,0:T(1,128)}', space=vmem, size = 0x12000, scoped, tag = 'internal scratch']
  %s0 = inlined_call_operand.vmem [shape: f32[128,128], index: 0, kind: input, shape index: {}]
  %s1 = inlined_call_operand.vmem [shape: f32[2,128,128], index: 1, kind: input, shape index: {}]
  %s2 = inlined_call_operand.vmem [shape: f32[2,1,128], index: 2, kind: input, shape index: {}]
  %s3 = inlined_call_operand.vmem [shape: f32[2,128,128], index: 3, kind: output, shape index: {}]
  %s4 = sld [smem:[#allocation0]]
  $region45: #{triple_dqn_forward.4} parent=0
    _
  %s6 = ssub.s32 1, %s4
  %s7 = scalar_select 0, %s6, %s4
  loop: start=0, step=1, limit=4
  $region2: #{triple_dqn_forward.4} parent=0 // loop_pre_header
    _
  $region3: #{triple_dqn_forward.4} parent=0 // loop_header
    %s9 = sphi 0, %s13
    %p10 = scmp.ge.s32.totalorder %s9, 4
    %s17 = sphi 0, %s17
    %s19 = sphi 0, %s17
    %s20 = sphi 0, %s19
    %s34 = sphi 0, %s20
    %s40 = sphi 0, %s42
    %s43 = sphi 0, %s40
    %s44 = sphi 0, %s43
    %s60 = sphi 0, %s44
    %s66 = sphi 0, %s68
    %s69 = sphi 0, %s66
    %s70 = sphi 0, %s69
    %s86 = sphi 0, %s70
    %s92 = sphi 0, %s94
    %s95 = sphi 0, %s92
    %s96 = sphi 0, %s95
    %s112 = sphi 0, %s96
  $region4: #{triple_dqn_forward.4} parent=0 // loop_header_branch
    %12 = sbr.rel (%p10) target = $region8
  $region5: #{triple_dqn_forward.4} parent=0 // loop_body
    %s14 = ssub.s32 %s9, 1
    %s15 = ssub.s32 %s9, 2
    %s16 = sadd.s32 %s9, 1
    %s18 = sadd.s32 %s17, 1
    %p21 = scmp.eq.s32.totalorder %s9, 1
    %p22 = scmp.ne.s32.totalorder %s17, %s19
    %p23 = scmp.eq.s32.totalorder %s9, 0
    %p24 = por %p22, %p23
    %p25 = scmp.ne.s32.totalorder %s17, %s19
    %p26 = scmp.eq.s32.totalorder %s14, 1
    %p27 = por %p25, %p26
    %p28 = scmp.ne.s32.totalorder %s19, %s20
    %p29 = scmp.eq.s32.totalorder %s14, 0
    %p30 = por %p28, %p29
    %p31 = scmp.ne.s32.totalorder %s19, %s20
    %p32 = scmp.eq.s32.totalorder %s15, 1
    %p33 = por %p31, %p32
    %p35 = scmp.ne.s32.totalorder %s20, %s34
    %p36 = scmp.eq.s32.totalorder %s15, 0
    %p37 = por %p35, %p36
    %s38 = ssub.s32 %s9, %s16
    %p39 = scmp.eq.s32.totalorder %s38, 0
    %s41 = sadd.s32 %s40, 1
    %s42 = scalar_select %p39, %s40, %s41
    %p45 = pneg %p39
    %p46 = scmp.eq.s32.totalorder %s9, 1
    %p47 = por %p45, %p46
    %p48 = scmp.ne.s32.totalorder %s40, %s43
    %p49 = scmp.eq.s32.totalorder %s9, 0
    %p50 = por %p48, %p49
    %p51 = scmp.ne.s32.totalorder %s40, %s43
    %p52 = scmp.eq.s32.totalorder %s14, 1
    %p53 = por %p51, %p52
    %p54 = scmp.ne.s32.totalorder %s43, %s44
    %p55 = scmp.eq.s32.totalorder %s14, 0
    %p56 = por %p54, %p55
    %p57 = scmp.ne.s32.totalorder %s43, %s44
    %p58 = scmp.eq.s32.totalorder %s15, 1
    %p59 = por %p57, %p58
    %p61 = scmp.ne.s32.totalorder %s44, %s60
    %p62 = scmp.eq.s32.totalorder %s15, 0
    %p63 = por %p61, %p62
    %s64 = ssub.s32 %s9, %s16
    %p65 = scmp.eq.s32.totalorder %s64, 0
    %s67 = sadd.s32 %s66, 1
    %s68 = scalar_select %p65, %s66, %s67
    %p71 = pneg %p65
    %p72 = scmp.eq.s32.totalorder %s9, 1
    %p73 = por %p71, %p72
    %p74 = scmp.ne.s32.totalorder %s66, %s69
    %p75 = scmp.eq.s32.totalorder %s9, 0
    %p76 = por %p74, %p75
    %p77 = scmp.ne.s32.totalorder %s66, %s69
    %p78 = scmp.eq.s32.totalorder %s14, 1
    %p79 = por %p77, %p78
    %p80 = scmp.ne.s32.totalorder %s69, %s70
    %p81 = scmp.eq.s32.totalorder %s14, 0
    %p82 = por %p80, %p81
    %p83 = scmp.ne.s32.totalorder %s69, %s70
    %p84 = scmp.eq.s32.totalorder %s15, 1
    %p85 = por %p83, %p84
    %p87 = scmp.ne.s32.totalorder %s70, %s86
    %p88 = scmp.eq.s32.totalorder %s15, 0
    %p89 = por %p87, %p88
    %s90 = ssub.s32 %s9, %s16
    %p91 = scmp.eq.s32.totalorder %s90, 0
    %s93 = sadd.s32 %s92, 1
    %s94 = scalar_select %p91, %s92, %s93
    %p97 = pneg %p91
    %p98 = scmp.eq.s32.totalorder %s9, 1
    %p99 = por %p97, %p98
    %p100 = scmp.ne.s32.totalorder %s92, %s95
    %p101 = scmp.eq.s32.totalorder %s9, 0
    %p102 = por %p100, %p101
    %p103 = scmp.ne.s32.totalorder %s92, %s95
    %p104 = scmp.eq.s32.totalorder %s14, 1
    %p105 = por %p103, %p104
    %p106 = scmp.ne.s32.totalorder %s95, %s96
    %p107 = scmp.eq.s32.totalorder %s14, 0
    %p108 = por %p106, %p107
    %p109 = scmp.ne.s32.totalorder %s95, %s96
    %p110 = scmp.eq.s32.totalorder %s15, 1
    %p111 = por %p109, %p110
    %p113 = scmp.ne.s32.totalorder %s96, %s112
    %p114 = scmp.eq.s32.totalorder %s15, 0
    %p115 = por %p113, %p114
    %p116 = scmp.le.s32.totalorder 1, %s9
    %p117 = scmp.lt.s32.totalorder %s9, 3
    %p118 = pnand %p116, %p117
    %p119 = pneg %p118
    // Predicated region
    $region9: #{triple_dqn_forward.4} parent=5 // pred_check
      _
    $region10: #{triple_dqn_forward.4} parent=5 // pred_check_branch
      %121 = sbr.rel (%p118) target = $region12
    $region11: #{triple_dqn_forward.4} parent=5 // pred_region
      %s122 = ssub.s32 %s9, 1
      // Predicated region
      $region13: #{triple_dqn_forward.4} parent=11 // pred_check
        %p123 = pneg %p30
      $region14: #{triple_dqn_forward.4} parent=11 // pred_check_branch
        %125 = sbr.rel (%p123) target = $region16
      $region15: #{triple_dqn_forward.4} parent=11 // pred_region
        _
      $region16: #{triple_dqn_forward.4} parent=11 // pred_fallthru
        _
    $region12: #{triple_dqn_forward.4} parent=5 // pred_fallthru
      _
    %p126 = scmp.lt.s32.totalorder %s9, 2
    // Predicated region
    $region17: #{triple_dqn_forward.4} parent=5 // pred_check
      %p127 = pneg %p126
    $region18: #{triple_dqn_forward.4} parent=5 // pred_check_branch
      %129 = sbr.rel (%p127) target = $region20
    $region19: #{triple_dqn_forward.4} parent=5 // pred_region
      // Predicated region
      $region21: #{triple_dqn_forward.4} parent=19 // pred_check
        %p130 = pneg %p50
      $region22: #{triple_dqn_forward.4} parent=19 // pred_check_branch
        %132 = sbr.rel (%p130) target = $region24
      $region23: #{triple_dqn_forward.4} parent=19 // pred_region
        %p133 = scmp.lt.s32.totalorder %s9, 1
        %s134 = scalar_select %p133, %s9, 1
        %s135 = smul.addr %s134, 16
        %s136 = smul.addr %s135, 8
        %s137 = scalar_lea.vmem %s1, %s136
      $region24: #{triple_dqn_forward.4} parent=19 // pred_fallthru
        _
      // Predicated region
      $region25: #{triple_dqn_forward.4} parent=19 // pred_check
        %p138 = pneg %p76
      $region26: #{triple_dqn_forward.4} parent=19 // pred_check_branch
        %140 = sbr.rel (%p138) target = $region28
      $region27: #{triple_dqn_forward.4} parent=19 // pred_region
        %p141 = scmp.lt.s32.totalorder %s9, 1
        %s142 = scalar_select %p141, %s9, 1
        %s143 = scalar_lea.vmem %s2, %s142
      $region28: #{triple_dqn_forward.4} parent=19 // pred_fallthru
        _
    $region20: #{triple_dqn_forward.4} parent=5 // pred_fallthru
      _
    %p144 = scmp.le.s32.totalorder 1, %s9
    %p145 = scmp.lt.s32.totalorder %s9, 3
    %p146 = pnand %p144, %p145
    %p147 = pneg %p146
    // Predicated region
    $region29: #{triple_dqn_forward.4} parent=5 // pred_check
      _
    $region30: #{triple_dqn_forward.4} parent=5 // pred_check_branch
      %149 = sbr.rel (%p146) target = $region32
    $region31: #{triple_dqn_forward.4} parent=5 // pred_region
      %s150 = ssub.s32 %s9, 1
      %p151 = pneg %p30
      %p152 = pneg %p27
      %p153 = scmp.lt.s32.totalorder %s14, 1
      %s154 = scalar_select %p153, %s14, 1
      %s155 = smul.addr %s154, 16
      %s156 = smul.addr %s155, 8
      %s157 = scalar_lea.vmem %s1, %s156
      %p158 = pneg %p56
      %p159 = pneg %p53
      %p160 = scmp.lt.s32.totalorder %s14, 1
      %s161 = scalar_select %p160, %s14, 1
      %s162 = scalar_lea.vmem %s2, %s161
      %p163 = pneg %p82
      %p164 = pneg %p79
      %p165 = pneg %p108
      %p166 = pneg %p105
      %p167 = scmp.lt.s32.totalorder %s14, 1
      %s168 = scalar_select %p167, %s14, 1
      %s169 = smul.addr %s168, 16
      %s170 = smul.addr %s169, 8
      %s171 = scalar_lea.vmem %s3, %s170
      %p172 = scmp.lt.s32.totalorder %s14, 1
      %s173 = scalar_select %p172, %s14, 1
      %s174 = smul.addr %s173, 16
      %s175 = smul.addr %s174, 8
      %s176 = scalar_lea.vmem %s1, %s175
      %p177 = scmp.lt.s32.totalorder %s14, 1
      %s178 = scalar_select %p177, %s14, 1
      %s179 = scalar_lea.vmem %s2, %s178
      %p180 = scmp.lt.s32.totalorder %s14, 1
      %s181 = scalar_select %p180, %s14, 1
      %s182 = smul.addr %s181, 16
      %s183 = smul.addr %s182, 8
      %s184 = scalar_lea.vmem %s3, %s183
      %v185 = vld [vmem:[%s0] sm:$0xff]
      %v186 = vld [vmem:[%s0 + $0x8] sm:$0xff]
      %v187 = vld [vmem:[%s0 + $0x10] sm:$0xff]
      %v188 = vld [vmem:[%s0 + $0x18] sm:$0xff]
      %v189 = vld [vmem:[%s0 + $0x20] sm:$0xff]
      %v190 = vld [vmem:[%s0 + $0x28] sm:$0xff]
      %v191 = vld [vmem:[%s0 + $0x30] sm:$0xff]
      %v192 = vld [vmem:[%s0 + $0x38] sm:$0xff]
      %v193 = vld [vmem:[%s0 + $0x40] sm:$0xff]
      %v194 = vld [vmem:[%s0 + $0x48] sm:$0xff]
      %v195 = vld [vmem:[%s0 + $0x50] sm:$0xff]
      %v196 = vld [vmem:[%s0 + $0x58] sm:$0xff]
      %v197 = vld [vmem:[%s0 + $0x60] sm:$0xff]
      %v198 = vld [vmem:[%s0 + $0x68] sm:$0xff]
      %v199 = vld [vmem:[%s0 + $0x70] sm:$0xff]
      %v200 = vld [vmem:[%s0 + $0x78] sm:$0xff]
      %v201 = vld [vmem:[%s176] sm:$0xff]
      %v202 = vld [vmem:[%s176 + $0x8] sm:$0xff]
      %v203 = vld [vmem:[%s176 + $0x10] sm:$0xff]
      %v204 = vld [vmem:[%s176 + $0x18] sm:$0xff]
      %v205 = vld [vmem:[%s176 + $0x20] sm:$0xff]
      %v206 = vld [vmem:[%s176 + $0x28] sm:$0xff]
      %v207 = vld [vmem:[%s176 + $0x30] sm:$0xff]
      %v208 = vld [vmem:[%s176 + $0x38] sm:$0xff]
      %v209 = vld [vmem:[%s176 + $0x40] sm:$0xff]
      %v210 = vld [vmem:[%s176 + $0x48] sm:$0xff]
      %v211 = vld [vmem:[%s176 + $0x50] sm:$0xff]
      %v212 = vld [vmem:[%s176 + $0x58] sm:$0xff]
      %v213 = vld [vmem:[%s176 + $0x60] sm:$0xff]
      %v214 = vld [vmem:[%s176 + $0x68] sm:$0xff]
      %v215 = vld [vmem:[%s176 + $0x70] sm:$0xff]
      %v216 = vld [vmem:[%s176 + $0x78] sm:$0xff]
      %v217 = vld [vmem:[%s179] sm:$0x1]
      %v219 = vlaneseq
      %v220 = vshrl.u32 %v219, 7
      %v221 = vsub.s32 0, %v220
      %v222 = vrot.slane %v217, %v221
      %224 = vmatprep.subr.mxu0 0.0
      %225 = vmatpush1.msra.mxu0 %v201
      %226 = vmatprep.subr.mxu0 0.0
      %227 = vmatpush1.msra.mxu0 %v202
      %228 = vmatprep.subr.mxu0 0.0
      %229 = vmatpush1.msra.mxu0 %v203
      %230 = vmatprep.subr.mxu0 0.0
      %231 = vmatpush1.msra.mxu0 %v204
      %232 = vmatprep.subr.mxu0 0.0
      %233 = vmatpush1.msra.mxu0 %v205
      %234 = vmatprep.subr.mxu0 0.0
      %235 = vmatpush1.msra.mxu0 %v206
      %236 = vmatprep.subr.mxu0 0.0
      %237 = vmatpush1.msra.mxu0 %v207
      %238 = vmatprep.subr.mxu0 0.0
      %239 = vmatpush1.msra.mxu0 %v208
      %240 = vmatprep.subr.mxu0 0.0
      %241 = vmatpush1.msra.mxu0 %v209
      %242 = vmatprep.subr.mxu0 0.0
      %243 = vmatpush1.msra.mxu0 %v210
      %244 = vmatprep.subr.mxu0 0.0
      %245 = vmatpush1.msra.mxu0 %v211
      %246 = vmatprep.subr.mxu0 0.0
      %247 = vmatpush1.msra.mxu0 %v212
      %248 = vmatprep.subr.mxu0 0.0
      %249 = vmatpush1.msra.mxu0 %v213
      %250 = vmatprep.subr.mxu0 0.0
      %251 = vmatpush1.msra.mxu0 %v214
      %252 = vmatprep.subr.mxu0 0.0
      %253 = vmatpush1.msra.mxu0 %v215
      %254 = vmatprep.subr.mxu0 0.0
      %255 = vmatpush1.msra.mxu0 %v216
      %256 = vmatprep.subr.mxu0 0.0
      %257 = vmatpush1.msra.mxu0 0.0
      %258 = vmatprep.subr.mxu0 0.0
      %259 = vmatpush1.msra.mxu0 0.0
      %260 = vmatprep.subr.mxu0 0.0
      %261 = vmatpush1.msra.mxu0 0.0
      %262 = vmatprep.subr.mxu0 0.0
      %263 = vmatpush1.msra.mxu0 0.0
      %264 = vmatprep.subr.mxu0 0.0
      %265 = vmatpush1.msra.mxu0 0.0
      %266 = vmatprep.subr.mxu0 0.0
      %267 = vmatpush1.msra.mxu0 0.0
      %268 = vmatprep.subr.mxu0 0.0
      %269 = vmatpush1.msra.mxu0 0.0
      %270 = vmatprep.subr.mxu0 0.0
      %271 = vmatpush1.msra.mxu0 0.0
      %272 = vmatprep.subr.mxu0 0.0
      %273 = vmatpush1.msra.mxu0 0.0
      %274 = vmatprep.subr.mxu0 0.0
      %275 = vmatpush1.msra.mxu0 0.0
      %276 = vmatprep.subr.mxu0 0.0
      %277 = vmatpush1.msra.mxu0 0.0
      %278 = vmatprep.subr.mxu0 0.0
      %279 = vmatpush1.msra.mxu0 0.0
      %280 = vmatprep.subr.mxu0 0.0
      %281 = vmatpush1.msra.mxu0 0.0
      %282 = vmatprep.subr.mxu0 0.0
      %283 = vmatpush1.msra.mxu0 0.0
      %284 = vmatprep.subr.mxu0 0.0
      %285 = vmatpush1.msra.mxu0 0.0
      %286 = vmatprep.subr.mxu0 0.0
      %287 = vmatpush1.msra.mxu0 0.0
      %288 = vmatprep.mubr.f32.mxu0 0.0
      %289 = vmatmul.mubr.f32.gmra.mrb[0].mxu0 %v185
      %v290 = vpop.f32.mrb[0].mxu0
      %v291 = vadd.f32 %v222, %v290
      %v292 = vpop.f32.mrb[0].mxu0
      %293 = vmatprep.mubr.f32.mxu0 0.0
      %294 = vmatmul.mubr.f32.gmra.mrb[0].mxu0 %v186
      %v295 = vpop.f32.mrb[0].mxu0
      %v296 = vadd.f32 %v222, %v295
      %v297 = vpop.f32.mrb[0].mxu0
      %298 = vmatprep.mubr.f32.mxu0 0.0
      %299 = vmatmul.mubr.f32.gmra.mrb[0].mxu0 %v187
      %v300 = vpop.f32.mrb[0].mxu0
      %v301 = vadd.f32 %v222, %v300
      %v302 = vpop.f32.mrb[0].mxu0
      %303 = vmatprep.mubr.f32.mxu0 0.0
      %304 = vmatmul.mubr.f32.gmra.mrb[0].mxu0 %v188
      %v305 = vpop.f32.mrb[0].mxu0
      %v306 = vadd.f32 %v222, %v305
      %v307 = vpop.f32.mrb[0].mxu0
      %308 = vmatprep.mubr.f32.mxu0 0.0
      %309 = vmatmul.mubr.f32.gmra.mrb[0].mxu0 %v189
      %v310 = vpop.f32.mrb[0].mxu0
      %v311 = vadd.f32 %v222, %v310
      %v312 = vpop.f32.mrb[0].mxu0
      %313 = vmatprep.mubr.f32.mxu0 0.0
      %314 = vmatmul.mubr.f32.gmra.mrb[0].mxu0 %v190
      %v315 = vpop.f32.mrb[0].mxu0
      %v316 = vadd.f32 %v222, %v315
      %v317 = vpop.f32.mrb[0].mxu0
      %318 = vmatprep.mubr.f32.mxu0 0.0
      %319 = vmatmul.mubr.f32.gmra.mrb[0].mxu0 %v191
      %v320 = vpop.f32.mrb[0].mxu0
      %v321 = vadd.f32 %v222, %v320
      %v322 = vpop.f32.mrb[0].mxu0
      %323 = vmatprep.mubr.f32.mxu0 0.0
      %324 = vmatmul.mubr.f32.gmra.mrb[0].mxu0 %v192
      %v325 = vpop.f32.mrb[0].mxu0
      %v326 = vadd.f32 %v222, %v325
      %v327 = vpop.f32.mrb[0].mxu0
      %328 = vmatprep.mubr.f32.mxu0 0.0
      %329 = vmatmul.mubr.f32.gmra.mrb[0].mxu0 %v193
      %v330 = vpop.f32.mrb[0].mxu0
      %v331 = vadd.f32 %v222, %v330
      %v332 = vpop.f32.mrb[0].mxu0
      %333 = vmatprep.mubr.f32.mxu0 0.0
      %334 = vmatmul.mubr.f32.gmra.mrb[0].mxu0 %v194
      %v335 = vpop.f32.mrb[0].mxu0
      %v336 = vadd.f32 %v222, %v335
      %v337 = vpop.f32.mrb[0].mxu0
      %338 = vmatprep.mubr.f32.mxu0 0.0
      %339 = vmatmul.mubr.f32.gmra.mrb[0].mxu0 %v195
      %v340 = vpop.f32.mrb[0].mxu0
      %v341 = vadd.f32 %v222, %v340
      %v342 = vpop.f32.mrb[0].mxu0
      %343 = vmatprep.mubr.f32.mxu0 0.0
      %344 = vmatmul.mubr.f32.gmra.mrb[0].mxu0 %v196
      %v345 = vpop.f32.mrb[0].mxu0
      %v346 = vadd.f32 %v222, %v345
      %v347 = vpop.f32.mrb[0].mxu0
      %348 = vmatprep.mubr.f32.mxu0 0.0
      %349 = vmatmul.mubr.f32.gmra.mrb[0].mxu0 %v197
      %v350 = vpop.f32.mrb[0].mxu0
      %v351 = vadd.f32 %v222, %v350
      %v352 = vpop.f32.mrb[0].mxu0
      %353 = vmatprep.mubr.f32.mxu0 0.0
      %354 = vmatmul.mubr.f32.gmra.mrb[0].mxu0 %v198
      %v355 = vpop.f32.mrb[0].mxu0
      %v356 = vadd.f32 %v222, %v355
      %v357 = vpop.f32.mrb[0].mxu0
      %358 = vmatprep.mubr.f32.mxu0 0.0
      %359 = vmatmul.mubr.f32.gmra.mrb[0].mxu0 %v199
      %v360 = vpop.f32.mrb[0].mxu0
      %v361 = vadd.f32 %v222, %v360
      %v362 = vpop.f32.mrb[0].mxu0
      %363 = vmatprep.mubr.f32.mxu0 0.0
      %364 = vmatmul.mubr.f32.gmra.mrb[0].mxu0 %v200
      %v365 = vpop.f32.mrb[0].mxu0
      %v366 = vadd.f32 %v222, %v365
      %v367 = vpop.f32.mrb[0].mxu0
      %368 = vdwg.mxu0
      %vm369 = vcmp.gt.f32.partialorder %v291, 0.0
      %vm370 = vcmp.gt.f32.partialorder %v296, 0.0
      %vm371 = vcmp.gt.f32.partialorder %v301, 0.0
      %vm372 = vcmp.gt.f32.partialorder %v306, 0.0
      %vm373 = vcmp.gt.f32.partialorder %v311, 0.0
      %vm374 = vcmp.gt.f32.partialorder %v316, 0.0
      %vm375 = vcmp.gt.f32.partialorder %v321, 0.0
      %vm376 = vcmp.gt.f32.partialorder %v326, 0.0
      %vm377 = vcmp.gt.f32.partialorder %v331, 0.0
      %vm378 = vcmp.gt.f32.partialorder %v336, 0.0
      %vm379 = vcmp.gt.f32.partialorder %v341, 0.0
      %vm380 = vcmp.gt.f32.partialorder %v346, 0.0
      %vm381 = vcmp.gt.f32.partialorder %v351, 0.0
      %vm382 = vcmp.gt.f32.partialorder %v356, 0.0
      %vm383 = vcmp.gt.f32.partialorder %v361, 0.0
      %vm384 = vcmp.gt.f32.partialorder %v366, 0.0
      %v385 = vmin.f32 %v291, 0.0
      %v386 = vmin.f32 %v296, 0.0
      %v387 = vmin.f32 %v301, 0.0
      %v388 = vmin.f32 %v306, 0.0
      %v389 = vmin.f32 %v311, 0.0
      %v390 = vmin.f32 %v316, 0.0
      %v391 = vmin.f32 %v321, 0.0
      %v392 = vmin.f32 %v326, 0.0
      %v393 = vmin.f32 %v331, 0.0
      %v394 = vmin.f32 %v336, 0.0
      %v395 = vmin.f32 %v341, 0.0
      %v396 = vmin.f32 %v346, 0.0
      %v397 = vmin.f32 %v351, 0.0
      %v398 = vmin.f32 %v356, 0.0
      %v399 = vmin.f32 %v361, 0.0
      %v400 = vmin.f32 %v366, 0.0
      %v401 = vmul.f32 %v385, 1.442695
      %v402 = vpow.pop %v401
      %v403 = vmul.f32 %v386, 1.442695
      %v404 = vpow.pop %v403
      %v405 = vmul.f32 %v387, 1.442695
      %v406 = vpow.pop %v405
      %v407 = vmul.f32 %v388, 1.442695
      %v408 = vpow.pop %v407
      %v409 = vmul.f32 %v389, 1.442695
      %v410 = vpow.pop %v409
      %v411 = vmul.f32 %v390, 1.442695
      %v412 = vpow.pop %v411
      %v413 = vmul.f32 %v391, 1.442695
      %v414 = vpow.pop %v413
      %v415 = vmul.f32 %v392, 1.442695
      %v416 = vpow.pop %v415
      %v417 = vmul.f32 %v393, 1.442695
      %v418 = vpow.pop %v417
      %v419 = vmul.f32 %v394, 1.442695
      %v420 = vpow.pop %v419
      %v421 = vmul.f32 %v395, 1.442695
      %v422 = vpow.pop %v421
      %v423 = vmul.f32 %v396, 1.442695
      %v424 = vpow.pop %v423
      %v425 = vmul.f32 %v397, 1.442695
      %v426 = vpow.pop %v425
      %v427 = vmul.f32 %v398, 1.442695
      %v428 = vpow.pop %v427
      %v429 = vmul.f32 %v399, 1.442695
      %v430 = vpow.pop %v429
      %v431 = vmul.f32 %v400, 1.442695
      %v432 = vpow.pop %v431
      %v433 = vsub.f32 %v402, 1.0
      %v434 = vsub.f32 %v404, 1.0
      %v435 = vsub.f32 %v406, 1.0
      %v436 = vsub.f32 %v408, 1.0
      %v437 = vsub.f32 %v410, 1.0
      %v438 = vsub.f32 %v412, 1.0
      %v439 = vsub.f32 %v414, 1.0
      %v440 = vsub.f32 %v416, 1.0
      %v441 = vsub.f32 %v418, 1.0
      %v442 = vsub.f32 %v420, 1.0
      %v443 = vsub.f32 %v422, 1.0
      %v444 = vsub.f32 %v424, 1.0
      %v445 = vsub.f32 %v426, 1.0
      %v446 = vsub.f32 %v428, 1.0
      %v447 = vsub.f32 %v430, 1.0
      %v448 = vsub.f32 %v432, 1.0
      %v449 = vsel %vm369, %v291, %v433
      %v450 = vsel %vm370, %v296, %v434
      %v451 = vsel %vm371, %v301, %v435
      %v452 = vsel %vm372, %v306, %v436
      %v453 = vsel %vm373, %v311, %v437
      %v454 = vsel %vm374, %v316, %v438
      %v455 = vsel %vm375, %v321, %v439
      %v456 = vsel %vm376, %v326, %v440
      %v457 = vsel %vm377, %v331, %v441
      %v458 = vsel %vm378, %v336, %v442
      %v459 = vsel %vm379, %v341, %v443
      %v460 = vsel %vm380, %v346, %v444
      %v461 = vsel %vm381, %v351, %v445
      %v462 = vsel %vm382, %v356, %v446
      %v463 = vsel %vm383, %v361, %v447
      %v464 = vsel %vm384, %v366, %v448
      %465 = vst [vmem:[%s184] sm:$0xff] %v449
      %466 = vst [vmem:[%s184 + $0x8] sm:$0xff] %v450
      %467 = vst [vmem:[%s184 + $0x10] sm:$0xff] %v451
      %468 = vst [vmem:[%s184 + $0x18] sm:$0xff] %v452
      %469 = vst [vmem:[%s184 + $0x20] sm:$0xff] %v453
      %470 = vst [vmem:[%s184 + $0x28] sm:$0xff] %v454
      %471 = vst [vmem:[%s184 + $0x30] sm:$0xff] %v455
      %472 = vst [vmem:[%s184 + $0x38] sm:$0xff] %v456
      %473 = vst [vmem:[%s184 + $0x40] sm:$0xff] %v457
      %474 = vst [vmem:[%s184 + $0x48] sm:$0xff] %v458
      %475 = vst [vmem:[%s184 + $0x50] sm:$0xff] %v459
      %476 = vst [vmem:[%s184 + $0x58] sm:$0xff] %v460
      %477 = vst [vmem:[%s184 + $0x60] sm:$0xff] %v461
      %478 = vst [vmem:[%s184 + $0x68] sm:$0xff] %v462
      %479 = vst [vmem:[%s184 + $0x70] sm:$0xff] %v463
      %480 = vst [vmem:[%s184 + $0x78] sm:$0xff] %v464
      %p481 = scmp.lt.s32.totalorder %s14, 1
      %s482 = scalar_select %p481, %s14, 1
      %s483 = smul.addr %s482, 16
      %s484 = smul.addr %s483, 8
      %s485 = scalar_lea.vmem %s3, %s484
      // Predicated region
      $region33: #{triple_dqn_forward.4} parent=31 // pred_check
        %p486 = pneg %p105
      $region34: #{triple_dqn_forward.4} parent=31 // pred_check_branch
        %488 = sbr.rel (%p486) target = $region36
      $region35: #{triple_dqn_forward.4} parent=31 // pred_region
        _
      $region36: #{triple_dqn_forward.4} parent=31 // pred_fallthru
        _
    $region32: #{triple_dqn_forward.4} parent=5 // pred_fallthru
      _
    %p489 = scmp.le.s32.totalorder 2, %s9
    // Predicated region
    $region37: #{triple_dqn_forward.4} parent=5 // pred_check
      %p490 = pneg %p489
    $region38: #{triple_dqn_forward.4} parent=5 // pred_check_branch
      %492 = sbr.rel (%p490) target = $region40
    $region39: #{triple_dqn_forward.4} parent=5 // pred_region
      %s493 = ssub.s32 %s9, 2
      // Predicated region
      $region41: #{triple_dqn_forward.4} parent=39 // pred_check
        %p494 = pneg %p111
      $region42: #{triple_dqn_forward.4} parent=39 // pred_check_branch
        %496 = sbr.rel (%p494) target = $region44
      $region43: #{triple_dqn_forward.4} parent=39 // pred_region
        %p497 = scmp.lt.s32.totalorder %s15, 1
        %s498 = scalar_select %p497, %s15, 1
        %s499 = smul.addr %s498, 16
        %s500 = smul.addr %s499, 8
        %s501 = scalar_lea.vmem %s3, %s500
      $region44: #{triple_dqn_forward.4} parent=39 // pred_fallthru
        _
    $region40: #{triple_dqn_forward.4} parent=5 // pred_fallthru
      _
  $region6: #{triple_dqn_forward.4} parent=0 // loop_footer
    %s13 = sadd.s32 1, %s9
  $region7: #{triple_dqn_forward.4} parent=0 // loop_footer_branch
    %8 = sbr.rel target = $region3
  $region8: #{triple_dqn_forward.4} parent=0 // loop_exit
    _

// kernel: triple_dqn_forward.5
$region0: #{triple_dqn_forward.5}
  #allocation0 [shape = 'u32[]', space=smem, size = 0x4, offset = 0x4, fixed_abs, tag = 'smem constant byte address 0x4 - core index']
  #allocation1 [shape = 'u32[144,128]{1,0:T(1,128)}', space=vmem, size = 0x12000, scoped, tag = 'internal scratch']
  %s0 = inlined_call_operand.vmem [shape: f32[2,32,512], index: 0, kind: input, shape index: {}]
  %s1 = inlined_call_operand.vmem [shape: f32[2,512,128], index: 1, kind: input, shape index: {}]
  %s2 = inlined_call_operand.vmem [shape: f32[2,1,128], index: 2, kind: input, shape index: {}]
  %s3 = inlined_call_operand.vmem [shape: f32[2,32,128], index: 3, kind: output, shape index: {}]
  %s4 = sld [smem:[#allocation0]]
  $region45: #{triple_dqn_forward.5} parent=0
    _
  %s6 = ssub.s32 1, %s4
  %s7 = scalar_select 0, %s6, %s4
  loop: start=0, step=1, limit=4
  $region2: #{triple_dqn_forward.5} parent=0 // loop_pre_header
    _
  $region3: #{triple_dqn_forward.5} parent=0 // loop_header
    %s9 = sphi 0, %s13
    %p10 = scmp.ge.s32.totalorder %s9, 4
    %s19 = sphi 0, %s21
    %s22 = sphi 0, %s19
    %s23 = sphi 0, %s22
    %s39 = sphi 0, %s23
    %s45 = sphi 0, %s47
    %s48 = sphi 0, %s45
    %s49 = sphi 0, %s48
    %s65 = sphi 0, %s49
    %s71 = sphi 0, %s73
    %s74 = sphi 0, %s71
    %s75 = sphi 0, %s74
    %s91 = sphi 0, %s75
    %s97 = sphi 0, %s99
    %s100 = sphi 0, %s97
    %s101 = sphi 0, %s100
    %s117 = sphi 0, %s101
  $region4: #{triple_dqn_forward.5} parent=0 // loop_header_branch
    %12 = sbr.rel (%p10) target = $region8
  $region5: #{triple_dqn_forward.5} parent=0 // loop_body
    %s14 = ssub.s32 %s9, 1
    %s15 = ssub.s32 %s9, 2
    %s16 = sadd.s32 %s9, 1
    %s17 = ssub.s32 %s9, %s16
    %p18 = scmp.eq.s32.totalorder %s17, 0
    %s20 = sadd.s32 %s19, 1
    %s21 = scalar_select %p18, %s19, %s20
    %p24 = pneg %p18
    %p25 = scmp.eq.s32.totalorder %s9, 1
    %p26 = por %p24, %p25
    %p27 = scmp.ne.s32.totalorder %s19, %s22
    %p28 = scmp.eq.s32.totalorder %s9, 0
    %p29 = por %p27, %p28
    %p30 = scmp.ne.s32.totalorder %s19, %s22
    %p31 = scmp.eq.s32.totalorder %s14, 1
    %p32 = por %p30, %p31
    %p33 = scmp.ne.s32.totalorder %s22, %s23
    %p34 = scmp.eq.s32.totalorder %s14, 0
    %p35 = por %p33, %p34
    %p36 = scmp.ne.s32.totalorder %s22, %s23
    %p37 = scmp.eq.s32.totalorder %s15, 1
    %p38 = por %p36, %p37
    %p40 = scmp.ne.s32.totalorder %s23, %s39
    %p41 = scmp.eq.s32.totalorder %s15, 0
    %p42 = por %p40, %p41
    %s43 = ssub.s32 %s9, %s16
    %p44 = scmp.eq.s32.totalorder %s43, 0
    %s46 = sadd.s32 %s45, 1
    %s47 = scalar_select %p44, %s45, %s46
    %p50 = pneg %p44
    %p51 = scmp.eq.s32.totalorder %s9, 1
    %p52 = por %p50, %p51
    %p53 = scmp.ne.s32.totalorder %s45, %s48
    %p54 = scmp.eq.s32.totalorder %s9, 0
    %p55 = por %p53, %p54
    %p56 = scmp.ne.s32.totalorder %s45, %s48
    %p57 = scmp.eq.s32.totalorder %s14, 1
    %p58 = por %p56, %p57
    %p59 = scmp.ne.s32.totalorder %s48, %s49
    %p60 = scmp.eq.s32.totalorder %s14, 0
    %p61 = por %p59, %p60
    %p62 = scmp.ne.s32.totalorder %s48, %s49
    %p63 = scmp.eq.s32.totalorder %s15, 1
    %p64 = por %p62, %p63
    %p66 = scmp.ne.s32.totalorder %s49, %s65
    %p67 = scmp.eq.s32.totalorder %s15, 0
    %p68 = por %p66, %p67
    %s69 = ssub.s32 %s9, %s16
    %p70 = scmp.eq.s32.totalorder %s69, 0
    %s72 = sadd.s32 %s71, 1
    %s73 = scalar_select %p70, %s71, %s72
    %p76 = pneg %p70
    %p77 = scmp.eq.s32.totalorder %s9, 1
    %p78 = por %p76, %p77
    %p79 = scmp.ne.s32.totalorder %s71, %s74
    %p80 = scmp.eq.s32.totalorder %s9, 0
    %p81 = por %p79, %p80
    %p82 = scmp.ne.s32.totalorder %s71, %s74
    %p83 = scmp.eq.s32.totalorder %s14, 1
    %p84 = por %p82, %p83
    %p85 = scmp.ne.s32.totalorder %s74, %s75
    %p86 = scmp.eq.s32.totalorder %s14, 0
    %p87 = por %p85, %p86
    %p88 = scmp.ne.s32.totalorder %s74, %s75
    %p89 = scmp.eq.s32.totalorder %s15, 1
    %p90 = por %p88, %p89
    %p92 = scmp.ne.s32.totalorder %s75, %s91
    %p93 = scmp.eq.s32.totalorder %s15, 0
    %p94 = por %p92, %p93
    %s95 = ssub.s32 %s9, %s16
    %p96 = scmp.eq.s32.totalorder %s95, 0
    %s98 = sadd.s32 %s97, 1
    %s99 = scalar_select %p96, %s97, %s98
    %p102 = pneg %p96
    %p103 = scmp.eq.s32.totalorder %s9, 1
    %p104 = por %p102, %p103
    %p105 = scmp.ne.s32.totalorder %s97, %s100
    %p106 = scmp.eq.s32.totalorder %s9, 0
    %p107 = por %p105, %p106
    %p108 = scmp.ne.s32.totalorder %s97, %s100
    %p109 = scmp.eq.s32.totalorder %s14, 1
    %p110 = por %p108, %p109
    %p111 = scmp.ne.s32.totalorder %s100, %s101
    %p112 = scmp.eq.s32.totalorder %s14, 0
    %p113 = por %p111, %p112
    %p114 = scmp.ne.s32.totalorder %s100, %s101
    %p115 = scmp.eq.s32.totalorder %s15, 1
    %p116 = por %p114, %p115
    %p118 = scmp.ne.s32.totalorder %s101, %s117
    %p119 = scmp.eq.s32.totalorder %s15, 0
    %p120 = por %p118, %p119
    %p121 = scmp.le.s32.totalorder 1, %s9
    %p122 = scmp.lt.s32.totalorder %s9, 3
    %p123 = pnand %p121, %p122
    %p124 = pneg %p123
    // Predicated region
    $region9: #{triple_dqn_forward.5} parent=5 // pred_check
      _
    $region10: #{triple_dqn_forward.5} parent=5 // pred_check_branch
      %126 = sbr.rel (%p123) target = $region12
    $region11: #{triple_dqn_forward.5} parent=5 // pred_region
      %s127 = ssub.s32 %s9, 1
    $region12: #{triple_dqn_forward.5} parent=5 // pred_fallthru
      _
    %p128 = scmp.lt.s32.totalorder %s9, 2
    // Predicated region
    $region13: #{triple_dqn_forward.5} parent=5 // pred_check
      %p129 = pneg %p128
    $region14: #{triple_dqn_forward.5} parent=5 // pred_check_branch
      %131 = sbr.rel (%p129) target = $region16
    $region15: #{triple_dqn_forward.5} parent=5 // pred_region
      // Predicated region
      $region17: #{triple_dqn_forward.5} parent=15 // pred_check
        %p132 = pneg %p29
      $region18: #{triple_dqn_forward.5} parent=15 // pred_check_branch
        %134 = sbr.rel (%p132) target = $region20
      $region19: #{triple_dqn_forward.5} parent=15 // pred_region
        %p135 = scmp.lt.s32.totalorder %s9, 1
        %s136 = scalar_select %p135, %s9, 1
        %s137 = smul.addr %s136, 16
        %s138 = smul.addr %s137, 8
        %s139 = scalar_lea.vmem %s0, %s138
      $region20: #{triple_dqn_forward.5} parent=15 // pred_fallthru
        _
      // Predicated region
      $region21: #{triple_dqn_forward.5} parent=15 // pred_check
        %p140 = pneg %p55
      $region22: #{triple_dqn_forward.5} parent=15 // pred_check_branch
        %142 = sbr.rel (%p140) target = $region24
      $region23: #{triple_dqn_forward.5} parent=15 // pred_region
        %p143 = scmp.lt.s32.totalorder %s9, 1
        %s144 = scalar_select %p143, %s9, 1
        %s145 = smul.addr %s144, 64
        %s146 = smul.addr %s145, 8
        %s147 = scalar_lea.vmem %s1, %s146
      $region24: #{triple_dqn_forward.5} parent=15 // pred_fallthru
        _
      // Predicated region
      $region25: #{triple_dqn_forward.5} parent=15 // pred_check
        %p148 = pneg %p81
      $region26: #{triple_dqn_forward.5} parent=15 // pred_check_branch
        %150 = sbr.rel (%p148) target = $region28
      $region27: #{triple_dqn_forward.5} parent=15 // pred_region
        %p151 = scmp.lt.s32.totalorder %s9, 1
        %s152 = scalar_select %p151, %s9, 1
        %s153 = scalar_lea.vmem %s2, %s152
      $region28: #{triple_dqn_forward.5} parent=15 // pred_fallthru
        _
    $region16: #{triple_dqn_forward.5} parent=5 // pred_fallthru
      _
    %p154 = scmp.le.s32.totalorder 1, %s9
    %p155 = scmp.lt.s32.totalorder %s9, 3
    %p156 = pnand %p154, %p155
    %p157 = pneg %p156
    // Predicated region
    $region29: #{triple_dqn_forward.5} parent=5 // pred_check
      _
    $region30: #{triple_dqn_forward.5} parent=5 // pred_check_branch
      %159 = sbr.rel (%p156) target = $region32
    $region31: #{triple_dqn_forward.5} parent=5 // pred_region
      %s160 = ssub.s32 %s9, 1
      %p161 = scmp.lt.s32.totalorder %s14, 1
      %s162 = scalar_select %p161, %s14, 1
      %s163 = smul.addr %s162, 16
      %s164 = smul.addr %s163, 8
      %s165 = scalar_lea.vmem %s0, %s164
      %p166 = pneg %p35
      %p167 = pneg %p32
      %p168 = scmp.lt.s32.totalorder %s14, 1
      %s169 = scalar_select %p168, %s14, 1
      %s170 = smul.addr %s169, 64
      %s171 = smul.addr %s170, 8
      %s172 = scalar_lea.vmem %s1, %s171
      %p173 = pneg %p61
      %p174 = pneg %p58
      %p175 = scmp.lt.s32.totalorder %s14, 1
      %s176 = scalar_select %p175, %s14, 1
      %s177 = scalar_lea.vmem %s2, %s176
      %p178 = pneg %p87
      %p179 = pneg %p84
      %p180 = pneg %p113
      %p181 = pneg %p110
      %p182 = scmp.lt.s32.totalorder %s14, 1
      %s183 = scalar_select %p182, %s14, 1
      %s184 = smul.addr %s183, 4
      %s185 = smul.addr %s184, 8
      %s186 = scalar_lea.vmem %s3, %s185
      %p187 = scmp.lt.s32.totalorder %s14, 1
      %s188 = scalar_select %p187, %s14, 1
      %s189 = smul.addr %s188, 16
      %s190 = smul.addr %s189, 8
      %s191 = scalar_lea.vmem %s0, %s190
      %p192 = scmp.lt.s32.totalorder %s14, 1
      %s193 = scalar_select %p192, %s14, 1
      %s194 = smul.addr %s193, 64
      %s195 = smul.addr %s194, 8
      %s196 = scalar_lea.vmem %s1, %s195
      %p197 = scmp.lt.s32.totalorder %s14, 1
      %s198 = scalar_select %p197, %s14, 1
      %s199 = scalar_lea.vmem %s2, %s198
      %p200 = scmp.lt.s32.totalorder %s14, 1
      %s201 = scalar_select %p200, %s14, 1
      %s202 = smul.addr %s201, 4
      %s203 = smul.addr %s202, 8
      %s204 = scalar_lea.vmem %s3, %s203
      %v205 = vld [vmem:[%s191] sm:$0xff]
      %v206 = vld [vmem:[%s191 + $0x8] sm:$0xff]
      %v207 = vld [vmem:[%s191 + $0x10] sm:$0xff]
      %v208 = vld [vmem:[%s191 + $0x18] sm:$0xff]
      %v209 = vld [vmem:[%s191 + $0x20] sm:$0xff]
      %v210 = vld [vmem:[%s191 + $0x28] sm:$0xff]
      %v211 = vld [vmem:[%s191 + $0x30] sm:$0xff]
      %v212 = vld [vmem:[%s191 + $0x38] sm:$0xff]
      %v213 = vld [vmem:[%s191 + $0x40] sm:$0xff]
      %v214 = vld [vmem:[%s191 + $0x48] sm:$0xff]
      %v215 = vld [vmem:[%s191 + $0x50] sm:$0xff]
      %v216 = vld [vmem:[%s191 + $0x58] sm:$0xff]
      %v217 = vld [vmem:[%s191 + $0x60] sm:$0xff]
      %v218 = vld [vmem:[%s191 + $0x68] sm:$0xff]
      %v219 = vld [vmem:[%s191 + $0x70] sm:$0xff]
      %v220 = vld [vmem:[%s191 + $0x78] sm:$0xff]
      %v221 = vld [vmem:[%s196] sm:$0xff]
      %v222 = vld [vmem:[%s196 + $0x8] sm:$0xff]
      %v223 = vld [vmem:[%s196 + $0x10] sm:$0xff]
      %v224 = vld [vmem:[%s196 + $0x18] sm:$0xff]
      %v225 = vld [vmem:[%s196 + $0x20] sm:$0xff]
      %v226 = vld [vmem:[%s196 + $0x28] sm:$0xff]
      %v227 = vld [vmem:[%s196 + $0x30] sm:$0xff]
      %v228 = vld [vmem:[%s196 + $0x38] sm:$0xff]
      %v229 = vld [vmem:[%s196 + $0x40] sm:$0xff]
      %v230 = vld [vmem:[%s196 + $0x48] sm:$0xff]
      %v231 = vld [vmem:[%s196 + $0x50] sm:$0xff]
      %v232 = vld [vmem:[%s196 + $0x58] sm:$0xff]
      %v233 = vld [vmem:[%s196 + $0x60] sm:$0xff]
      %v234 = vld [vmem:[%s196 + $0x68] sm:$0xff]
      %v235 = vld [vmem:[%s196 + $0x70] sm:$0xff]
      %v236 = vld [vmem:[%s196 + $0x78] sm:$0xff]
      %v237 = vld [vmem:[%s196 + $0x80] sm:$0xff]
      %v238 = vld [vmem:[%s196 + $0x88] sm:$0xff]
      %v239 = vld [vmem:[%s196 + $0x90] sm:$0xff]
      %v240 = vld [vmem:[%s196 + $0x98] sm:$0xff]
      %v241 = vld [vmem:[%s196 + $0xa0] sm:$0xff]
      %v242 = vld [vmem:[%s196 + $0xa8] sm:$0xff]
      %v243 = vld [vmem:[%s196 + $0xb0] sm:$0xff]
      %v244 = vld [vmem:[%s196 + $0xb8] sm:$0xff]
      %v245 = vld [vmem:[%s196 + $0xc0] sm:$0xff]
      %v246 = vld [vmem:[%s196 + $0xc8] sm:$0xff]
      %v247 = vld [vmem:[%s196 + $0xd0] sm:$0xff]
      %v248 = vld [vmem:[%s196 + $0xd8] sm:$0xff]
      %v249 = vld [vmem:[%s196 + $0xe0] sm:$0xff]
      %v250 = vld [vmem:[%s196 + $0xe8] sm:$0xff]
      %v251 = vld [vmem:[%s196 + $0xf0] sm:$0xff]
      %v252 = vld [vmem:[%s196 + $0xf8] sm:$0xff]
      %v253 = vld [vmem:[%s196 + $0x100] sm:$0xff]
      %v254 = vld [vmem:[%s196 + $0x108] sm:$0xff]
      %v255 = vld [vmem:[%s196 + $0x110] sm:$0xff]
      %v256 = vld [vmem:[%s196 + $0x118] sm:$0xff]
      %v257 = vld [vmem:[%s196 + $0x120] sm:$0xff]
      %v258 = vld [vmem:[%s196 + $0x128] sm:$0xff]
      %v259 = vld [vmem:[%s196 + $0x130] sm:$0xff]
      %v260 = vld [vmem:[%s196 + $0x138] sm:$0xff]
      %v261 = vld [vmem:[%s196 + $0x140] sm:$0xff]
      %v262 = vld [vmem:[%s196 + $0x148] sm:$0xff]
      %v263 = vld [vmem:[%s196 + $0x150] sm:$0xff]
      %v264 = vld [vmem:[%s196 + $0x158] sm:$0xff]
      %v265 = vld [vmem:[%s196 + $0x160] sm:$0xff]
      %v266 = vld [vmem:[%s196 + $0x168] sm:$0xff]
      %v267 = vld [vmem:[%s196 + $0x170] sm:$0xff]
      %v268 = vld [vmem:[%s196 + $0x178] sm:$0xff]
      %v269 = vld [vmem:[%s196 + $0x180] sm:$0xff]
      %v270 = vld [vmem:[%s196 + $0x188] sm:$0xff]
      %v271 = vld [vmem:[%s196 + $0x190] sm:$0xff]
      %v272 = vld [vmem:[%s196 + $0x198] sm:$0xff]
      %v273 = vld [vmem:[%s196 + $0x1a0] sm:$0xff]
      %v274 = vld [vmem:[%s196 + $0x1a8] sm:$0xff]
      %v275 = vld [vmem:[%s196 + $0x1b0] sm:$0xff]
      %v276 = vld [vmem:[%s196 + $0x1b8] sm:$0xff]
      %v277 = vld [vmem:[%s196 + $0x1c0] sm:$0xff]
      %v278 = vld [vmem:[%s196 + $0x1c8] sm:$0xff]
      %v279 = vld [vmem:[%s196 + $0x1d0] sm:$0xff]
      %v280 = vld [vmem:[%s196 + $0x1d8] sm:$0xff]
      %v281 = vld [vmem:[%s196 + $0x1e0] sm:$0xff]
      %v282 = vld [vmem:[%s196 + $0x1e8] sm:$0xff]
      %v283 = vld [vmem:[%s196 + $0x1f0] sm:$0xff]
      %v284 = vld [vmem:[%s196 + $0x1f8] sm:$0xff]
      %v285 = vld [vmem:[%s199] sm:$0x1]
      %v287 = vlaneseq
      %v288 = vshrl.u32 %v287, 7
      %v289 = vsub.s32 0, %v288
      %v290 = vrot.slane %v285, %v289
      %292 = vmatprep.subr.mxu0 0.0
      %293 = vmatpush1.msra.mxu0 %v221
      %294 = vmatprep.subr.mxu0 0.0
      %295 = vmatpush1.msra.mxu0 %v222
      %296 = vmatprep.subr.mxu0 0.0
      %297 = vmatpush1.msra.mxu0 %v223
      %298 = vmatprep.subr.mxu0 0.0
      %299 = vmatpush1.msra.mxu0 %v224
      %300 = vmatprep.subr.mxu0 0.0
      %301 = vmatpush1.msra.mxu0 %v225
      %302 = vmatprep.subr.mxu0 0.0
      %303 = vmatpush1.msra.mxu0 %v226
      %304 = vmatprep.subr.mxu0 0.0
      %305 = vmatpush1.msra.mxu0 %v227
      %306 = vmatprep.subr.mxu0 0.0
      %307 = vmatpush1.msra.mxu0 %v228
      %308 = vmatprep.subr.mxu0 0.0
      %309 = vmatpush1.msra.mxu0 %v229
      %310 = vmatprep.subr.mxu0 0.0
      %311 = vmatpush1.msra.mxu0 %v230
      %312 = vmatprep.subr.mxu0 0.0
      %313 = vmatpush1.msra.mxu0 %v231
      %314 = vmatprep.subr.mxu0 0.0
      %315 = vmatpush1.msra.mxu0 %v232
      %316 = vmatprep.subr.mxu0 0.0
      %317 = vmatpush1.msra.mxu0 %v233
      %318 = vmatprep.subr.mxu0 0.0
      %319 = vmatpush1.msra.mxu0 %v234
      %320 = vmatprep.subr.mxu0 0.0
      %321 = vmatpush1.msra.mxu0 %v235
      %322 = vmatprep.subr.mxu0 0.0
      %323 = vmatpush1.msra.mxu0 %v236
      %324 = vmatprep.subr.mxu0 0.0
      %325 = vmatpush1.msra.mxu0 %v237
      %326 = vmatprep.subr.mxu0 0.0
      %327 = vmatpush1.msra.mxu0 %v238
      %328 = vmatprep.subr.mxu0 0.0
      %329 = vmatpush1.msra.mxu0 %v239
      %330 = vmatprep.subr.mxu0 0.0
      %331 = vmatpush1.msra.mxu0 %v240
      %332 = vmatprep.subr.mxu0 0.0
      %333 = vmatpush1.msra.mxu0 %v241
      %334 = vmatprep.subr.mxu0 0.0
      %335 = vmatpush1.msra.mxu0 %v242
      %336 = vmatprep.subr.mxu0 0.0
      %337 = vmatpush1.msra.mxu0 %v243
      %338 = vmatprep.subr.mxu0 0.0
      %339 = vmatpush1.msra.mxu0 %v244
      %340 = vmatprep.subr.mxu0 0.0
      %341 = vmatpush1.msra.mxu0 %v245
      %342 = vmatprep.subr.mxu0 0.0
      %343 = vmatpush1.msra.mxu0 %v246
      %344 = vmatprep.subr.mxu0 0.0
      %345 = vmatpush1.msra.mxu0 %v247
      %346 = vmatprep.subr.mxu0 0.0
      %347 = vmatpush1.msra.mxu0 %v248
      %348 = vmatprep.subr.mxu0 0.0
      %349 = vmatpush1.msra.mxu0 %v249
      %350 = vmatprep.subr.mxu0 0.0
      %351 = vmatpush1.msra.mxu0 %v250
      %352 = vmatprep.subr.mxu0 0.0
      %353 = vmatpush1.msra.mxu0 %v251
      %354 = vmatprep.subr.mxu0 0.0
      %355 = vmatpush1.msra.mxu0 %v252
      %356 = vmatprep.mubr.f32.mxu0 %v206
      %357 = vmatmul.mubr.f32.gmra.mrb[0].mxu0 %v205
      %v358 = vpop.f32.mrb[0].mxu0
      %v359 = vadd.f32 %v290, %v358
      %v360 = vpop.f32.mrb[0].mxu0
      %361 = vmatprep.mubr.f32.mxu0 %v210
      %362 = vmatmul.mubr.f32.gmra.mrb[0].mxu0 %v209
      %v363 = vpop.f32.mrb[0].mxu0
      %v364 = vadd.f32 %v290, %v363
      %v365 = vpop.f32.mrb[0].mxu0
      %366 = vmatprep.mubr.f32.mxu0 %v214
      %367 = vmatmul.mubr.f32.gmra.mrb[0].mxu0 %v213
      %v368 = vpop.f32.mrb[0].mxu0
      %v369 = vadd.f32 %v290, %v368
      %v370 = vpop.f32.mrb[0].mxu0
      %371 = vmatprep.mubr.f32.mxu0 %v218
      %372 = vmatmul.mubr.f32.gmra.mrb[0].mxu0 %v217
      %v373 = vpop.f32.mrb[0].mxu0
      %v374 = vadd.f32 %v290, %v373
      %v375 = vpop.f32.mrb[0].mxu0
      %376 = vdwg.mxu0
      %377 = vmatprep.subr.mxu0 0.0
      %378 = vmatpush1.msra.mxu0 %v253
      %379 = vmatprep.subr.mxu0 0.0
      %380 = vmatpush1.msra.mxu0 %v254
      %381 = vmatprep.subr.mxu0 0.0
      %382 = vmatpush1.msra.mxu0 %v255
      %383 = vmatprep.subr.mxu0 0.0
      %384 = vmatpush1.msra.mxu0 %v256
      %385 = vmatprep.subr.mxu0 0.0
      %386 = vmatpush1.msra.mxu0 %v257
      %387 = vmatprep.subr.mxu0 0.0
      %388 = vmatpush1.msra.mxu0 %v258
      %389 = vmatprep.subr.mxu0 0.0
      %390 = vmatpush1.msra.mxu0 %v259
      %391 = vmatprep.subr.mxu0 0.0
      %392 = vmatpush1.msra.mxu0 %v260
      %393 = vmatprep.subr.mxu0 0.0
      %394 = vmatpush1.msra.mxu0 %v261
      %395 = vmatprep.subr.mxu0 0.0
      %396 = vmatpush1.msra.mxu0 %v262
      %397 = vmatprep.subr.mxu0 0.0
      %398 = vmatpush1.msra.mxu0 %v263
      %399 = vmatprep.subr.mxu0 0.0
      %400 = vmatpush1.msra.mxu0 %v264
      %401 = vmatprep.subr.mxu0 0.0
      %402 = vmatpush1.msra.mxu0 %v265
      %403 = vmatprep.subr.mxu0 0.0
      %404 = vmatpush1.msra.mxu0 %v266
      %405 = vmatprep.subr.mxu0 0.0
      %406 = vmatpush1.msra.mxu0 %v267
      %407 = vmatprep.subr.mxu0 0.0
      %408 = vmatpush1.msra.mxu0 %v268
      %409 = vmatprep.subr.mxu0 0.0
      %410 = vmatpush1.msra.mxu0 %v269
      %411 = vmatprep.subr.mxu0 0.0
      %412 = vmatpush1.msra.mxu0 %v270
      %413 = vmatprep.subr.mxu0 0.0
      %414 = vmatpush1.msra.mxu0 %v271
      %415 = vmatprep.subr.mxu0 0.0
      %416 = vmatpush1.msra.mxu0 %v272
      %417 = vmatprep.subr.mxu0 0.0
      %418 = vmatpush1.msra.mxu0 %v273
      %419 = vmatprep.subr.mxu0 0.0
      %420 = vmatpush1.msra.mxu0 %v274
      %421 = vmatprep.subr.mxu0 0.0
      %422 = vmatpush1.msra.mxu0 %v275
      %423 = vmatprep.subr.mxu0 0.0
      %424 = vmatpush1.msra.mxu0 %v276
      %425 = vmatprep.subr.mxu0 0.0
      %426 = vmatpush1.msra.mxu0 %v277
      %427 = vmatprep.subr.mxu0 0.0
      %428 = vmatpush1.msra.mxu0 %v278
      %429 = vmatprep.subr.mxu0 0.0
      %430 = vmatpush1.msra.mxu0 %v279
      %431 = vmatprep.subr.mxu0 0.0
      %432 = vmatpush1.msra.mxu0 %v280
      %433 = vmatprep.subr.mxu0 0.0
      %434 = vmatpush1.msra.mxu0 %v281
      %435 = vmatprep.subr.mxu0 0.0
      %436 = vmatpush1.msra.mxu0 %v282
      %437 = vmatprep.subr.mxu0 0.0
      %438 = vmatpush1.msra.mxu0 %v283
      %439 = vmatprep.subr.mxu0 0.0
      %440 = vmatpush1.msra.mxu0 %v284
      %441 = vmatprep.mubr.f32.mxu0 %v208
      %442 = vmatmul.mubr.f32.gmra.mrb[0].mxu0 %v207
      %v443 = vpop.f32.mrb[0].mxu0
      %v444 = vadd.f32 %v359, %v443
      %v445 = vpop.f32.mrb[0].mxu0
      %446 = vmatprep.mubr.f32.mxu0 %v212
      %447 = vmatmul.mubr.f32.gmra.mrb[0].mxu0 %v211
      %v448 = vpop.f32.mrb[0].mxu0
      %v449 = vadd.f32 %v364, %v448
      %v450 = vpop.f32.mrb[0].mxu0
      %451 = vmatprep.mubr.f32.mxu0 %v216
      %452 = vmatmul.mubr.f32.gmra.mrb[0].mxu0 %v215
      %v453 = vpop.f32.mrb[0].mxu0
      %v454 = vadd.f32 %v369, %v453
      %v455 = vpop.f32.mrb[0].mxu0
      %456 = vmatprep.mubr.f32.mxu0 %v220
      %457 = vmatmul.mubr.f32.gmra.mrb[0].mxu0 %v219
      %v458 = vpop.f32.mrb[0].mxu0
      %v459 = vadd.f32 %v374, %v458
      %v460 = vpop.f32.mrb[0].mxu0
      %461 = vdwg.mxu0
      %vm462 = vcmp.gt.f32.partialorder %v444, 0.0
      %vm463 = vcmp.gt.f32.partialorder %v449, 0.0
      %vm464 = vcmp.gt.f32.partialorder %v454, 0.0
      %vm465 = vcmp.gt.f32.partialorder %v459, 0.0
      %v466 = vmin.f32 %v444, 0.0
      %v467 = vmin.f32 %v449, 0.0
      %v468 = vmin.f32 %v454, 0.0
      %v469 = vmin.f32 %v459, 0.0
      %v470 = vmul.f32 %v466, 1.442695
      %v471 = vpow.pop %v470
      %v472 = vmul.f32 %v467, 1.442695
      %v473 = vpow.pop %v472
      %v474 = vmul.f32 %v468, 1.442695
      %v475 = vpow.pop %v474
      %v476 = vmul.f32 %v469, 1.442695
      %v477 = vpow.pop %v476
      %v478 = vsub.f32 %v471, 1.0
      %v479 = vsub.f32 %v473, 1.0
      %v480 = vsub.f32 %v475, 1.0
      %v481 = vsub.f32 %v477, 1.0
      %v482 = vsel %vm462, %v444, %v478
      %v483 = vsel %vm463, %v449, %v479
      %v484 = vsel %vm464, %v454, %v480
      %v485 = vsel %vm465, %v459, %v481
      %486 = vst [vmem:[%s204] sm:$0xff] %v482
      %487 = vst [vmem:[%s204 + $0x8] sm:$0xff] %v483
      %488 = vst [vmem:[%s204 + $0x10] sm:$0xff] %v484
      %489 = vst [vmem:[%s204 + $0x18] sm:$0xff] %v485
      %p490 = scmp.lt.s32.totalorder %s14, 1
      %s491 = scalar_select %p490, %s14, 1
      %s492 = smul.addr %s491, 4
      %s493 = smul.addr %s492, 8
      %s494 = scalar_lea.vmem %s3, %s493
      // Predicated region
      $region33: #{triple_dqn_forward.5} parent=31 // pred_check
        %p495 = pneg %p110
      $region34: #{triple_dqn_forward.5} parent=31 // pred_check_branch
        %497 = sbr.rel (%p495) target = $region36
      $region35: #{triple_dqn_forward.5} parent=31 // pred_region
        _
      $region36: #{triple_dqn_forward.5} parent=31 // pred_fallthru
        _
    $region32: #{triple_dqn_forward.5} parent=5 // pred_fallthru
      _
    %p498 = scmp.le.s32.totalorder 2, %s9
    // Predicated region
    $region37: #{triple_dqn_forward.5} parent=5 // pred_check
      %p499 = pneg %p498
    $region38: #{triple_dqn_forward.5} parent=5 // pred_check_branch
      %501 = sbr.rel (%p499) target = $region40
    $region39: #{triple_dqn_forward.5} parent=5 // pred_region
      %s502 = ssub.s32 %s9, 2
      // Predicated region
      $region41: #{triple_dqn_forward.5} parent=39 // pred_check
        %p503 = pneg %p116
      $region42: #{triple_dqn_forward.5} parent=39 // pred_check_branch
        %505 = sbr.rel (%p503) target = $region44
      $region43: #{triple_dqn_forward.5} parent=39 // pred_region
        %p506 = scmp.lt.s32.totalorder %s15, 1
        %s507 = scalar_select %p506, %s15, 1
        %s508 = smul.addr %s507, 4
        %s509 = smul.addr %s508, 8
        %s510 = scalar_lea.vmem %s3, %s509
      $region44: #{triple_dqn_forward.5} parent=39 // pred_fallthru
        _
    $region40: #{triple_dqn_forward.5} parent=5 // pred_fallthru
      _
  $region6: #{triple_dqn_forward.5} parent=0 // loop_footer
    %s13 = sadd.s32 1, %s9
  $region7: #{triple_dqn_forward.5} parent=0 // loop_footer_branch
    %8 = sbr.rel target = $region3
  $region8: #{triple_dqn_forward.5} parent=0 // loop_exit
    _

// kernel: triple_dqn_forward.6
$region0: #{triple_dqn_forward.6}
  #allocation0 [shape = 'u32[]', space=smem, size = 0x4, offset = 0x4, fixed_abs, tag = 'smem constant byte address 0x4 - core index']
  #allocation1 [shape = 'u32[144,128]{1,0:T(1,128)}', space=vmem, size = 0x12000, scoped, tag = 'internal scratch']
  %s0 = inlined_call_operand.vmem [shape: f32[2,8,384], index: 0, kind: input, shape index: {}]
  %s1 = inlined_call_operand.vmem [shape: f32[2,384,128], index: 1, kind: input, shape index: {}]
  %s2 = inlined_call_operand.vmem [shape: f32[2,1,128], index: 2, kind: input, shape index: {}]
  %s3 = inlined_call_operand.vmem [shape: f32[2,8,128], index: 3, kind: output, shape index: {}]
  %s4 = sld [smem:[#allocation0]]
  $region45: #{triple_dqn_forward.6} parent=0
    _
  %s6 = ssub.s32 1, %s4
  %s7 = scalar_select 0, %s6, %s4
  loop: start=0, step=1, limit=4
  $region2: #{triple_dqn_forward.6} parent=0 // loop_pre_header
    _
  $region3: #{triple_dqn_forward.6} parent=0 // loop_header
    %s9 = sphi 0, %s13
    %p10 = scmp.ge.s32.totalorder %s9, 4
    %s19 = sphi 0, %s21
    %s22 = sphi 0, %s19
    %s23 = sphi 0, %s22
    %s39 = sphi 0, %s23
    %s45 = sphi 0, %s47
    %s48 = sphi 0, %s45
    %s49 = sphi 0, %s48
    %s65 = sphi 0, %s49
    %s71 = sphi 0, %s73
    %s74 = sphi 0, %s71
    %s75 = sphi 0, %s74
    %s91 = sphi 0, %s75
    %s97 = sphi 0, %s99
    %s100 = sphi 0, %s97
    %s101 = sphi 0, %s100
    %s117 = sphi 0, %s101
  $region4: #{triple_dqn_forward.6} parent=0 // loop_header_branch
    %12 = sbr.rel (%p10) target = $region8
  $region5: #{triple_dqn_forward.6} parent=0 // loop_body
    %s14 = ssub.s32 %s9, 1
    %s15 = ssub.s32 %s9, 2
    %s16 = sadd.s32 %s9, 1
    %s17 = ssub.s32 %s9, %s16
    %p18 = scmp.eq.s32.totalorder %s17, 0
    %s20 = sadd.s32 %s19, 1
    %s21 = scalar_select %p18, %s19, %s20
    %p24 = pneg %p18
    %p25 = scmp.eq.s32.totalorder %s9, 1
    %p26 = por %p24, %p25
    %p27 = scmp.ne.s32.totalorder %s19, %s22
    %p28 = scmp.eq.s32.totalorder %s9, 0
    %p29 = por %p27, %p28
    %p30 = scmp.ne.s32.totalorder %s19, %s22
    %p31 = scmp.eq.s32.totalorder %s14, 1
    %p32 = por %p30, %p31
    %p33 = scmp.ne.s32.totalorder %s22, %s23
    %p34 = scmp.eq.s32.totalorder %s14, 0
    %p35 = por %p33, %p34
    %p36 = scmp.ne.s32.totalorder %s22, %s23
    %p37 = scmp.eq.s32.totalorder %s15, 1
    %p38 = por %p36, %p37
    %p40 = scmp.ne.s32.totalorder %s23, %s39
    %p41 = scmp.eq.s32.totalorder %s15, 0
    %p42 = por %p40, %p41
    %s43 = ssub.s32 %s9, %s16
    %p44 = scmp.eq.s32.totalorder %s43, 0
    %s46 = sadd.s32 %s45, 1
    %s47 = scalar_select %p44, %s45, %s46
    %p50 = pneg %p44
    %p51 = scmp.eq.s32.totalorder %s9, 1
    %p52 = por %p50, %p51
    %p53 = scmp.ne.s32.totalorder %s45, %s48
    %p54 = scmp.eq.s32.totalorder %s9, 0
    %p55 = por %p53, %p54
    %p56 = scmp.ne.s32.totalorder %s45, %s48
    %p57 = scmp.eq.s32.totalorder %s14, 1
    %p58 = por %p56, %p57
    %p59 = scmp.ne.s32.totalorder %s48, %s49
    %p60 = scmp.eq.s32.totalorder %s14, 0
    %p61 = por %p59, %p60
    %p62 = scmp.ne.s32.totalorder %s48, %s49
    %p63 = scmp.eq.s32.totalorder %s15, 1
    %p64 = por %p62, %p63
    %p66 = scmp.ne.s32.totalorder %s49, %s65
    %p67 = scmp.eq.s32.totalorder %s15, 0
    %p68 = por %p66, %p67
    %s69 = ssub.s32 %s9, %s16
    %p70 = scmp.eq.s32.totalorder %s69, 0
    %s72 = sadd.s32 %s71, 1
    %s73 = scalar_select %p70, %s71, %s72
    %p76 = pneg %p70
    %p77 = scmp.eq.s32.totalorder %s9, 1
    %p78 = por %p76, %p77
    %p79 = scmp.ne.s32.totalorder %s71, %s74
    %p80 = scmp.eq.s32.totalorder %s9, 0
    %p81 = por %p79, %p80
    %p82 = scmp.ne.s32.totalorder %s71, %s74
    %p83 = scmp.eq.s32.totalorder %s14, 1
    %p84 = por %p82, %p83
    %p85 = scmp.ne.s32.totalorder %s74, %s75
    %p86 = scmp.eq.s32.totalorder %s14, 0
    %p87 = por %p85, %p86
    %p88 = scmp.ne.s32.totalorder %s74, %s75
    %p89 = scmp.eq.s32.totalorder %s15, 1
    %p90 = por %p88, %p89
    %p92 = scmp.ne.s32.totalorder %s75, %s91
    %p93 = scmp.eq.s32.totalorder %s15, 0
    %p94 = por %p92, %p93
    %s95 = ssub.s32 %s9, %s16
    %p96 = scmp.eq.s32.totalorder %s95, 0
    %s98 = sadd.s32 %s97, 1
    %s99 = scalar_select %p96, %s97, %s98
    %p102 = pneg %p96
    %p103 = scmp.eq.s32.totalorder %s9, 1
    %p104 = por %p102, %p103
    %p105 = scmp.ne.s32.totalorder %s97, %s100
    %p106 = scmp.eq.s32.totalorder %s9, 0
    %p107 = por %p105, %p106
    %p108 = scmp.ne.s32.totalorder %s97, %s100
    %p109 = scmp.eq.s32.totalorder %s14, 1
    %p110 = por %p108, %p109
    %p111 = scmp.ne.s32.totalorder %s100, %s101
    %p112 = scmp.eq.s32.totalorder %s14, 0
    %p113 = por %p111, %p112
    %p114 = scmp.ne.s32.totalorder %s100, %s101
    %p115 = scmp.eq.s32.totalorder %s15, 1
    %p116 = por %p114, %p115
    %p118 = scmp.ne.s32.totalorder %s101, %s117
    %p119 = scmp.eq.s32.totalorder %s15, 0
    %p120 = por %p118, %p119
    %p121 = scmp.le.s32.totalorder 1, %s9
    %p122 = scmp.lt.s32.totalorder %s9, 3
    %p123 = pnand %p121, %p122
    %p124 = pneg %p123
    // Predicated region
    $region9: #{triple_dqn_forward.6} parent=5 // pred_check
      _
    $region10: #{triple_dqn_forward.6} parent=5 // pred_check_branch
      %126 = sbr.rel (%p123) target = $region12
    $region11: #{triple_dqn_forward.6} parent=5 // pred_region
      %s127 = ssub.s32 %s9, 1
    $region12: #{triple_dqn_forward.6} parent=5 // pred_fallthru
      _
    %p128 = scmp.lt.s32.totalorder %s9, 2
    // Predicated region
    $region13: #{triple_dqn_forward.6} parent=5 // pred_check
      %p129 = pneg %p128
    $region14: #{triple_dqn_forward.6} parent=5 // pred_check_branch
      %131 = sbr.rel (%p129) target = $region16
    $region15: #{triple_dqn_forward.6} parent=5 // pred_region
      // Predicated region
      $region17: #{triple_dqn_forward.6} parent=15 // pred_check
        %p132 = pneg %p29
      $region18: #{triple_dqn_forward.6} parent=15 // pred_check_branch
        %134 = sbr.rel (%p132) target = $region20
      $region19: #{triple_dqn_forward.6} parent=15 // pred_region
        %p135 = scmp.lt.s32.totalorder %s9, 1
        %s136 = scalar_select %p135, %s9, 1
        %s137 = smul.addr %s136, 3
        %s138 = smul.addr %s137, 8
        %s139 = scalar_lea.vmem %s0, %s138
      $region20: #{triple_dqn_forward.6} parent=15 // pred_fallthru
        _
      // Predicated region
      $region21: #{triple_dqn_forward.6} parent=15 // pred_check
        %p140 = pneg %p55
      $region22: #{triple_dqn_forward.6} parent=15 // pred_check_branch
        %142 = sbr.rel (%p140) target = $region24
      $region23: #{triple_dqn_forward.6} parent=15 // pred_region
        %p143 = scmp.lt.s32.totalorder %s9, 1
        %s144 = scalar_select %p143, %s9, 1
        %s145 = smul.addr %s144, 48
        %s146 = smul.addr %s145, 8
        %s147 = scalar_lea.vmem %s1, %s146
      $region24: #{triple_dqn_forward.6} parent=15 // pred_fallthru
        _
      // Predicated region
      $region25: #{triple_dqn_forward.6} parent=15 // pred_check
        %p148 = pneg %p81
      $region26: #{triple_dqn_forward.6} parent=15 // pred_check_branch
        %150 = sbr.rel (%p148) target = $region28
      $region27: #{triple_dqn_forward.6} parent=15 // pred_region
        %p151 = scmp.lt.s32.totalorder %s9, 1
        %s152 = scalar_select %p151, %s9, 1
        %s153 = scalar_lea.vmem %s2, %s152
      $region28: #{triple_dqn_forward.6} parent=15 // pred_fallthru
        _
    $region16: #{triple_dqn_forward.6} parent=5 // pred_fallthru
      _
    %p154 = scmp.le.s32.totalorder 1, %s9
    %p155 = scmp.lt.s32.totalorder %s9, 3
    %p156 = pnand %p154, %p155
    %p157 = pneg %p156
    // Predicated region
    $region29: #{triple_dqn_forward.6} parent=5 // pred_check
      _
    $region30: #{triple_dqn_forward.6} parent=5 // pred_check_branch
      %159 = sbr.rel (%p156) target = $region32
    $region31: #{triple_dqn_forward.6} parent=5 // pred_region
      %s160 = ssub.s32 %s9, 1
      %p161 = scmp.lt.s32.totalorder %s14, 1
      %s162 = scalar_select %p161, %s14, 1
      %s163 = smul.addr %s162, 3
      %s164 = smul.addr %s163, 8
      %s165 = scalar_lea.vmem %s0, %s164
      %p166 = pneg %p35
      %p167 = pneg %p32
      %p168 = scmp.lt.s32.totalorder %s14, 1
      %s169 = scalar_select %p168, %s14, 1
      %s170 = smul.addr %s169, 48
      %s171 = smul.addr %s170, 8
      %s172 = scalar_lea.vmem %s1, %s171
      %p173 = pneg %p61
      %p174 = pneg %p58
      %p175 = scmp.lt.s32.totalorder %s14, 1
      %s176 = scalar_select %p175, %s14, 1
      %s177 = scalar_lea.vmem %s2, %s176
      %p178 = pneg %p87
      %p179 = pneg %p84
      %p180 = pneg %p113
      %p181 = pneg %p110
      %p182 = scmp.lt.s32.totalorder %s14, 1
      %s183 = scalar_select %p182, %s14, 1
      %s184 = smul.addr %s183, 8
      %s185 = scalar_lea.vmem %s3, %s184
      %p186 = scmp.lt.s32.totalorder %s14, 1
      %s187 = scalar_select %p186, %s14, 1
      %s188 = smul.addr %s187, 3
      %s189 = smul.addr %s188, 8
      %s190 = scalar_lea.vmem %s0, %s189
      %p191 = scmp.lt.s32.totalorder %s14, 1
      %s192 = scalar_select %p191, %s14, 1
      %s193 = smul.addr %s192, 48
      %s194 = smul.addr %s193, 8
      %s195 = scalar_lea.vmem %s1, %s194
      %p196 = scmp.lt.s32.totalorder %s14, 1
      %s197 = scalar_select %p196, %s14, 1
      %s198 = scalar_lea.vmem %s2, %s197
      %p199 = scmp.lt.s32.totalorder %s14, 1
      %s200 = scalar_select %p199, %s14, 1
      %s201 = smul.addr %s200, 8
      %s202 = scalar_lea.vmem %s3, %s201
      %v203 = vld [vmem:[%s190] sm:$0xff]
      %v204 = vld [vmem:[%s190 + $0x8] sm:$0xff]
      %v205 = vld [vmem:[%s190 + $0x10] sm:$0xff]
      %v206 = vld [vmem:[%s195] sm:$0xff]
      %v207 = vld [vmem:[%s195 + $0x8] sm:$0xff]
      %v208 = vld [vmem:[%s195 + $0x10] sm:$0xff]
      %v209 = vld [vmem:[%s195 + $0x18] sm:$0xff]
      %v210 = vld [vmem:[%s195 + $0x20] sm:$0xff]
      %v211 = vld [vmem:[%s195 + $0x28] sm:$0xff]
      %v212 = vld [vmem:[%s195 + $0x30] sm:$0xff]
      %v213 = vld [vmem:[%s195 + $0x38] sm:$0xff]
      %v214 = vld [vmem:[%s195 + $0x40] sm:$0xff]
      %v215 = vld [vmem:[%s195 + $0x48] sm:$0xff]
      %v216 = vld [vmem:[%s195 + $0x50] sm:$0xff]
      %v217 = vld [vmem:[%s195 + $0x58] sm:$0xff]
      %v218 = vld [vmem:[%s195 + $0x60] sm:$0xff]
      %v219 = vld [vmem:[%s195 + $0x68] sm:$0xff]
      %v220 = vld [vmem:[%s195 + $0x70] sm:$0xff]
      %v221 = vld [vmem:[%s195 + $0x78] sm:$0xff]
      %v222 = vld [vmem:[%s195 + $0x80] sm:$0xff]
      %v223 = vld [vmem:[%s195 + $0x88] sm:$0xff]
      %v224 = vld [vmem:[%s195 + $0x90] sm:$0xff]
      %v225 = vld [vmem:[%s195 + $0x98] sm:$0xff]
      %v226 = vld [vmem:[%s195 + $0xa0] sm:$0xff]
      %v227 = vld [vmem:[%s195 + $0xa8] sm:$0xff]
      %v228 = vld [vmem:[%s195 + $0xb0] sm:$0xff]
      %v229 = vld [vmem:[%s195 + $0xb8] sm:$0xff]
      %v230 = vld [vmem:[%s195 + $0xc0] sm:$0xff]
      %v231 = vld [vmem:[%s195 + $0xc8] sm:$0xff]
      %v232 = vld [vmem:[%s195 + $0xd0] sm:$0xff]
      %v233 = vld [vmem:[%s195 + $0xd8] sm:$0xff]
      %v234 = vld [vmem:[%s195 + $0xe0] sm:$0xff]
      %v235 = vld [vmem:[%s195 + $0xe8] sm:$0xff]
      %v236 = vld [vmem:[%s195 + $0xf0] sm:$0xff]
      %v237 = vld [vmem:[%s195 + $0xf8] sm:$0xff]
      %v238 = vld [vmem:[%s195 + $0x100] sm:$0xff]
      %v239 = vld [vmem:[%s195 + $0x108] sm:$0xff]
      %v240 = vld [vmem:[%s195 + $0x110] sm:$0xff]
      %v241 = vld [vmem:[%s195 + $0x118] sm:$0xff]
      %v242 = vld [vmem:[%s195 + $0x120] sm:$0xff]
      %v243 = vld [vmem:[%s195 + $0x128] sm:$0xff]
      %v244 = vld [vmem:[%s195 + $0x130] sm:$0xff]
      %v245 = vld [vmem:[%s195 + $0x138] sm:$0xff]
      %v246 = vld [vmem:[%s195 + $0x140] sm:$0xff]
      %v247 = vld [vmem:[%s195 + $0x148] sm:$0xff]
      %v248 = vld [vmem:[%s195 + $0x150] sm:$0xff]
      %v249 = vld [vmem:[%s195 + $0x158] sm:$0xff]
      %v250 = vld [vmem:[%s195 + $0x160] sm:$0xff]
      %v251 = vld [vmem:[%s195 + $0x168] sm:$0xff]
      %v252 = vld [vmem:[%s195 + $0x170] sm:$0xff]
      %v253 = vld [vmem:[%s195 + $0x178] sm:$0xff]
      %v254 = vld [vmem:[%s198] sm:$0x1]
      %v256 = vlaneseq
      %v257 = vshrl.u32 %v256, 7
      %v258 = vsub.s32 0, %v257
      %v259 = vrot.slane %v254, %v258
      %261 = vmatprep.subr.mxu0 0.0
      %262 = vmatpush1.msra.mxu0 %v206
      %263 = vmatprep.subr.mxu0 0.0
      %264 = vmatpush1.msra.mxu0 %v207
      %265 = vmatprep.subr.mxu0 0.0
      %266 = vmatpush1.msra.mxu0 %v208
      %267 = vmatprep.subr.mxu0 0.0
      %268 = vmatpush1.msra.mxu0 %v209
      %269 = vmatprep.subr.mxu0 0.0
      %270 = vmatpush1.msra.mxu0 %v210
      %271 = vmatprep.subr.mxu0 0.0
      %272 = vmatpush1.msra.mxu0 %v211
      %273 = vmatprep.subr.mxu0 0.0
      %274 = vmatpush1.msra.mxu0 %v212
      %275 = vmatprep.subr.mxu0 0.0
      %276 = vmatpush1.msra.mxu0 %v213
      %277 = vmatprep.subr.mxu0 0.0
      %278 = vmatpush1.msra.mxu0 %v214
      %279 = vmatprep.subr.mxu0 0.0
      %280 = vmatpush1.msra.mxu0 %v215
      %281 = vmatprep.subr.mxu0 0.0
      %282 = vmatpush1.msra.mxu0 %v216
      %283 = vmatprep.subr.mxu0 0.0
      %284 = vmatpush1.msra.mxu0 %v217
      %285 = vmatprep.subr.mxu0 0.0
      %286 = vmatpush1.msra.mxu0 %v218
      %287 = vmatprep.subr.mxu0 0.0
      %288 = vmatpush1.msra.mxu0 %v219
      %289 = vmatprep.subr.mxu0 0.0
      %290 = vmatpush1.msra.mxu0 %v220
      %291 = vmatprep.subr.mxu0 0.0
      %292 = vmatpush1.msra.mxu0 %v221
      %293 = vmatprep.subr.mxu0 0.0
      %294 = vmatpush1.msra.mxu0 %v222
      %295 = vmatprep.subr.mxu0 0.0
      %296 = vmatpush1.msra.mxu0 %v223
      %297 = vmatprep.subr.mxu0 0.0
      %298 = vmatpush1.msra.mxu0 %v224
      %299 = vmatprep.subr.mxu0 0.0
      %300 = vmatpush1.msra.mxu0 %v225
      %301 = vmatprep.subr.mxu0 0.0
      %302 = vmatpush1.msra.mxu0 %v226
      %303 = vmatprep.subr.mxu0 0.0
      %304 = vmatpush1.msra.mxu0 %v227
      %305 = vmatprep.subr.mxu0 0.0
      %306 = vmatpush1.msra.mxu0 %v228
      %307 = vmatprep.subr.mxu0 0.0
      %308 = vmatpush1.msra.mxu0 %v229
      %309 = vmatprep.subr.mxu0 0.0
      %310 = vmatpush1.msra.mxu0 %v230
      %311 = vmatprep.subr.mxu0 0.0
      %312 = vmatpush1.msra.mxu0 %v231
      %313 = vmatprep.subr.mxu0 0.0
      %314 = vmatpush1.msra.mxu0 %v232
      %315 = vmatprep.subr.mxu0 0.0
      %316 = vmatpush1.msra.mxu0 %v233
      %317 = vmatprep.subr.mxu0 0.0
      %318 = vmatpush1.msra.mxu0 %v234
      %319 = vmatprep.subr.mxu0 0.0
      %320 = vmatpush1.msra.mxu0 %v235
      %321 = vmatprep.subr.mxu0 0.0
      %322 = vmatpush1.msra.mxu0 %v236
      %323 = vmatprep.subr.mxu0 0.0
      %324 = vmatpush1.msra.mxu0 %v237
      %325 = vmatprep.mubr.f32.mxu0 %v204
      %326 = vmatmul.mubr.f32.gmra.mrb[0].mxu0 %v203
      %v327 = vpop.f32.mrb[0].mxu0
      %v328 = vadd.f32 %v259, %v327
      %v329 = vpop.f32.mrb[0].mxu0
      %330 = vdwg.mxu0
      %331 = vmatprep.subr.mxu0 0.0
      %332 = vmatpush1.msra.mxu0 %v238
      %333 = vmatprep.subr.mxu0 0.0
      %334 = vmatpush1.msra.mxu0 %v239
      %335 = vmatprep.subr.mxu0 0.0
      %336 = vmatpush1.msra.mxu0 %v240
      %337 = vmatprep.subr.mxu0 0.0
      %338 = vmatpush1.msra.mxu0 %v241
      %339 = vmatprep.subr.mxu0 0.0
      %340 = vmatpush1.msra.mxu0 %v242
      %341 = vmatprep.subr.mxu0 0.0
      %342 = vmatpush1.msra.mxu0 %v243
      %343 = vmatprep.subr.mxu0 0.0
      %344 = vmatpush1.msra.mxu0 %v244
      %345 = vmatprep.subr.mxu0 0.0
      %346 = vmatpush1.msra.mxu0 %v245
      %347 = vmatprep.subr.mxu0 0.0
      %348 = vmatpush1.msra.mxu0 %v246
      %349 = vmatprep.subr.mxu0 0.0
      %350 = vmatpush1.msra.mxu0 %v247
      %351 = vmatprep.subr.mxu0 0.0
      %352 = vmatpush1.msra.mxu0 %v248
      %353 = vmatprep.subr.mxu0 0.0
      %354 = vmatpush1.msra.mxu0 %v249
      %355 = vmatprep.subr.mxu0 0.0
      %356 = vmatpush1.msra.mxu0 %v250
      %357 = vmatprep.subr.mxu0 0.0
      %358 = vmatpush1.msra.mxu0 %v251
      %359 = vmatprep.subr.mxu0 0.0
      %360 = vmatpush1.msra.mxu0 %v252
      %361 = vmatprep.subr.mxu0 0.0
      %362 = vmatpush1.msra.mxu0 %v253
      %363 = vmatprep.subr.mxu0 0.0
      %364 = vmatpush1.msra.mxu0 0.0
      %365 = vmatprep.subr.mxu0 0.0
      %366 = vmatpush1.msra.mxu0 0.0
      %367 = vmatprep.subr.mxu0 0.0
      %368 = vmatpush1.msra.mxu0 0.0
      %369 = vmatprep.subr.mxu0 0.0
      %370 = vmatpush1.msra.mxu0 0.0
      %371 = vmatprep.subr.mxu0 0.0
      %372 = vmatpush1.msra.mxu0 0.0
      %373 = vmatprep.subr.mxu0 0.0
      %374 = vmatpush1.msra.mxu0 0.0
      %375 = vmatprep.subr.mxu0 0.0
      %376 = vmatpush1.msra.mxu0 0.0
      %377 = vmatprep.subr.mxu0 0.0
      %378 = vmatpush1.msra.mxu0 0.0
      %379 = vmatprep.subr.mxu0 0.0
      %380 = vmatpush1.msra.mxu0 0.0
      %381 = vmatprep.subr.mxu0 0.0
      %382 = vmatpush1.msra.mxu0 0.0
      %383 = vmatprep.subr.mxu0 0.0
      %384 = vmatpush1.msra.mxu0 0.0
      %385 = vmatprep.subr.mxu0 0.0
      %386 = vmatpush1.msra.mxu0 0.0
      %387 = vmatprep.subr.mxu0 0.0
      %388 = vmatpush1.msra.mxu0 0.0
      %389 = vmatprep.subr.mxu0 0.0
      %390 = vmatpush1.msra.mxu0 0.0
      %391 = vmatprep.subr.mxu0 0.0
      %392 = vmatpush1.msra.mxu0 0.0
      %393 = vmatprep.subr.mxu0 0.0
      %394 = vmatpush1.msra.mxu0 0.0
      %395 = vmatprep.mubr.f32.mxu0 0.0
      %396 = vmatmul.mubr.f32.gmra.mrb[0].mxu0 %v205
      %v397 = vpop.f32.mrb[0].mxu0
      %v398 = vadd.f32 %v328, %v397
      %v399 = vpop.f32.mrb[0].mxu0
      %400 = vdwg.mxu0
      %vm401 = vcmp.gt.f32.partialorder %v398, 0.0
      %v402 = vmin.f32 %v398, 0.0
      %v403 = vmul.f32 %v402, 1.442695
      %v404 = vpow.pop %v403
      %v405 = vsub.f32 %v404, 1.0
      %v406 = vsel %vm401, %v398, %v405
      %407 = vst [vmem:[%s202] sm:$0xff] %v406
      %p408 = scmp.lt.s32.totalorder %s14, 1
      %s409 = scalar_select %p408, %s14, 1
      %s410 = smul.addr %s409, 8
      %s411 = scalar_lea.vmem %s3, %s410
      // Predicated region
      $region33: #{triple_dqn_forward.6} parent=31 // pred_check
        %p412 = pneg %p110
      $region34: #{triple_dqn_forward.6} parent=31 // pred_check_branch
        %414 = sbr.rel (%p412) target = $region36
      $region35: #{triple_dqn_forward.6} parent=31 // pred_region
        _
      $region36: #{triple_dqn_forward.6} parent=31 // pred_fallthru
        _
    $region32: #{triple_dqn_forward.6} parent=5 // pred_fallthru
      _
    %p415 = scmp.le.s32.totalorder 2, %s9
    // Predicated region
    $region37: #{triple_dqn_forward.6} parent=5 // pred_check
      %p416 = pneg %p415
    $region38: #{triple_dqn_forward.6} parent=5 // pred_check_branch
      %418 = sbr.rel (%p416) target = $region40
    $region39: #{triple_dqn_forward.6} parent=5 // pred_region
      %s419 = ssub.s32 %s9, 2
      // Predicated region
      $region41: #{triple_dqn_forward.6} parent=39 // pred_check
        %p420 = pneg %p116
      $region42: #{triple_dqn_forward.6} parent=39 // pred_check_branch
        %422 = sbr.rel (%p420) target = $region44
      $region43: #{triple_dqn_forward.6} parent=39 // pred_region
        %p423 = scmp.lt.s32.totalorder %s15, 1
        %s424 = scalar_select %p423, %s15, 1
        %s425 = smul.addr %s424, 8
        %s426 = scalar_lea.vmem %s3, %s425
      $region44: #{triple_dqn_forward.6} parent=39 // pred_fallthru
        _
    $region40: #{triple_dqn_forward.6} parent=5 // pred_fallthru
      _
  $region6: #{triple_dqn_forward.6} parent=0 // loop_footer
    %s13 = sadd.s32 1, %s9
  $region7: #{triple_dqn_forward.6} parent=0 // loop_footer_branch
    %8 = sbr.rel target = $region3
  $region8: #{triple_dqn_forward.6} parent=0 // loop_exit
    _

// kernel: triple_dqn_forward.7
$region0: #{triple_dqn_forward.7}
  #allocation0 [shape = 'u32[]', space=smem, size = 0x4, offset = 0x4, fixed_abs, tag = 'smem constant byte address 0x4 - core index']
  #allocation1 [shape = 'u32[144,128]{1,0:T(1,128)}', space=vmem, size = 0x12000, scoped, tag = 'internal scratch']
  %s0 = inlined_call_operand.vmem [shape: f32[2,8,640], index: 0, kind: input, shape index: {}]
  %s1 = inlined_call_operand.vmem [shape: f32[2,640,128], index: 1, kind: input, shape index: {}]
  %s2 = inlined_call_operand.vmem [shape: f32[2,1,128], index: 2, kind: input, shape index: {}]
  %s3 = inlined_call_operand.vmem [shape: f32[2,128,256], index: 3, kind: input, shape index: {}]
  %s4 = inlined_call_operand.vmem [shape: f32[2,1,256], index: 4, kind: input, shape index: {}]
  %s5 = inlined_call_operand.vmem [shape: f32[2,256,256], index: 5, kind: input, shape index: {}]
  %s6 = inlined_call_operand.vmem [shape: f32[2,1,256], index: 6, kind: input, shape index: {}]
  %s7 = inlined_call_operand.vmem [shape: f32[2,256,128], index: 7, kind: input, shape index: {}]
  %s8 = inlined_call_operand.vmem [shape: f32[2,1,128], index: 8, kind: input, shape index: {}]
  %s9 = inlined_call_operand.vmem [shape: f32[2,8,128], index: 9, kind: output, shape index: {}]
  %s10 = sld [smem:[#allocation0]]
  $region69: #{triple_dqn_forward.7} parent=0
    _
  %s12 = ssub.s32 1, %s10
  %s13 = scalar_select 0, %s12, %s10
  loop: start=0, step=1, limit=4
  $region2: #{triple_dqn_forward.7} parent=0 // loop_pre_header
    _
  $region3: #{triple_dqn_forward.7} parent=0 // loop_header
    %s15 = sphi 0, %s19
    %p16 = scmp.ge.s32.totalorder %s15, 4
    %s25 = sphi 0, %s27
    %s28 = sphi 0, %s25
    %s29 = sphi 0, %s28
    %s45 = sphi 0, %s29
    %s51 = sphi 0, %s53
    %s54 = sphi 0, %s51
    %s55 = sphi 0, %s54
    %s71 = sphi 0, %s55
    %s77 = sphi 0, %s79
    %s80 = sphi 0, %s77
    %s81 = sphi 0, %s80
    %s97 = sphi 0, %s81
    %s103 = sphi 0, %s105
    %s106 = sphi 0, %s103
    %s107 = sphi 0, %s106
    %s123 = sphi 0, %s107
    %s129 = sphi 0, %s131
    %s132 = sphi 0, %s129
    %s133 = sphi 0, %s132
    %s149 = sphi 0, %s133
    %s155 = sphi 0, %s157
    %s158 = sphi 0, %s155
    %s159 = sphi 0, %s158
    %s175 = sphi 0, %s159
    %s181 = sphi 0, %s183
    %s184 = sphi 0, %s181
    %s185 = sphi 0, %s184
    %s201 = sphi 0, %s185
    %s207 = sphi 0, %s209
    %s210 = sphi 0, %s207
    %s211 = sphi 0, %s210
    %s227 = sphi 0, %s211
    %s233 = sphi 0, %s235
    %s236 = sphi 0, %s233
    %s237 = sphi 0, %s236
    %s253 = sphi 0, %s237
    %s259 = sphi 0, %s261
    %s262 = sphi 0, %s259
    %s263 = sphi 0, %s262
    %s279 = sphi 0, %s263
  $region4: #{triple_dqn_forward.7} parent=0 // loop_header_branch
    %18 = sbr.rel (%p16) target = $region8
  $region5: #{triple_dqn_forward.7} parent=0 // loop_body
    %s20 = ssub.s32 %s15, 1
    %s21 = ssub.s32 %s15, 2
    %s22 = sadd.s32 %s15, 1
    %s23 = ssub.s32 %s15, %s22
    %p24 = scmp.eq.s32.totalorder %s23, 0
    %s26 = sadd.s32 %s25, 1
    %s27 = scalar_select %p24, %s25, %s26
    %p30 = pneg %p24
    %p31 = scmp.eq.s32.totalorder %s15, 1
    %p32 = por %p30, %p31
    %p33 = scmp.ne.s32.totalorder %s25, %s28
    %p34 = scmp.eq.s32.totalorder %s15, 0
    %p35 = por %p33, %p34
    %p36 = scmp.ne.s32.totalorder %s25, %s28
    %p37 = scmp.eq.s32.totalorder %s20, 1
    %p38 = por %p36, %p37
    %p39 = scmp.ne.s32.totalorder %s28, %s29
    %p40 = scmp.eq.s32.totalorder %s20, 0
    %p41 = por %p39, %p40
    %p42 = scmp.ne.s32.totalorder %s28, %s29
    %p43 = scmp.eq.s32.totalorder %s21, 1
    %p44 = por %p42, %p43
    %p46 = scmp.ne.s32.totalorder %s29, %s45
    %p47 = scmp.eq.s32.totalorder %s21, 0
    %p48 = por %p46, %p47
    %s49 = ssub.s32 %s15, %s22
    %p50 = scmp.eq.s32.totalorder %s49, 0
    %s52 = sadd.s32 %s51, 1
    %s53 = scalar_select %p50, %s51, %s52
    %p56 = pneg %p50
    %p57 = scmp.eq.s32.totalorder %s15, 1
    %p58 = por %p56, %p57
    %p59 = scmp.ne.s32.totalorder %s51, %s54
    %p60 = scmp.eq.s32.totalorder %s15, 0
    %p61 = por %p59, %p60
    %p62 = scmp.ne.s32.totalorder %s51, %s54
    %p63 = scmp.eq.s32.totalorder %s20, 1
    %p64 = por %p62, %p63
    %p65 = scmp.ne.s32.totalorder %s54, %s55
    %p66 = scmp.eq.s32.totalorder %s20, 0
    %p67 = por %p65, %p66
    %p68 = scmp.ne.s32.totalorder %s54, %s55
    %p69 = scmp.eq.s32.totalorder %s21, 1
    %p70 = por %p68, %p69
    %p72 = scmp.ne.s32.totalorder %s55, %s71
    %p73 = scmp.eq.s32.totalorder %s21, 0
    %p74 = por %p72, %p73
    %s75 = ssub.s32 %s15, %s22
    %p76 = scmp.eq.s32.totalorder %s75, 0
    %s78 = sadd.s32 %s77, 1
    %s79 = scalar_select %p76, %s77, %s78
    %p82 = pneg %p76
    %p83 = scmp.eq.s32.totalorder %s15, 1
    %p84 = por %p82, %p83
    %p85 = scmp.ne.s32.totalorder %s77, %s80
    %p86 = scmp.eq.s32.totalorder %s15, 0
    %p87 = por %p85, %p86
    %p88 = scmp.ne.s32.totalorder %s77, %s80
    %p89 = scmp.eq.s32.totalorder %s20, 1
    %p90 = por %p88, %p89
    %p91 = scmp.ne.s32.totalorder %s80, %s81
    %p92 = scmp.eq.s32.totalorder %s20, 0
    %p93 = por %p91, %p92
    %p94 = scmp.ne.s32.totalorder %s80, %s81
    %p95 = scmp.eq.s32.totalorder %s21, 1
    %p96 = por %p94, %p95
    %p98 = scmp.ne.s32.totalorder %s81, %s97
    %p99 = scmp.eq.s32.totalorder %s21, 0
    %p100 = por %p98, %p99
    %s101 = ssub.s32 %s15, %s22
    %p102 = scmp.eq.s32.totalorder %s101, 0
    %s104 = sadd.s32 %s103, 1
    %s105 = scalar_select %p102, %s103, %s104
    %p108 = pneg %p102
    %p109 = scmp.eq.s32.totalorder %s15, 1
    %p110 = por %p108, %p109
    %p111 = scmp.ne.s32.totalorder %s103, %s106
    %p112 = scmp.eq.s32.totalorder %s15, 0
    %p113 = por %p111, %p112
    %p114 = scmp.ne.s32.totalorder %s103, %s106
    %p115 = scmp.eq.s32.totalorder %s20, 1
    %p116 = por %p114, %p115
    %p117 = scmp.ne.s32.totalorder %s106, %s107
    %p118 = scmp.eq.s32.totalorder %s20, 0
    %p119 = por %p117, %p118
    %p120 = scmp.ne.s32.totalorder %s106, %s107
    %p121 = scmp.eq.s32.totalorder %s21, 1
    %p122 = por %p120, %p121
    %p124 = scmp.ne.s32.totalorder %s107, %s123
    %p125 = scmp.eq.s32.totalorder %s21, 0
    %p126 = por %p124, %p125
    %s127 = ssub.s32 %s15, %s22
    %p128 = scmp.eq.s32.totalorder %s127, 0
    %s130 = sadd.s32 %s129, 1
    %s131 = scalar_select %p128, %s129, %s130
    %p134 = pneg %p128
    %p135 = scmp.eq.s32.totalorder %s15, 1
    %p136 = por %p134, %p135
    %p137 = scmp.ne.s32.totalorder %s129, %s132
    %p138 = scmp.eq.s32.totalorder %s15, 0
    %p139 = por %p137, %p138
    %p140 = scmp.ne.s32.totalorder %s129, %s132
    %p141 = scmp.eq.s32.totalorder %s20, 1
    %p142 = por %p140, %p141
    %p143 = scmp.ne.s32.totalorder %s132, %s133
    %p144 = scmp.eq.s32.totalorder %s20, 0
    %p145 = por %p143, %p144
    %p146 = scmp.ne.s32.totalorder %s132, %s133
    %p147 = scmp.eq.s32.totalorder %s21, 1
    %p148 = por %p146, %p147
    %p150 = scmp.ne.s32.totalorder %s133, %s149
    %p151 = scmp.eq.s32.totalorder %s21, 0
    %p152 = por %p150, %p151
    %s153 = ssub.s32 %s15, %s22
    %p154 = scmp.eq.s32.totalorder %s153, 0
    %s156 = sadd.s32 %s155, 1
    %s157 = scalar_select %p154, %s155, %s156
    %p160 = pneg %p154
    %p161 = scmp.eq.s32.totalorder %s15, 1
    %p162 = por %p160, %p161
    %p163 = scmp.ne.s32.totalorder %s155, %s158
    %p164 = scmp.eq.s32.totalorder %s15, 0
    %p165 = por %p163, %p164
    %p166 = scmp.ne.s32.totalorder %s155, %s158
    %p167 = scmp.eq.s32.totalorder %s20, 1
    %p168 = por %p166, %p167
    %p169 = scmp.ne.s32.totalorder %s158, %s159
    %p170 = scmp.eq.s32.totalorder %s20, 0
    %p171 = por %p169, %p170
    %p172 = scmp.ne.s32.totalorder %s158, %s159
    %p173 = scmp.eq.s32.totalorder %s21, 1
    %p174 = por %p172, %p173
    %p176 = scmp.ne.s32.totalorder %s159, %s175
    %p177 = scmp.eq.s32.totalorder %s21, 0
    %p178 = por %p176, %p177
    %s179 = ssub.s32 %s15, %s22
    %p180 = scmp.eq.s32.totalorder %s179, 0
    %s182 = sadd.s32 %s181, 1
    %s183 = scalar_select %p180, %s181, %s182
    %p186 = pneg %p180
    %p187 = scmp.eq.s32.totalorder %s15, 1
    %p188 = por %p186, %p187
    %p189 = scmp.ne.s32.totalorder %s181, %s184
    %p190 = scmp.eq.s32.totalorder %s15, 0
    %p191 = por %p189, %p190
    %p192 = scmp.ne.s32.totalorder %s181, %s184
    %p193 = scmp.eq.s32.totalorder %s20, 1
    %p194 = por %p192, %p193
    %p195 = scmp.ne.s32.totalorder %s184, %s185
    %p196 = scmp.eq.s32.totalorder %s20, 0
    %p197 = por %p195, %p196
    %p198 = scmp.ne.s32.totalorder %s184, %s185
    %p199 = scmp.eq.s32.totalorder %s21, 1
    %p200 = por %p198, %p199
    %p202 = scmp.ne.s32.totalorder %s185, %s201
    %p203 = scmp.eq.s32.totalorder %s21, 0
    %p204 = por %p202, %p203
    %s205 = ssub.s32 %s15, %s22
    %p206 = scmp.eq.s32.totalorder %s205, 0
    %s208 = sadd.s32 %s207, 1
    %s209 = scalar_select %p206, %s207, %s208
    %p212 = pneg %p206
    %p213 = scmp.eq.s32.totalorder %s15, 1
    %p214 = por %p212, %p213
    %p215 = scmp.ne.s32.totalorder %s207, %s210
    %p216 = scmp.eq.s32.totalorder %s15, 0
    %p217 = por %p215, %p216
    %p218 = scmp.ne.s32.totalorder %s207, %s210
    %p219 = scmp.eq.s32.totalorder %s20, 1
    %p220 = por %p218, %p219
    %p221 = scmp.ne.s32.totalorder %s210, %s211
    %p222 = scmp.eq.s32.totalorder %s20, 0
    %p223 = por %p221, %p222
    %p224 = scmp.ne.s32.totalorder %s210, %s211
    %p225 = scmp.eq.s32.totalorder %s21, 1
    %p226 = por %p224, %p225
    %p228 = scmp.ne.s32.totalorder %s211, %s227
    %p229 = scmp.eq.s32.totalorder %s21, 0
    %p230 = por %p228, %p229
    %s231 = ssub.s32 %s15, %s22
    %p232 = scmp.eq.s32.totalorder %s231, 0
    %s234 = sadd.s32 %s233, 1
    %s235 = scalar_select %p232, %s233, %s234
    %p238 = pneg %p232
    %p239 = scmp.eq.s32.totalorder %s15, 1
    %p240 = por %p238, %p239
    %p241 = scmp.ne.s32.totalorder %s233, %s236
    %p242 = scmp.eq.s32.totalorder %s15, 0
    %p243 = por %p241, %p242
    %p244 = scmp.ne.s32.totalorder %s233, %s236
    %p245 = scmp.eq.s32.totalorder %s20, 1
    %p246 = por %p244, %p245
    %p247 = scmp.ne.s32.totalorder %s236, %s237
    %p248 = scmp.eq.s32.totalorder %s20, 0
    %p249 = por %p247, %p248
    %p250 = scmp.ne.s32.totalorder %s236, %s237
    %p251 = scmp.eq.s32.totalorder %s21, 1
    %p252 = por %p250, %p251
    %p254 = scmp.ne.s32.totalorder %s237, %s253
    %p255 = scmp.eq.s32.totalorder %s21, 0
    %p256 = por %p254, %p255
    %s257 = ssub.s32 %s15, %s22
    %p258 = scmp.eq.s32.totalorder %s257, 0
    %s260 = sadd.s32 %s259, 1
    %s261 = scalar_select %p258, %s259, %s260
    %p264 = pneg %p258
    %p265 = scmp.eq.s32.totalorder %s15, 1
    %p266 = por %p264, %p265
    %p267 = scmp.ne.s32.totalorder %s259, %s262
    %p268 = scmp.eq.s32.totalorder %s15, 0
    %p269 = por %p267, %p268
    %p270 = scmp.ne.s32.totalorder %s259, %s262
    %p271 = scmp.eq.s32.totalorder %s20, 1
    %p272 = por %p270, %p271
    %p273 = scmp.ne.s32.totalorder %s262, %s263
    %p274 = scmp.eq.s32.totalorder %s20, 0
    %p275 = por %p273, %p274
    %p276 = scmp.ne.s32.totalorder %s262, %s263
    %p277 = scmp.eq.s32.totalorder %s21, 1
    %p278 = por %p276, %p277
    %p280 = scmp.ne.s32.totalorder %s263, %s279
    %p281 = scmp.eq.s32.totalorder %s21, 0
    %p282 = por %p280, %p281
    %p283 = scmp.le.s32.totalorder 1, %s15
    %p284 = scmp.lt.s32.totalorder %s15, 3
    %p285 = pnand %p283, %p284
    %p286 = pneg %p285
    // Predicated region
    $region9: #{triple_dqn_forward.7} parent=5 // pred_check
      _
    $region10: #{triple_dqn_forward.7} parent=5 // pred_check_branch
      %288 = sbr.rel (%p285) target = $region12
    $region11: #{triple_dqn_forward.7} parent=5 // pred_region
      %s289 = ssub.s32 %s15, 1
    $region12: #{triple_dqn_forward.7} parent=5 // pred_fallthru
      _
    %p290 = scmp.lt.s32.totalorder %s15, 2
    // Predicated region
    $region13: #{triple_dqn_forward.7} parent=5 // pred_check
      %p291 = pneg %p290
    $region14: #{triple_dqn_forward.7} parent=5 // pred_check_branch
      %293 = sbr.rel (%p291) target = $region16
    $region15: #{triple_dqn_forward.7} parent=5 // pred_region
      // Predicated region
      $region17: #{triple_dqn_forward.7} parent=15 // pred_check
        %p294 = pneg %p35
      $region18: #{triple_dqn_forward.7} parent=15 // pred_check_branch
        %296 = sbr.rel (%p294) target = $region20
      $region19: #{triple_dqn_forward.7} parent=15 // pred_region
        %p297 = scmp.lt.s32.totalorder %s15, 1
        %s298 = scalar_select %p297, %s15, 1
        %s299 = smul.addr %s298, 5
        %s300 = smul.addr %s299, 8
        %s301 = scalar_lea.vmem %s0, %s300
      $region20: #{triple_dqn_forward.7} parent=15 // pred_fallthru
        _
      // Predicated region
      $region21: #{triple_dqn_forward.7} parent=15 // pred_check
        %p302 = pneg %p61
      $region22: #{triple_dqn_forward.7} parent=15 // pred_check_branch
        %304 = sbr.rel (%p302) target = $region24
      $region23: #{triple_dqn_forward.7} parent=15 // pred_region
        %p305 = scmp.lt.s32.totalorder %s15, 1
        %s306 = scalar_select %p305, %s15, 1
        %s307 = smul.addr %s306, 80
        %s308 = smul.addr %s307, 8
        %s309 = scalar_lea.vmem %s1, %s308
      $region24: #{triple_dqn_forward.7} parent=15 // pred_fallthru
        _
      // Predicated region
      $region25: #{triple_dqn_forward.7} parent=15 // pred_check
        %p310 = pneg %p87
      $region26: #{triple_dqn_forward.7} parent=15 // pred_check_branch
        %312 = sbr.rel (%p310) target = $region28
      $region27: #{triple_dqn_forward.7} parent=15 // pred_region
        %p313 = scmp.lt.s32.totalorder %s15, 1
        %s314 = scalar_select %p313, %s15, 1
        %s315 = scalar_lea.vmem %s2, %s314
      $region28: #{triple_dqn_forward.7} parent=15 // pred_fallthru
        _
      // Predicated region
      $region29: #{triple_dqn_forward.7} parent=15 // pred_check
        %p316 = pneg %p113
      $region30: #{triple_dqn_forward.7} parent=15 // pred_check_branch
        %318 = sbr.rel (%p316) target = $region32
      $region31: #{triple_dqn_forward.7} parent=15 // pred_region
        %p319 = scmp.lt.s32.totalorder %s15, 1
        %s320 = scalar_select %p319, %s15, 1
        %s321 = smul.addr %s320, 32
        %s322 = smul.addr %s321, 8
        %s323 = scalar_lea.vmem %s3, %s322
      $region32: #{triple_dqn_forward.7} parent=15 // pred_fallthru
        _
      // Predicated region
      $region33: #{triple_dqn_forward.7} parent=15 // pred_check
        %p324 = pneg %p139
      $region34: #{triple_dqn_forward.7} parent=15 // pred_check_branch
        %326 = sbr.rel (%p324) target = $region36
      $region35: #{triple_dqn_forward.7} parent=15 // pred_region
        %p327 = scmp.lt.s32.totalorder %s15, 1
        %s328 = scalar_select %p327, %s15, 1
        %s329 = smul.addr %s328, 2
        %s330 = scalar_lea.vmem %s4, %s329
      $region36: #{triple_dqn_forward.7} parent=15 // pred_fallthru
        _
      // Predicated region
      $region37: #{triple_dqn_forward.7} parent=15 // pred_check
        %p331 = pneg %p165
      $region38: #{triple_dqn_forward.7} parent=15 // pred_check_branch
        %333 = sbr.rel (%p331) target = $region40
      $region39: #{triple_dqn_forward.7} parent=15 // pred_region
        %p334 = scmp.lt.s32.totalorder %s15, 1
        %s335 = scalar_select %p334, %s15, 1
        %s336 = smul.addr %s335, 64
        %s337 = smul.addr %s336, 8
        %s338 = scalar_lea.vmem %s5, %s337
      $region40: #{triple_dqn_forward.7} parent=15 // pred_fallthru
        _
      // Predicated region
      $region41: #{triple_dqn_forward.7} parent=15 // pred_check
        %p339 = pneg %p191
      $region42: #{triple_dqn_forward.7} parent=15 // pred_check_branch
        %341 = sbr.rel (%p339) target = $region44
      $region43: #{triple_dqn_forward.7} parent=15 // pred_region
        %p342 = scmp.lt.s32.totalorder %s15, 1
        %s343 = scalar_select %p342, %s15, 1
        %s344 = smul.addr %s343, 2
        %s345 = scalar_lea.vmem %s6, %s344
      $region44: #{triple_dqn_forward.7} parent=15 // pred_fallthru
        _
      // Predicated region
      $region45: #{triple_dqn_forward.7} parent=15 // pred_check
        %p346 = pneg %p217
      $region46: #{triple_dqn_forward.7} parent=15 // pred_check_branch
        %348 = sbr.rel (%p346) target = $region48
      $region47: #{triple_dqn_forward.7} parent=15 // pred_region
        %p349 = scmp.lt.s32.totalorder %s15, 1
        %s350 = scalar_select %p349, %s15, 1
        %s351 = smul.addr %s350, 32
        %s352 = smul.addr %s351, 8
        %s353 = scalar_lea.vmem %s7, %s352
      $region48: #{triple_dqn_forward.7} parent=15 // pred_fallthru
        _
      // Predicated region
      $region49: #{triple_dqn_forward.7} parent=15 // pred_check
        %p354 = pneg %p243
      $region50: #{triple_dqn_forward.7} parent=15 // pred_check_branch
        %356 = sbr.rel (%p354) target = $region52
      $region51: #{triple_dqn_forward.7} parent=15 // pred_region
        %p357 = scmp.lt.s32.totalorder %s15, 1
        %s358 = scalar_select %p357, %s15, 1
        %s359 = scalar_lea.vmem %s8, %s358
      $region52: #{triple_dqn_forward.7} parent=15 // pred_fallthru
        _
    $region16: #{triple_dqn_forward.7} parent=5 // pred_fallthru
      _
    %p360 = scmp.le.s32.totalorder 1, %s15
    %p361 = scmp.lt.s32.totalorder %s15, 3
    %p362 = pnand %p360, %p361
    %p363 = pneg %p362
    // Predicated region
    $region53: #{triple_dqn_forward.7} parent=5 // pred_check
      _
    $region54: #{triple_dqn_forward.7} parent=5 // pred_check_branch
      %365 = sbr.rel (%p362) target = $region56
    $region55: #{triple_dqn_forward.7} parent=5 // pred_region
      %s366 = ssub.s32 %s15, 1
      %p367 = scmp.lt.s32.totalorder %s20, 1
      %s368 = scalar_select %p367, %s20, 1
      %s369 = smul.addr %s368, 5
      %s370 = smul.addr %s369, 8
      %s371 = scalar_lea.vmem %s0, %s370
      %p372 = pneg %p41
      %p373 = pneg %p38
      %p374 = scmp.lt.s32.totalorder %s20, 1
      %s375 = scalar_select %p374, %s20, 1
      %s376 = smul.addr %s375, 80
      %s377 = smul.addr %s376, 8
      %s378 = scalar_lea.vmem %s1, %s377
      %p379 = pneg %p67
      %p380 = pneg %p64
      %p381 = scmp.lt.s32.totalorder %s20, 1
      %s382 = scalar_select %p381, %s20, 1
      %s383 = scalar_lea.vmem %s2, %s382
      %p384 = pneg %p93
      %p385 = pneg %p90
      %p386 = scmp.lt.s32.totalorder %s20, 1
      %s387 = scalar_select %p386, %s20, 1
      %s388 = smul.addr %s387, 32
      %s389 = smul.addr %s388, 8
      %s390 = scalar_lea.vmem %s3, %s389
      %p391 = pneg %p119
      %p392 = pneg %p116
      %p393 = scmp.lt.s32.totalorder %s20, 1
      %s394 = scalar_select %p393, %s20, 1
      %s395 = smul.addr %s394, 2
      %s396 = scalar_lea.vmem %s4, %s395
      %p397 = pneg %p145
      %p398 = pneg %p142
      %p399 = scmp.lt.s32.totalorder %s20, 1
      %s400 = scalar_select %p399, %s20, 1
      %s401 = smul.addr %s400, 64
      %s402 = smul.addr %s401, 8
      %s403 = scalar_lea.vmem %s5, %s402
      %p404 = pneg %p171
      %p405 = pneg %p168
      %p406 = scmp.lt.s32.totalorder %s20, 1
      %s407 = scalar_select %p406, %s20, 1
      %s408 = smul.addr %s407, 2
      %s409 = scalar_lea.vmem %s6, %s408
      %p410 = pneg %p197
      %p411 = pneg %p194
      %p412 = scmp.lt.s32.totalorder %s20, 1
      %s413 = scalar_select %p412, %s20, 1
      %s414 = smul.addr %s413, 32
      %s415 = smul.addr %s414, 8
      %s416 = scalar_lea.vmem %s7, %s415
      %p417 = pneg %p223
      %p418 = pneg %p220
      %p419 = scmp.lt.s32.totalorder %s20, 1
      %s420 = scalar_select %p419, %s20, 1
      %s421 = scalar_lea.vmem %s8, %s420
      %p422 = pneg %p249
      %p423 = pneg %p246
      %p424 = pneg %p275
      %p425 = pneg %p272
      %p426 = scmp.lt.s32.totalorder %s20, 1
      %s427 = scalar_select %p426, %s20, 1
      %s428 = smul.addr %s427, 8
      %s429 = scalar_lea.vmem %s9, %s428
      %p430 = scmp.lt.s32.totalorder %s20, 1
      %s431 = scalar_select %p430, %s20, 1
      %s432 = smul.addr %s431, 5
      %s433 = smul.addr %s432, 8
      %s434 = scalar_lea.vmem %s0, %s433
      %p435 = scmp.lt.s32.totalorder %s20, 1
      %s436 = scalar_select %p435, %s20, 1
      %s437 = smul.addr %s436, 80
      %s438 = smul.addr %s437, 8
      %s439 = scalar_lea.vmem %s1, %s438
      %p440 = scmp.lt.s32.totalorder %s20, 1
      %s441 = scalar_select %p440, %s20, 1
      %s442 = scalar_lea.vmem %s2, %s441
      %p443 = scmp.lt.s32.totalorder %s20, 1
      %s444 = scalar_select %p443, %s20, 1
      %s445 = smul.addr %s444, 32
      %s446 = smul.addr %s445, 8
      %s447 = scalar_lea.vmem %s3, %s446
      %p448 = scmp.lt.s32.totalorder %s20, 1
      %s449 = scalar_select %p448, %s20, 1
      %s450 = smul.addr %s449, 2
      %s451 = scalar_lea.vmem %s4, %s450
      %p452 = scmp.lt.s32.totalorder %s20, 1
      %s453 = scalar_select %p452, %s20, 1
      %s454 = smul.addr %s453, 64
      %s455 = smul.addr %s454, 8
      %s456 = scalar_lea.vmem %s5, %s455
      %p457 = scmp.lt.s32.totalorder %s20, 1
      %s458 = scalar_select %p457, %s20, 1
      %s459 = smul.addr %s458, 2
      %s460 = scalar_lea.vmem %s6, %s459
      %p461 = scmp.lt.s32.totalorder %s20, 1
      %s462 = scalar_select %p461, %s20, 1
      %s463 = smul.addr %s462, 32
      %s464 = smul.addr %s463, 8
      %s465 = scalar_lea.vmem %s7, %s464
      %p466 = scmp.lt.s32.totalorder %s20, 1
      %s467 = scalar_select %p466, %s20, 1
      %s468 = scalar_lea.vmem %s8, %s467
      %p469 = scmp.lt.s32.totalorder %s20, 1
      %s470 = scalar_select %p469, %s20, 1
      %s471 = smul.addr %s470, 8
      %s472 = scalar_lea.vmem %s9, %s471
      %v473 = vld [vmem:[%s434] sm:$0xff]
      %v474 = vld [vmem:[%s434 + $0x8] sm:$0xff]
      %v475 = vld [vmem:[%s434 + $0x10] sm:$0xff]
      %v476 = vld [vmem:[%s434 + $0x18] sm:$0xff]
      %v477 = vld [vmem:[%s434 + $0x20] sm:$0xff]
      %v478 = vld [vmem:[%s439] sm:$0xff]
      %v479 = vld [vmem:[%s439 + $0x8] sm:$0xff]
      %v480 = vld [vmem:[%s439 + $0x10] sm:$0xff]
      %v481 = vld [vmem:[%s439 + $0x18] sm:$0xff]
      %v482 = vld [vmem:[%s439 + $0x20] sm:$0xff]
      %v483 = vld [vmem:[%s439 + $0x28] sm:$0xff]
      %v484 = vld [vmem:[%s439 + $0x30] sm:$0xff]
      %v485 = vld [vmem:[%s439 + $0x38] sm:$0xff]
      %v486 = vld [vmem:[%s439 + $0x40] sm:$0xff]
      %v487 = vld [vmem:[%s439 + $0x48] sm:$0xff]
      %v488 = vld [vmem:[%s439 + $0x50] sm:$0xff]
      %v489 = vld [vmem:[%s439 + $0x58] sm:$0xff]
      %v490 = vld [vmem:[%s439 + $0x60] sm:$0xff]
      %v491 = vld [vmem:[%s439 + $0x68] sm:$0xff]
      %v492 = vld [vmem:[%s439 + $0x70] sm:$0xff]
      %v493 = vld [vmem:[%s439 + $0x78] sm:$0xff]
      %v494 = vld [vmem:[%s439 + $0x80] sm:$0xff]
      %v495 = vld [vmem:[%s439 + $0x88] sm:$0xff]
      %v496 = vld [vmem:[%s439 + $0x90] sm:$0xff]
      %v497 = vld [vmem:[%s439 + $0x98] sm:$0xff]
      %v498 = vld [vmem:[%s439 + $0xa0] sm:$0xff]
      %v499 = vld [vmem:[%s439 + $0xa8] sm:$0xff]
      %v500 = vld [vmem:[%s439 + $0xb0] sm:$0xff]
      %v501 = vld [vmem:[%s439 + $0xb8] sm:$0xff]
      %v502 = vld [vmem:[%s439 + $0xc0] sm:$0xff]
      %v503 = vld [vmem:[%s439 + $0xc8] sm:$0xff]
      %v504 = vld [vmem:[%s439 + $0xd0] sm:$0xff]
      %v505 = vld [vmem:[%s439 + $0xd8] sm:$0xff]
      %v506 = vld [vmem:[%s439 + $0xe0] sm:$0xff]
      %v507 = vld [vmem:[%s439 + $0xe8] sm:$0xff]
      %v508 = vld [vmem:[%s439 + $0xf0] sm:$0xff]
      %v509 = vld [vmem:[%s439 + $0xf8] sm:$0xff]
      %v510 = vld [vmem:[%s439 + $0x100] sm:$0xff]
      %v511 = vld [vmem:[%s439 + $0x108] sm:$0xff]
      %v512 = vld [vmem:[%s439 + $0x110] sm:$0xff]
      %v513 = vld [vmem:[%s439 + $0x118] sm:$0xff]
      %v514 = vld [vmem:[%s439 + $0x120] sm:$0xff]
      %v515 = vld [vmem:[%s439 + $0x128] sm:$0xff]
      %v516 = vld [vmem:[%s439 + $0x130] sm:$0xff]
      %v517 = vld [vmem:[%s439 + $0x138] sm:$0xff]
      %v518 = vld [vmem:[%s439 + $0x140] sm:$0xff]
      %v519 = vld [vmem:[%s439 + $0x148] sm:$0xff]
      %v520 = vld [vmem:[%s439 + $0x150] sm:$0xff]
      %v521 = vld [vmem:[%s439 + $0x158] sm:$0xff]
      %v522 = vld [vmem:[%s439 + $0x160] sm:$0xff]
      %v523 = vld [vmem:[%s439 + $0x168] sm:$0xff]
      %v524 = vld [vmem:[%s439 + $0x170] sm:$0xff]
      %v525 = vld [vmem:[%s439 + $0x178] sm:$0xff]
      %v526 = vld [vmem:[%s439 + $0x180] sm:$0xff]
      %v527 = vld [vmem:[%s439 + $0x188] sm:$0xff]
      %v528 = vld [vmem:[%s439 + $0x190] sm:$0xff]
      %v529 = vld [vmem:[%s439 + $0x198] sm:$0xff]
      %v530 = vld [vmem:[%s439 + $0x1a0] sm:$0xff]
      %v531 = vld [vmem:[%s439 + $0x1a8] sm:$0xff]
      %v532 = vld [vmem:[%s439 + $0x1b0] sm:$0xff]
      %v533 = vld [vmem:[%s439 + $0x1b8] sm:$0xff]
      %v534 = vld [vmem:[%s439 + $0x1c0] sm:$0xff]
      %v535 = vld [vmem:[%s439 + $0x1c8] sm:$0xff]
      %v536 = vld [vmem:[%s439 + $0x1d0] sm:$0xff]
      %v537 = vld [vmem:[%s439 + $0x1d8] sm:$0xff]
      %v538 = vld [vmem:[%s439 + $0x1e0] sm:$0xff]
      %v539 = vld [vmem:[%s439 + $0x1e8] sm:$0xff]
      %v540 = vld [vmem:[%s439 + $0x1f0] sm:$0xff]
      %v541 = vld [vmem:[%s439 + $0x1f8] sm:$0xff]
      %v542 = vld [vmem:[%s439 + $0x200] sm:$0xff]
      %v543 = vld [vmem:[%s439 + $0x208] sm:$0xff]
      %v544 = vld [vmem:[%s439 + $0x210] sm:$0xff]
      %v545 = vld [vmem:[%s439 + $0x218] sm:$0xff]
      %v546 = vld [vmem:[%s439 + $0x220] sm:$0xff]
      %v547 = vld [vmem:[%s439 + $0x228] sm:$0xff]
      %v548 = vld [vmem:[%s439 + $0x230] sm:$0xff]
      %v549 = vld [vmem:[%s439 + $0x238] sm:$0xff]
      %v550 = vld [vmem:[%s439 + $0x240] sm:$0xff]
      %v551 = vld [vmem:[%s439 + $0x248] sm:$0xff]
      %v552 = vld [vmem:[%s439 + $0x250] sm:$0xff]
      %v553 = vld [vmem:[%s439 + $0x258] sm:$0xff]
      %v554 = vld [vmem:[%s439 + $0x260] sm:$0xff]
      %v555 = vld [vmem:[%s439 + $0x268] sm:$0xff]
      %v556 = vld [vmem:[%s439 + $0x270] sm:$0xff]
      %v557 = vld [vmem:[%s439 + $0x278] sm:$0xff]
      %v558 = vld [vmem:[%s442] sm:$0x1]
      %v560 = vlaneseq
      %v561 = vshrl.u32 %v560, 7
      %v562 = vsub.s32 0, %v561
      %v563 = vrot.slane %v558, %v562
      %565 = vmatprep.subr.mxu0 0.0
      %566 = vmatpush1.msra.mxu0 %v478
      %567 = vmatprep.subr.mxu0 0.0
      %568 = vmatpush1.msra.mxu0 %v479
      %569 = vmatprep.subr.mxu0 0.0
      %570 = vmatpush1.msra.mxu0 %v480
      %571 = vmatprep.subr.mxu0 0.0
      %572 = vmatpush1.msra.mxu0 %v481
      %573 = vmatprep.subr.mxu0 0.0
      %574 = vmatpush1.msra.mxu0 %v482
      %575 = vmatprep.subr.mxu0 0.0
      %576 = vmatpush1.msra.mxu0 %v483
      %577 = vmatprep.subr.mxu0 0.0
      %578 = vmatpush1.msra.mxu0 %v484
      %579 = vmatprep.subr.mxu0 0.0
      %580 = vmatpush1.msra.mxu0 %v485
      %581 = vmatprep.subr.mxu0 0.0
      %582 = vmatpush1.msra.mxu0 %v486
      %583 = vmatprep.subr.mxu0 0.0
      %584 = vmatpush1.msra.mxu0 %v487
      %585 = vmatprep.subr.mxu0 0.0
      %586 = vmatpush1.msra.mxu0 %v488
      %587 = vmatprep.subr.mxu0 0.0
      %588 = vmatpush1.msra.mxu0 %v489
      %589 = vmatprep.subr.mxu0 0.0
      %590 = vmatpush1.msra.mxu0 %v490
      %591 = vmatprep.subr.mxu0 0.0
      %592 = vmatpush1.msra.mxu0 %v491
      %593 = vmatprep.subr.mxu0 0.0
      %594 = vmatpush1.msra.mxu0 %v492
      %595 = vmatprep.subr.mxu0 0.0
      %596 = vmatpush1.msra.mxu0 %v493
      %597 = vmatprep.subr.mxu0 0.0
      %598 = vmatpush1.msra.mxu0 %v494
      %599 = vmatprep.subr.mxu0 0.0
      %600 = vmatpush1.msra.mxu0 %v495
      %601 = vmatprep.subr.mxu0 0.0
      %602 = vmatpush1.msra.mxu0 %v496
      %603 = vmatprep.subr.mxu0 0.0
      %604 = vmatpush1.msra.mxu0 %v497
      %605 = vmatprep.subr.mxu0 0.0
      %606 = vmatpush1.msra.mxu0 %v498
      %607 = vmatprep.subr.mxu0 0.0
      %608 = vmatpush1.msra.mxu0 %v499
      %609 = vmatprep.subr.mxu0 0.0
      %610 = vmatpush1.msra.mxu0 %v500
      %611 = vmatprep.subr.mxu0 0.0
      %612 = vmatpush1.msra.mxu0 %v501
      %613 = vmatprep.subr.mxu0 0.0
      %614 = vmatpush1.msra.mxu0 %v502
      %615 = vmatprep.subr.mxu0 0.0
      %616 = vmatpush1.msra.mxu0 %v503
      %617 = vmatprep.subr.mxu0 0.0
      %618 = vmatpush1.msra.mxu0 %v504
      %619 = vmatprep.subr.mxu0 0.0
      %620 = vmatpush1.msra.mxu0 %v505
      %621 = vmatprep.subr.mxu0 0.0
      %622 = vmatpush1.msra.mxu0 %v506
      %623 = vmatprep.subr.mxu0 0.0
      %624 = vmatpush1.msra.mxu0 %v507
      %625 = vmatprep.subr.mxu0 0.0
      %626 = vmatpush1.msra.mxu0 %v508
      %627 = vmatprep.subr.mxu0 0.0
      %628 = vmatpush1.msra.mxu0 %v509
      %629 = vmatprep.mubr.f32.mxu0 %v474
      %630 = vmatmul.mubr.f32.gmra.mrb[0].mxu0 %v473
      %v631 = vpop.f32.mrb[0].mxu0
      %v632 = vadd.f32 %v563, %v631
      %v633 = vpop.f32.mrb[0].mxu0
      %634 = vdwg.mxu0
      %635 = vmatprep.subr.mxu0 0.0
      %636 = vmatpush1.msra.mxu0 %v510
      %637 = vmatprep.subr.mxu0 0.0
      %638 = vmatpush1.msra.mxu0 %v511
      %639 = vmatprep.subr.mxu0 0.0
      %640 = vmatpush1.msra.mxu0 %v512
      %641 = vmatprep.subr.mxu0 0.0
      %642 = vmatpush1.msra.mxu0 %v513
      %643 = vmatprep.subr.mxu0 0.0
      %644 = vmatpush1.msra.mxu0 %v514
      %645 = vmatprep.subr.mxu0 0.0
      %646 = vmatpush1.msra.mxu0 %v515
      %647 = vmatprep.subr.mxu0 0.0
      %648 = vmatpush1.msra.mxu0 %v516
      %649 = vmatprep.subr.mxu0 0.0
      %650 = vmatpush1.msra.mxu0 %v517
      %651 = vmatprep.subr.mxu0 0.0
      %652 = vmatpush1.msra.mxu0 %v518
      %653 = vmatprep.subr.mxu0 0.0
      %654 = vmatpush1.msra.mxu0 %v519
      %655 = vmatprep.subr.mxu0 0.0
      %656 = vmatpush1.msra.mxu0 %v520
      %657 = vmatprep.subr.mxu0 0.0
      %658 = vmatpush1.msra.mxu0 %v521
      %659 = vmatprep.subr.mxu0 0.0
      %660 = vmatpush1.msra.mxu0 %v522
      %661 = vmatprep.subr.mxu0 0.0
      %662 = vmatpush1.msra.mxu0 %v523
      %663 = vmatprep.subr.mxu0 0.0
      %664 = vmatpush1.msra.mxu0 %v524
      %665 = vmatprep.subr.mxu0 0.0
      %666 = vmatpush1.msra.mxu0 %v525
      %667 = vmatprep.subr.mxu0 0.0
      %668 = vmatpush1.msra.mxu0 %v526
      %669 = vmatprep.subr.mxu0 0.0
      %670 = vmatpush1.msra.mxu0 %v527
      %671 = vmatprep.subr.mxu0 0.0
      %672 = vmatpush1.msra.mxu0 %v528
      %673 = vmatprep.subr.mxu0 0.0
      %674 = vmatpush1.msra.mxu0 %v529
      %675 = vmatprep.subr.mxu0 0.0
      %676 = vmatpush1.msra.mxu0 %v530
      %677 = vmatprep.subr.mxu0 0.0
      %678 = vmatpush1.msra.mxu0 %v531
      %679 = vmatprep.subr.mxu0 0.0
      %680 = vmatpush1.msra.mxu0 %v532
      %681 = vmatprep.subr.mxu0 0.0
      %682 = vmatpush1.msra.mxu0 %v533
      %683 = vmatprep.subr.mxu0 0.0
      %684 = vmatpush1.msra.mxu0 %v534
      %685 = vmatprep.subr.mxu0 0.0
      %686 = vmatpush1.msra.mxu0 %v535
      %687 = vmatprep.subr.mxu0 0.0
      %688 = vmatpush1.msra.mxu0 %v536
      %689 = vmatprep.subr.mxu0 0.0
      %690 = vmatpush1.msra.mxu0 %v537
      %691 = vmatprep.subr.mxu0 0.0
      %692 = vmatpush1.msra.mxu0 %v538
      %693 = vmatprep.subr.mxu0 0.0
      %694 = vmatpush1.msra.mxu0 %v539
      %695 = vmatprep.subr.mxu0 0.0
      %696 = vmatpush1.msra.mxu0 %v540
      %697 = vmatprep.subr.mxu0 0.0
      %698 = vmatpush1.msra.mxu0 %v541
      %699 = vmatprep.mubr.f32.mxu0 %v476
      %700 = vmatmul.mubr.f32.gmra.mrb[0].mxu0 %v475
      %v701 = vpop.f32.mrb[0].mxu0
      %v702 = vadd.f32 %v632, %v701
      %v703 = vpop.f32.mrb[0].mxu0
      %704 = vdwg.mxu0
      %705 = vmatprep.subr.mxu0 0.0
      %706 = vmatpush1.msra.mxu0 %v542
      %707 = vmatprep.subr.mxu0 0.0
      %708 = vmatpush1.msra.mxu0 %v543
      %709 = vmatprep.subr.mxu0 0.0
      %710 = vmatpush1.msra.mxu0 %v544
      %711 = vmatprep.subr.mxu0 0.0
      %712 = vmatpush1.msra.mxu0 %v545
      %713 = vmatprep.subr.mxu0 0.0
      %714 = vmatpush1.msra.mxu0 %v546
      %715 = vmatprep.subr.mxu0 0.0
      %716 = vmatpush1.msra.mxu0 %v547
      %717 = vmatprep.subr.mxu0 0.0
      %718 = vmatpush1.msra.mxu0 %v548
      %719 = vmatprep.subr.mxu0 0.0
      %720 = vmatpush1.msra.mxu0 %v549
      %721 = vmatprep.subr.mxu0 0.0
      %722 = vmatpush1.msra.mxu0 %v550
      %723 = vmatprep.subr.mxu0 0.0
      %724 = vmatpush1.msra.mxu0 %v551
      %725 = vmatprep.subr.mxu0 0.0
      %726 = vmatpush1.msra.mxu0 %v552
      %727 = vmatprep.subr.mxu0 0.0
      %728 = vmatpush1.msra.mxu0 %v553
      %729 = vmatprep.subr.mxu0 0.0
      %730 = vmatpush1.msra.mxu0 %v554
      %731 = vmatprep.subr.mxu0 0.0
      %732 = vmatpush1.msra.mxu0 %v555
      %733 = vmatprep.subr.mxu0 0.0
      %734 = vmatpush1.msra.mxu0 %v556
      %735 = vmatprep.subr.mxu0 0.0
      %736 = vmatpush1.msra.mxu0 %v557
      %737 = vmatprep.subr.mxu0 0.0
      %738 = vmatpush1.msra.mxu0 0.0
      %739 = vmatprep.subr.mxu0 0.0
      %740 = vmatpush1.msra.mxu0 0.0
      %741 = vmatprep.subr.mxu0 0.0
      %742 = vmatpush1.msra.mxu0 0.0
      %743 = vmatprep.subr.mxu0 0.0
      %744 = vmatpush1.msra.mxu0 0.0
      %745 = vmatprep.subr.mxu0 0.0
      %746 = vmatpush1.msra.mxu0 0.0
      %747 = vmatprep.subr.mxu0 0.0
      %748 = vmatpush1.msra.mxu0 0.0
      %749 = vmatprep.subr.mxu0 0.0
      %750 = vmatpush1.msra.mxu0 0.0
      %751 = vmatprep.subr.mxu0 0.0
      %752 = vmatpush1.msra.mxu0 0.0
      %753 = vmatprep.subr.mxu0 0.0
      %754 = vmatpush1.msra.mxu0 0.0
      %755 = vmatprep.subr.mxu0 0.0
      %756 = vmatpush1.msra.mxu0 0.0
      %757 = vmatprep.subr.mxu0 0.0
      %758 = vmatpush1.msra.mxu0 0.0
      %759 = vmatprep.subr.mxu0 0.0
      %760 = vmatpush1.msra.mxu0 0.0
      %761 = vmatprep.subr.mxu0 0.0
      %762 = vmatpush1.msra.mxu0 0.0
      %763 = vmatprep.subr.mxu0 0.0
      %764 = vmatpush1.msra.mxu0 0.0
      %765 = vmatprep.subr.mxu0 0.0
      %766 = vmatpush1.msra.mxu0 0.0
      %767 = vmatprep.subr.mxu0 0.0
      %768 = vmatpush1.msra.mxu0 0.0
      %769 = vmatprep.mubr.f32.mxu0 0.0
      %770 = vmatmul.mubr.f32.gmra.mrb[0].mxu0 %v477
      %v771 = vpop.f32.mrb[0].mxu0
      %v772 = vadd.f32 %v702, %v771
      %v773 = vpop.f32.mrb[0].mxu0
      %774 = vdwg.mxu0
      %vm775 = vcmp.gt.f32.partialorder %v772, 0.0
      %v776 = vmin.f32 %v772, 0.0
      %v777 = vmul.f32 %v776, 1.442695
      %v778 = vpow.pop %v777
      %v779 = vsub.f32 %v778, 1.0
      %v780 = vsel %vm775, %v772, %v779
      %v781 = vld [vmem:[%s447] sm:$0xff]
      %v782 = vld [vmem:[%s447 + $0x8] sm:$0xff]
      %v783 = vld [vmem:[%s447 + $0x10] sm:$0xff]
      %v784 = vld [vmem:[%s447 + $0x18] sm:$0xff]
      %v785 = vld [vmem:[%s447 + $0x20] sm:$0xff]
      %v786 = vld [vmem:[%s447 + $0x28] sm:$0xff]
      %v787 = vld [vmem:[%s447 + $0x30] sm:$0xff]
      %v788 = vld [vmem:[%s447 + $0x38] sm:$0xff]
      %v789 = vld [vmem:[%s447 + $0x40] sm:$0xff]
      %v790 = vld [vmem:[%s447 + $0x48] sm:$0xff]
      %v791 = vld [vmem:[%s447 + $0x50] sm:$0xff]
      %v792 = vld [vmem:[%s447 + $0x58] sm:$0xff]
      %v793 = vld [vmem:[%s447 + $0x60] sm:$0xff]
      %v794 = vld [vmem:[%s447 + $0x68] sm:$0xff]
      %v795 = vld [vmem:[%s447 + $0x70] sm:$0xff]
      %v796 = vld [vmem:[%s447 + $0x78] sm:$0xff]
      %v797 = vld [vmem:[%s447 + $0x80] sm:$0xff]
      %v798 = vld [vmem:[%s447 + $0x88] sm:$0xff]
      %v799 = vld [vmem:[%s447 + $0x90] sm:$0xff]
      %v800 = vld [vmem:[%s447 + $0x98] sm:$0xff]
      %v801 = vld [vmem:[%s447 + $0xa0] sm:$0xff]
      %v802 = vld [vmem:[%s447 + $0xa8] sm:$0xff]
      %v803 = vld [vmem:[%s447 + $0xb0] sm:$0xff]
      %v804 = vld [vmem:[%s447 + $0xb8] sm:$0xff]
      %v805 = vld [vmem:[%s447 + $0xc0] sm:$0xff]
      %v806 = vld [vmem:[%s447 + $0xc8] sm:$0xff]
      %v807 = vld [vmem:[%s447 + $0xd0] sm:$0xff]
      %v808 = vld [vmem:[%s447 + $0xd8] sm:$0xff]
      %v809 = vld [vmem:[%s447 + $0xe0] sm:$0xff]
      %v810 = vld [vmem:[%s447 + $0xe8] sm:$0xff]
      %v811 = vld [vmem:[%s447 + $0xf0] sm:$0xff]
      %v812 = vld [vmem:[%s447 + $0xf8] sm:$0xff]
      %v813 = vld [vmem:[%s451] sm:$0x3]
      %v815 = vlaneseq
      %v816 = vshrl.u32 %v815, 7
      %v817 = vsub.s32 0, %v816
      %v818 = vrot.slane %v813, %v817
      %v819 = vlaneseq
      %v820 = vshrl.u32 %v819, 7
      %v821 = vsub.s32 1, %v820
      %v822 = vrot.slane %v813, %v821
      %825 = vmatprep.subr.mxu0 %v782
      %826 = vmatpush1.msra.mxu0 %v781
      %827 = vmatprep.subr.mxu0 %v784
      %828 = vmatpush1.msra.mxu0 %v783
      %829 = vmatprep.subr.mxu0 %v786
      %830 = vmatpush1.msra.mxu0 %v785
      %831 = vmatprep.subr.mxu0 %v788
      %832 = vmatpush1.msra.mxu0 %v787
      %833 = vmatprep.subr.mxu0 %v790
      %834 = vmatpush1.msra.mxu0 %v789
      %835 = vmatprep.subr.mxu0 %v792
      %836 = vmatpush1.msra.mxu0 %v791
      %837 = vmatprep.subr.mxu0 %v794
      %838 = vmatpush1.msra.mxu0 %v793
      %839 = vmatprep.subr.mxu0 %v796
      %840 = vmatpush1.msra.mxu0 %v795
      %841 = vmatprep.subr.mxu0 %v798
      %842 = vmatpush1.msra.mxu0 %v797
      %843 = vmatprep.subr.mxu0 %v800
      %844 = vmatpush1.msra.mxu0 %v799
      %845 = vmatprep.subr.mxu0 %v802
      %846 = vmatpush1.msra.mxu0 %v801
      %847 = vmatprep.subr.mxu0 %v804
      %848 = vmatpush1.msra.mxu0 %v803
      %849 = vmatprep.subr.mxu0 %v806
      %850 = vmatpush1.msra.mxu0 %v805
      %851 = vmatprep.subr.mxu0 %v808
      %852 = vmatpush1.msra.mxu0 %v807
      %853 = vmatprep.subr.mxu0 %v810
      %854 = vmatpush1.msra.mxu0 %v809
      %855 = vmatprep.subr.mxu0 %v812
      %856 = vmatpush1.msra.mxu0 %v811
      %857 = vmatprep.subr.mxu0 0.0
      %858 = vmatpush1.msra.mxu0 0.0
      %859 = vmatprep.subr.mxu0 0.0
      %860 = vmatpush1.msra.mxu0 0.0
      %861 = vmatprep.subr.mxu0 0.0
      %862 = vmatpush1.msra.mxu0 0.0
      %863 = vmatprep.subr.mxu0 0.0
      %864 = vmatpush1.msra.mxu0 0.0
      %865 = vmatprep.subr.mxu0 0.0
      %866 = vmatpush1.msra.mxu0 0.0
      %867 = vmatprep.subr.mxu0 0.0
      %868 = vmatpush1.msra.mxu0 0.0
      %869 = vmatprep.subr.mxu0 0.0
      %870 = vmatpush1.msra.mxu0 0.0
      %871 = vmatprep.subr.mxu0 0.0
      %872 = vmatpush1.msra.mxu0 0.0
      %873 = vmatprep.subr.mxu0 0.0
      %874 = vmatpush1.msra.mxu0 0.0
      %875 = vmatprep.subr.mxu0 0.0
      %876 = vmatpush1.msra.mxu0 0.0
      %877 = vmatprep.subr.mxu0 0.0
      %878 = vmatpush1.msra.mxu0 0.0
      %879 = vmatprep.subr.mxu0 0.0
      %880 = vmatpush1.msra.mxu0 0.0
      %881 = vmatprep.subr.mxu0 0.0
      %882 = vmatpush1.msra.mxu0 0.0
      %883 = vmatprep.subr.mxu0 0.0
      %884 = vmatpush1.msra.mxu0 0.0
      %885 = vmatprep.subr.mxu0 0.0
      %886 = vmatpush1.msra.mxu0 0.0
      %887 = vmatprep.subr.mxu0 0.0
      %888 = vmatpush1.msra.mxu0 0.0
      %889 = vmatprep.mubr.f32.mxu0 0.0
      %890 = vmatmul.mubr.f32.gmra.mrb[0].mxu0 %v780
      %v891 = vpop.f32.mrb[0].mxu0
      %v892 = vadd.f32 %v818, %v891
      %v893 = vpop.f32.mrb[0].mxu0
      %v894 = vadd.f32 %v822, %v893
      %895 = vdwg.mxu0
      %vm896 = vcmp.gt.f32.partialorder %v892, 0.0
      %vm897 = vcmp.gt.f32.partialorder %v894, 0.0
      %v898 = vmin.f32 %v892, 0.0
      %v899 = vmin.f32 %v894, 0.0
      %v900 = vmul.f32 %v898, 1.442695
      %v901 = vpow.pop %v900
      %v902 = vmul.f32 %v899, 1.442695
      %v903 = vpow.pop %v902
      %v904 = vsub.f32 %v901, 1.0
      %v905 = vsub.f32 %v903, 1.0
      %v906 = vsel %vm896, %v892, %v904
      %v907 = vsel %vm897, %v894, %v905
      %v908 = vld [vmem:[%s456] sm:$0xff]
      %v909 = vld [vmem:[%s456 + $0x8] sm:$0xff]
      %v910 = vld [vmem:[%s456 + $0x10] sm:$0xff]
      %v911 = vld [vmem:[%s456 + $0x18] sm:$0xff]
      %v912 = vld [vmem:[%s456 + $0x20] sm:$0xff]
      %v913 = vld [vmem:[%s456 + $0x28] sm:$0xff]
      %v914 = vld [vmem:[%s456 + $0x30] sm:$0xff]
      %v915 = vld [vmem:[%s456 + $0x38] sm:$0xff]
      %v916 = vld [vmem:[%s456 + $0x40] sm:$0xff]
      %v917 = vld [vmem:[%s456 + $0x48] sm:$0xff]
      %v918 = vld [vmem:[%s456 + $0x50] sm:$0xff]
      %v919 = vld [vmem:[%s456 + $0x58] sm:$0xff]
      %v920 = vld [vmem:[%s456 + $0x60] sm:$0xff]
      %v921 = vld [vmem:[%s456 + $0x68] sm:$0xff]
      %v922 = vld [vmem:[%s456 + $0x70] sm:$0xff]
      %v923 = vld [vmem:[%s456 + $0x78] sm:$0xff]
      %v924 = vld [vmem:[%s456 + $0x80] sm:$0xff]
      %v925 = vld [vmem:[%s456 + $0x88] sm:$0xff]
      %v926 = vld [vmem:[%s456 + $0x90] sm:$0xff]
      %v927 = vld [vmem:[%s456 + $0x98] sm:$0xff]
      %v928 = vld [vmem:[%s456 + $0xa0] sm:$0xff]
      %v929 = vld [vmem:[%s456 + $0xa8] sm:$0xff]
      %v930 = vld [vmem:[%s456 + $0xb0] sm:$0xff]
      %v931 = vld [vmem:[%s456 + $0xb8] sm:$0xff]
      %v932 = vld [vmem:[%s456 + $0xc0] sm:$0xff]
      %v933 = vld [vmem:[%s456 + $0xc8] sm:$0xff]
      %v934 = vld [vmem:[%s456 + $0xd0] sm:$0xff]
      %v935 = vld [vmem:[%s456 + $0xd8] sm:$0xff]
      %v936 = vld [vmem:[%s456 + $0xe0] sm:$0xff]
      %v937 = vld [vmem:[%s456 + $0xe8] sm:$0xff]
      %v938 = vld [vmem:[%s456 + $0xf0] sm:$0xff]
      %v939 = vld [vmem:[%s456 + $0xf8] sm:$0xff]
      %v940 = vld [vmem:[%s456 + $0x100] sm:$0xff]
      %v941 = vld [vmem:[%s456 + $0x108] sm:$0xff]
      %v942 = vld [vmem:[%s456 + $0x110] sm:$0xff]
      %v943 = vld [vmem:[%s456 + $0x118] sm:$0xff]
      %v944 = vld [vmem:[%s456 + $0x120] sm:$0xff]
      %v945 = vld [vmem:[%s456 + $0x128] sm:$0xff]
      %v946 = vld [vmem:[%s456 + $0x130] sm:$0xff]
      %v947 = vld [vmem:[%s456 + $0x138] sm:$0xff]
      %v948 = vld [vmem:[%s456 + $0x140] sm:$0xff]
      %v949 = vld [vmem:[%s456 + $0x148] sm:$0xff]
      %v950 = vld [vmem:[%s456 + $0x150] sm:$0xff]
      %v951 = vld [vmem:[%s456 + $0x158] sm:$0xff]
      %v952 = vld [vmem:[%s456 + $0x160] sm:$0xff]
      %v953 = vld [vmem:[%s456 + $0x168] sm:$0xff]
      %v954 = vld [vmem:[%s456 + $0x170] sm:$0xff]
      %v955 = vld [vmem:[%s456 + $0x178] sm:$0xff]
      %v956 = vld [vmem:[%s456 + $0x180] sm:$0xff]
      %v957 = vld [vmem:[%s456 + $0x188] sm:$0xff]
      %v958 = vld [vmem:[%s456 + $0x190] sm:$0xff]
      %v959 = vld [vmem:[%s456 + $0x198] sm:$0xff]
      %v960 = vld [vmem:[%s456 + $0x1a0] sm:$0xff]
      %v961 = vld [vmem:[%s456 + $0x1a8] sm:$0xff]
      %v962 = vld [vmem:[%s456 + $0x1b0] sm:$0xff]
      %v963 = vld [vmem:[%s456 + $0x1b8] sm:$0xff]
      %v964 = vld [vmem:[%s456 + $0x1c0] sm:$0xff]
      %v965 = vld [vmem:[%s456 + $0x1c8] sm:$0xff]
      %v966 = vld [vmem:[%s456 + $0x1d0] sm:$0xff]
      %v967 = vld [vmem:[%s456 + $0x1d8] sm:$0xff]
      %v968 = vld [vmem:[%s456 + $0x1e0] sm:$0xff]
      %v969 = vld [vmem:[%s456 + $0x1e8] sm:$0xff]
      %v970 = vld [vmem:[%s456 + $0x1f0] sm:$0xff]
      %v971 = vld [vmem:[%s456 + $0x1f8] sm:$0xff]
      %v972 = vld [vmem:[%s460] sm:$0x3]
      %v974 = vlaneseq
      %v975 = vshrl.u32 %v974, 7
      %v976 = vsub.s32 0, %v975
      %v977 = vrot.slane %v972, %v976
      %v978 = vlaneseq
      %v979 = vshrl.u32 %v978, 7
      %v980 = vsub.s32 1, %v979
      %v981 = vrot.slane %v972, %v980
      %984 = vmatprep.subr.mxu0 %v909
      %985 = vmatpush1.msra.mxu0 %v908
      %986 = vmatprep.subr.mxu0 %v911
      %987 = vmatpush1.msra.mxu0 %v910
      %988 = vmatprep.subr.mxu0 %v913
      %989 = vmatpush1.msra.mxu0 %v912
      %990 = vmatprep.subr.mxu0 %v915
      %991 = vmatpush1.msra.mxu0 %v914
      %992 = vmatprep.subr.mxu0 %v917
      %993 = vmatpush1.msra.mxu0 %v916
      %994 = vmatprep.subr.mxu0 %v919
      %995 = vmatpush1.msra.mxu0 %v918
      %996 = vmatprep.subr.mxu0 %v921
      %997 = vmatpush1.msra.mxu0 %v920
      %998 = vmatprep.subr.mxu0 %v923
      %999 = vmatpush1.msra.mxu0 %v922
      %1000 = vmatprep.subr.mxu0 %v925
      %1001 = vmatpush1.msra.mxu0 %v924
      %1002 = vmatprep.subr.mxu0 %v927
      %1003 = vmatpush1.msra.mxu0 %v926
      %1004 = vmatprep.subr.mxu0 %v929
      %1005 = vmatpush1.msra.mxu0 %v928
      %1006 = vmatprep.subr.mxu0 %v931
      %1007 = vmatpush1.msra.mxu0 %v930
      %1008 = vmatprep.subr.mxu0 %v933
      %1009 = vmatpush1.msra.mxu0 %v932
      %1010 = vmatprep.subr.mxu0 %v935
      %1011 = vmatpush1.msra.mxu0 %v934
      %1012 = vmatprep.subr.mxu0 %v937
      %1013 = vmatpush1.msra.mxu0 %v936
      %1014 = vmatprep.subr.mxu0 %v939
      %1015 = vmatpush1.msra.mxu0 %v938
      %1016 = vmatprep.subr.mxu0 %v941
      %1017 = vmatpush1.msra.mxu0 %v940
      %1018 = vmatprep.subr.mxu0 %v943
      %1019 = vmatpush1.msra.mxu0 %v942
      %1020 = vmatprep.subr.mxu0 %v945
      %1021 = vmatpush1.msra.mxu0 %v944
      %1022 = vmatprep.subr.mxu0 %v947
      %1023 = vmatpush1.msra.mxu0 %v946
      %1024 = vmatprep.subr.mxu0 %v949
      %1025 = vmatpush1.msra.mxu0 %v948
      %1026 = vmatprep.subr.mxu0 %v951
      %1027 = vmatpush1.msra.mxu0 %v950
      %1028 = vmatprep.subr.mxu0 %v953
      %1029 = vmatpush1.msra.mxu0 %v952
      %1030 = vmatprep.subr.mxu0 %v955
      %1031 = vmatpush1.msra.mxu0 %v954
      %1032 = vmatprep.subr.mxu0 %v957
      %1033 = vmatpush1.msra.mxu0 %v956
      %1034 = vmatprep.subr.mxu0 %v959
      %1035 = vmatpush1.msra.mxu0 %v958
      %1036 = vmatprep.subr.mxu0 %v961
      %1037 = vmatpush1.msra.mxu0 %v960
      %1038 = vmatprep.subr.mxu0 %v963
      %1039 = vmatpush1.msra.mxu0 %v962
      %1040 = vmatprep.subr.mxu0 %v965
      %1041 = vmatpush1.msra.mxu0 %v964
      %1042 = vmatprep.subr.mxu0 %v967
      %1043 = vmatpush1.msra.mxu0 %v966
      %1044 = vmatprep.subr.mxu0 %v969
      %1045 = vmatpush1.msra.mxu0 %v968
      %1046 = vmatprep.subr.mxu0 %v971
      %1047 = vmatpush1.msra.mxu0 %v970
      %1048 = vmatprep.mubr.f32.mxu0 %v907
      %1049 = vmatmul.mubr.f32.gmra.mrb[0].mxu0 %v906
      %v1050 = vpop.f32.mrb[0].mxu0
      %v1051 = vadd.f32 %v977, %v1050
      %v1052 = vpop.f32.mrb[0].mxu0
      %v1053 = vadd.f32 %v981, %v1052
      %1054 = vdwg.mxu0
      %vm1055 = vcmp.gt.f32.partialorder %v1051, 0.0
      %vm1056 = vcmp.gt.f32.partialorder %v1053, 0.0
      %v1057 = vmin.f32 %v1051, 0.0
      %v1058 = vmin.f32 %v1053, 0.0
      %v1059 = vmul.f32 %v1057, 1.442695
      %v1060 = vpow.pop %v1059
      %v1061 = vmul.f32 %v1058, 1.442695
      %v1062 = vpow.pop %v1061
      %v1063 = vsub.f32 %v1060, 1.0
      %v1064 = vsub.f32 %v1062, 1.0
      %v1065 = vsel %vm1055, %v1051, %v1063
      %v1066 = vsel %vm1056, %v1053, %v1064
      %v1067 = vld [vmem:[%s465] sm:$0xff]
      %v1068 = vld [vmem:[%s465 + $0x8] sm:$0xff]
      %v1069 = vld [vmem:[%s465 + $0x10] sm:$0xff]
      %v1070 = vld [vmem:[%s465 + $0x18] sm:$0xff]
      %v1071 = vld [vmem:[%s465 + $0x20] sm:$0xff]
      %v1072 = vld [vmem:[%s465 + $0x28] sm:$0xff]
      %v1073 = vld [vmem:[%s465 + $0x30] sm:$0xff]
      %v1074 = vld [vmem:[%s465 + $0x38] sm:$0xff]
      %v1075 = vld [vmem:[%s465 + $0x40] sm:$0xff]
      %v1076 = vld [vmem:[%s465 + $0x48] sm:$0xff]
      %v1077 = vld [vmem:[%s465 + $0x50] sm:$0xff]
      %v1078 = vld [vmem:[%s465 + $0x58] sm:$0xff]
      %v1079 = vld [vmem:[%s465 + $0x60] sm:$0xff]
      %v1080 = vld [vmem:[%s465 + $0x68] sm:$0xff]
      %v1081 = vld [vmem:[%s465 + $0x70] sm:$0xff]
      %v1082 = vld [vmem:[%s465 + $0x78] sm:$0xff]
      %v1083 = vld [vmem:[%s465 + $0x80] sm:$0xff]
      %v1084 = vld [vmem:[%s465 + $0x88] sm:$0xff]
      %v1085 = vld [vmem:[%s465 + $0x90] sm:$0xff]
      %v1086 = vld [vmem:[%s465 + $0x98] sm:$0xff]
      %v1087 = vld [vmem:[%s465 + $0xa0] sm:$0xff]
      %v1088 = vld [vmem:[%s465 + $0xa8] sm:$0xff]
      %v1089 = vld [vmem:[%s465 + $0xb0] sm:$0xff]
      %v1090 = vld [vmem:[%s465 + $0xb8] sm:$0xff]
      %v1091 = vld [vmem:[%s465 + $0xc0] sm:$0xff]
      %v1092 = vld [vmem:[%s465 + $0xc8] sm:$0xff]
      %v1093 = vld [vmem:[%s465 + $0xd0] sm:$0xff]
      %v1094 = vld [vmem:[%s465 + $0xd8] sm:$0xff]
      %v1095 = vld [vmem:[%s465 + $0xe0] sm:$0xff]
      %v1096 = vld [vmem:[%s465 + $0xe8] sm:$0xff]
      %v1097 = vld [vmem:[%s465 + $0xf0] sm:$0xff]
      %v1098 = vld [vmem:[%s465 + $0xf8] sm:$0xff]
      %v1099 = vld [vmem:[%s468] sm:$0x1]
      %v1101 = vlaneseq
      %v1102 = vshrl.u32 %v1101, 7
      %v1103 = vsub.s32 0, %v1102
      %v1104 = vrot.slane %v1099, %v1103
      %1106 = vmatprep.subr.mxu0 0.0
      %1107 = vmatpush1.msra.mxu0 %v1067
      %1108 = vmatprep.subr.mxu0 0.0
      %1109 = vmatpush1.msra.mxu0 %v1068
      %1110 = vmatprep.subr.mxu0 0.0
      %1111 = vmatpush1.msra.mxu0 %v1069
      %1112 = vmatprep.subr.mxu0 0.0
      %1113 = vmatpush1.msra.mxu0 %v1070
      %1114 = vmatprep.subr.mxu0 0.0
      %1115 = vmatpush1.msra.mxu0 %v1071
      %1116 = vmatprep.subr.mxu0 0.0
      %1117 = vmatpush1.msra.mxu0 %v1072
      %1118 = vmatprep.subr.mxu0 0.0
      %1119 = vmatpush1.msra.mxu0 %v1073
      %1120 = vmatprep.subr.mxu0 0.0
      %1121 = vmatpush1.msra.mxu0 %v1074
      %1122 = vmatprep.subr.mxu0 0.0
      %1123 = vmatpush1.msra.mxu0 %v1075
      %1124 = vmatprep.subr.mxu0 0.0
      %1125 = vmatpush1.msra.mxu0 %v1076
      %1126 = vmatprep.subr.mxu0 0.0
      %1127 = vmatpush1.msra.mxu0 %v1077
      %1128 = vmatprep.subr.mxu0 0.0
      %1129 = vmatpush1.msra.mxu0 %v1078
      %1130 = vmatprep.subr.mxu0 0.0
      %1131 = vmatpush1.msra.mxu0 %v1079
      %1132 = vmatprep.subr.mxu0 0.0
      %1133 = vmatpush1.msra.mxu0 %v1080
      %1134 = vmatprep.subr.mxu0 0.0
      %1135 = vmatpush1.msra.mxu0 %v1081
      %1136 = vmatprep.subr.mxu0 0.0
      %1137 = vmatpush1.msra.mxu0 %v1082
      %1138 = vmatprep.subr.mxu0 0.0
      %1139 = vmatpush1.msra.mxu0 %v1083
      %1140 = vmatprep.subr.mxu0 0.0
      %1141 = vmatpush1.msra.mxu0 %v1084
      %1142 = vmatprep.subr.mxu0 0.0
      %1143 = vmatpush1.msra.mxu0 %v1085
      %1144 = vmatprep.subr.mxu0 0.0
      %1145 = vmatpush1.msra.mxu0 %v1086
      %1146 = vmatprep.subr.mxu0 0.0
      %1147 = vmatpush1.msra.mxu0 %v1087
      %1148 = vmatprep.subr.mxu0 0.0
      %1149 = vmatpush1.msra.mxu0 %v1088
      %1150 = vmatprep.subr.mxu0 0.0
      %1151 = vmatpush1.msra.mxu0 %v1089
      %1152 = vmatprep.subr.mxu0 0.0
      %1153 = vmatpush1.msra.mxu0 %v1090
      %1154 = vmatprep.subr.mxu0 0.0
      %1155 = vmatpush1.msra.mxu0 %v1091
      %1156 = vmatprep.subr.mxu0 0.0
      %1157 = vmatpush1.msra.mxu0 %v1092
      %1158 = vmatprep.subr.mxu0 0.0
      %1159 = vmatpush1.msra.mxu0 %v1093
      %1160 = vmatprep.subr.mxu0 0.0
      %1161 = vmatpush1.msra.mxu0 %v1094
      %1162 = vmatprep.subr.mxu0 0.0
      %1163 = vmatpush1.msra.mxu0 %v1095
      %1164 = vmatprep.subr.mxu0 0.0
      %1165 = vmatpush1.msra.mxu0 %v1096
      %1166 = vmatprep.subr.mxu0 0.0
      %1167 = vmatpush1.msra.mxu0 %v1097
      %1168 = vmatprep.subr.mxu0 0.0
      %1169 = vmatpush1.msra.mxu0 %v1098
      %1170 = vmatprep.mubr.f32.mxu0 %v1066
      %1171 = vmatmul.mubr.f32.gmra.mrb[0].mxu0 %v1065
      %v1172 = vpop.f32.mrb[0].mxu0
      %v1173 = vadd.f32 %v1104, %v1172
      %v1174 = vpop.f32.mrb[0].mxu0
      %1175 = vdwg.mxu0
      %1176 = vst [vmem:[%s472] sm:$0xff] %v1173
      %p1177 = scmp.lt.s32.totalorder %s20, 1
      %s1178 = scalar_select %p1177, %s20, 1
      %s1179 = smul.addr %s1178, 8
      %s1180 = scalar_lea.vmem %s9, %s1179
      // Predicated region
      $region57: #{triple_dqn_forward.7} parent=55 // pred_check
        %p1181 = pneg %p272
      $region58: #{triple_dqn_forward.7} parent=55 // pred_check_branch
        %1183 = sbr.rel (%p1181) target = $region60
      $region59: #{triple_dqn_forward.7} parent=55 // pred_region
        _
      $region60: #{triple_dqn_forward.7} parent=55 // pred_fallthru
        _
    $region56: #{triple_dqn_forward.7} parent=5 // pred_fallthru
      _
    %p1184 = scmp.le.s32.totalorder 2, %s15
    // Predicated region
    $region61: #{triple_dqn_forward.7} parent=5 // pred_check
      %p1185 = pneg %p1184
    $region62: #{triple_dqn_forward.7} parent=5 // pred_check_branch
      %1187 = sbr.rel (%p1185) target = $region64
    $region63: #{triple_dqn_forward.7} parent=5 // pred_region
      %s1188 = ssub.s32 %s15, 2
      // Predicated region
      $region65: #{triple_dqn_forward.7} parent=63 // pred_check
        %p1189 = pneg %p278
      $region66: #{triple_dqn_forward.7} parent=63 // pred_check_branch
        %1191 = sbr.rel (%p1189) target = $region68
      $region67: #{triple_dqn_forward.7} parent=63 // pred_region
        %p1192 = scmp.lt.s32.totalorder %s21, 1
        %s1193 = scalar_select %p1192, %s21, 1
        %s1194 = smul.addr %s1193, 8
        %s1195 = scalar_lea.vmem %s9, %s1194
      $region68: #{triple_dqn_forward.7} parent=63 // pred_fallthru
        _
    $region64: #{triple_dqn_forward.7} parent=5 // pred_fallthru
      _
  $region6: #{triple_dqn_forward.7} parent=0 // loop_footer
    %s19 = sadd.s32 1, %s15
  $region7: #{triple_dqn_forward.7} parent=0 // loop_footer_branch
    %14 = sbr.rel target = $region3
  $region8: #{triple_dqn_forward.7} parent=0 // loop_exit
    _

</llo_original>
